<compile_context>
chip_gen: v7x
topology: tpu7x:2x2x1
jax: 0.10.0
libtpu: 0.0.40
codegen_flags: <defaults>
</compile_context>

<pallas_src>
import math
import jax
import jax.numpy as jnp
from jax.experimental import pallas as pl
from jax.experimental.pallas import tpu as pltpu

# ----------------------- model configuration -----------------------
SEQ = 8
BATCH = 2
D_MODEL = 32
NUM_HEADS = 4
HEAD_DIM = D_MODEL // NUM_HEADS
D_FF = 64
NUM_LAYERS = 2
EPS = 1e-5  # nn.LayerNorm default

# per-layer bias / LayerNorm vector slab row layout (one (8, 128) vreg per layer)
_R_BQKV, _R_BO, _R_B1, _R_B2, _R_G1, _R_BE1, _R_G2, _R_BE2 = range(8)


def _layer_norm_fused(x, g, b):
    """LayerNorm with var = E[x^2] - mu^2 (two independent lane reductions, one pass)."""
    mu = jnp.mean(x, axis=-1, keepdims=True)
    ms = jnp.mean(x * x, axis=-1, keepdims=True)
    var = jnp.maximum(ms - mu * mu, 0.0)
    return (x - mu) * jax.lax.rsqrt(var + EPS) * g + b


# ----------------------- fused Pallas kernel ---------------------------------
def fused_encoder_kernel(x_ref, mask_ref, attnw_ref, ffnw_ref, vec_ref, out_ref):
    n = x_ref.shape[0]          # rows in this block (B*S fused, or S per batch on v7x)
    x = x_ref[...]              # (n, D)
    mask = mask_ref[...]        # (n, n) additive mask

    for layer in range(NUM_LAYERS):     # static unroll; weights stay resident in VMEM
        aw = attnw_ref[layer, :, :]     # (32, 128) = [Wq^T*scale | Wk^T | Wv^T | Wo^T]
        fw = ffnw_ref[layer, :, :]      # (96, 64)  = rows [W1^T ; W2^T (lane-padded)]
        vec = vec_ref[layer, :, :]      # (8, 128)  bias / LayerNorm vectors

        # ---- fused QKV projection: one lane-dense (n,32)@(32,128) matmul.
        # Lanes 96:128 (x@Wo^T) are computed but unused - same single MXU pass either way.
        qkv = jnp.dot(x, aw, preferred_element_type=jnp.float32) \
            + vec[_R_BQKV:_R_BQKV + 1, :]                                   # (n, 128)

        # ---- per-head attention; Wo^T applied per head into one f32 accumulator
        attn = jnp.zeros((n, D_MODEL), jnp.float32)
        for h in range(NUM_HEADS):
            lo = h * HEAD_DIM
            qh = qkv[:, lo:lo + HEAD_DIM]                         # scale folded on host
            kh = qkv[:, D_MODEL + lo:D_MODEL + lo + HEAD_DIM]
            vh = qkv[:, 2 * D_MODEL + lo:2 * D_MODEL + lo + HEAD_DIM]

            s = jnp.einsum('nk,mk->nm', qh, kh,
                           preferred_element_type=jnp.float32) + mask       # (n, n)
            s = s - jnp.max(s, axis=-1, keepdims=True)
            p = jnp.exp(s)
            # EUP reciprocal instead of a VPU divide (approx=False keeps 1e-4 tolerance)
            p = p * pl.reciprocal(jnp.sum(p, axis=-1, keepdims=True), approx=False)

            pv = jnp.dot(p, vh, preferred_element_type=jnp.float32)         # (n, HD)
            attn = attn + jnp.dot(pv, aw[lo:lo + HEAD_DIM, 3 * D_MODEL:],
                                  preferred_element_type=jnp.float32)       # (n, D)
        attn = attn + vec[_R_BO:_R_BO + 1, :D_MODEL]

        # ---- residual + norm1 (post-norm; dropout == identity in eval)
        y = _layer_norm_fused(x + attn,
                              vec[_R_G1:_R_G1 + 1, :D_MODEL],
                              vec[_R_BE1:_R_BE1 + 1, :D_MODEL])

        # ---- feed-forward: linear1 -> relu -> linear2 (weights pre-transposed)
        h1 = jnp.maximum(
            jnp.dot(y, fw[:D_MODEL, :], preferred_element_type=jnp.float32)
            + vec[_R_B1:_R_B1 + 1, :D_FF], 0.0)                              # (n, D_FF)
        h2 = jnp.dot(h1, fw[D_MODEL:, :],
                     preferred_element_type=jnp.float32)[:, :D_MODEL] \
            + vec[_R_B2:_R_B2 + 1, :D_MODEL]

        # ---- residual + norm2
        x = _layer_norm_fused(y + h2,
                              vec[_R_G2:_R_G2 + 1, :D_MODEL],
                              vec[_R_BE2:_R_BE2 + 1, :D_MODEL])

    out_ref[...] = x


# ----------------------- host-side parameter preparation --------------------
def _prep_kernel_params(layer_params):
    """PyTorch-layout params -> three lane-dense, layer-stacked weight slabs."""
    scale = 1.0 / math.sqrt(HEAD_DIM)
    attn_slabs, ffn_slabs, vec_slabs = [], [], []
    for p in layer_params:
        # (3D, D) PyTorch (out, in) -> (D, 3D); fold 1/sqrt(head_dim) into the Q columns
        wqkv_t = p["wqkv"].T
        wqkv_t = wqkv_t.at[:, :D_MODEL].multiply(scale)
        wo_t = p["wo"].T                                            # (D, D)
        attn_slabs.append(jnp.concatenate([wqkv_t, wo_t], axis=1))  # (32, 128)

        w1_t = p["w1"].T                                            # (D, D_FF) = (32, 64)
        w2_t = jnp.pad(p["w2"].T, ((0, 0), (0, D_FF - D_MODEL)))    # (64, 64), lanes 32:64 zero
        ffn_slabs.append(jnp.concatenate([w1_t, w2_t], axis=0))     # (96, 64)

        bqkv = p["bqkv"].reshape(-1).at[:D_MODEL].multiply(scale)   # scale folded into bq
        vec = jnp.zeros((8, 128), jnp.float32)
        vec = vec.at[_R_BQKV, :3 * D_MODEL].set(bqkv)
        vec = vec.at[_R_BO, :D_MODEL].set(p["bo"].reshape(-1))
        vec = vec.at[_R_B1, :D_FF].set(p["b1"].reshape(-1))
        vec = vec.at[_R_B2, :D_MODEL].set(p["b2"].reshape(-1))
        vec = vec.at[_R_G1, :D_MODEL].set(p["g1"].reshape(-1))
        vec = vec.at[_R_BE1, :D_MODEL].set(p["be1"].reshape(-1))
        vec = vec.at[_R_G2, :D_MODEL].set(p["g2"].reshape(-1))
        vec = vec.at[_R_BE2, :D_MODEL].set(p["be2"].reshape(-1))
        vec_slabs.append(vec)

    return (jnp.stack(attn_slabs), jnp.stack(ffn_slabs), jnp.stack(vec_slabs))


def _has_two_tensorcores():
    """v7x chips have 2 TensorCores per chip; v5e/v6e targeted here have 1."""
    try:
        kind = jax.devices()[0].device_kind.lower()
    except Exception:
        return False
    return ("v7" in kind) or ("tpu7" in kind)


# ----------------------- wrapper: one fused pallas_call ----------------------
def transformer_encoder(src_sbd, mask, layer_params):
    """src follows PyTorch layout (seq, batch, d_model); mask is an (S, S) additive mask."""
    S, B, D = src_sbd.shape
    x2d = jnp.transpose(src_sbd, (1, 0, 2)).reshape(B * S, D)   # batch-major rows
    attn_slab, ffn_slab, vec_slab = _prep_kernel_params(layer_params)
    mask = mask.astype(jnp.float32)

    # v7x: one grid step per batch, split across the 2 TensorCores.
    # v5e/v6e: single grid step with the whole batch fused (extra steps = pure overhead).
    batch_parallel = _has_two_tensorcores() and B > 1 and S % 8 == 0
    if batch_parallel:
        grid, n_blk, sems = (B,), S, ("parallel",)
        kmask = mask                                    # per-batch mask, tiny DMA
    else:
        grid, n_blk, sems = (1,), B * S, ("arbitrary",)
        # Block-diagonal (cross-batch) + per-batch additive mask, built once on host.
        # (At B*S=16 this is ~1 KiB; for large B*S move to in-kernel iota generation.)
        idx = jnp.arange(B * S)
        same = (idx[:, None] // S) == (idx[None, :] // S)
        kmask = jnp.where(same, jnp.tile(mask, (B, B)), jnp.float32(-1e9))

    def const_spec(a):   # full-extent block, constant index -> never re-DMA'd
        nd = a.ndim
        return pl.BlockSpec(a.shape, lambda i, _nd=nd: (0,) * _nd)

    out = pl.pallas_call(
        fused_encoder_kernel,
        grid=grid,
        in_specs=[pl.BlockSpec((n_blk, D), lambda i: (i, 0)),
                  const_spec(kmask), const_spec(attn_slab),
                  const_spec(ffn_slab), const_spec(vec_slab)],
        out_specs=pl.BlockSpec((n_blk, D), lambda i: (i, 0)),
        out_shape=jax.ShapeDtypeStruct((B * S, D), jnp.float32),
        compiler_params=pltpu.CompilerParams(dimension_semantics=sems),
    )(x2d, kmask, attn_slab, ffn_slab, vec_slab)

    # TransformerEncoder constructed with norm=None -> no final norm.
    return jnp.transpose(out.reshape(B, S, D), (1, 0, 2))


# ----------------------- deterministic parameter init (PyTorch layout) ------
def init_layer_params(key):
    ks = jax.random.split(key, 6)

    def uni(k, shape, fan_in):
        bound = 1.0 / math.sqrt(fan_in)
        return jax.random.uniform(k, shape, jnp.float32, -bound, bound)

    return dict(
        wqkv=uni(ks[0], (3 * D_MODEL, D_MODEL), D_MODEL),
        bqkv=jnp.zeros((1, 3 * D_MODEL), jnp.float32),
        wo=uni(ks[1], (D_MODEL, D_MODEL), D_MODEL),
        bo=jnp.zeros((1, D_MODEL), jnp.float32),
        w1=uni(ks[2], (D_FF, D_MODEL), D_MODEL),
        b1=uni(ks[3], (1, D_FF), D_MODEL),
        w2=uni(ks[4], (D_MODEL, D_FF), D_FF),
        b2=uni(ks[5], (1, D_MODEL), D_FF),
        g1=jnp.ones((1, D_MODEL), jnp.float32),
        be1=jnp.zeros((1, D_MODEL), jnp.float32),
        g2=jnp.ones((1, D_MODEL), jnp.float32),
        be2=jnp.zeros((1, D_MODEL), jnp.float32),
    )


# ----------------------- pure-JAX reference (for correctness) ---------------
def _layer_norm_ref(x, g, b):
    mu = jnp.mean(x, axis=-1, keepdims=True)
    xc = x - mu
    var = jnp.mean(xc * xc, axis=-1, keepdims=True)
    return xc * jax.lax.rsqrt(var + EPS) * g + b


def ref_encoder_layer(x_bsd, mask, p):
    def one(x):
        qkv = x @ p["wqkv"].T + p["bqkv"]
        q, k, v = qkv[:, :D_MODEL], qkv[:, D_MODEL:2 * D_MODEL], qkv[:, 2 * D_MODEL:]
        scale = 1.0 / math.sqrt(HEAD_DIM)
        outs = []
        for h in range(NUM_HEADS):
            lo, hi = h * HEAD_DIM, (h + 1) * HEAD_DIM
            s = (q[:, lo:hi] * scale) @ k[:, lo:hi].T + mask
            p_attn = jax.nn.softmax(s, axis=-1)
            outs.append(p_attn @ v[:, lo:hi])
        attn = jnp.concatenate(outs, axis=-1) @ p["wo"].T + p["bo"]
        y = _layer_norm_ref(x + attn, p["g1"], p["be1"])
        h1 = jnp.maximum(y @ p["w1"].T + p["b1"], 0.0)
        h2 = h1 @ p["w2"].T + p["b2"]
        return _layer_norm_ref(y + h2, p["g2"], p["be2"])

    return jax.vmap(one)(x_bsd)


def ref_transformer_encoder(src_sbd, mask, layer_params):
    x = jnp.transpose(src_sbd, (1, 0, 2))
    for p in layer_params:
        x = ref_encoder_layer(x, mask, p)
    return jnp.transpose(x, (1, 0, 2))


# ----------------------- main ------------------------------------------------
if __name__ == "__main__":
    key = jax.random.PRNGKey(0)
    k_src, k_layers = jax.random.split(key)

    src = jax.random.normal(k_src, (SEQ, BATCH, D_MODEL), jnp.float32)

    # additive float src_mask (causal), same semantics as PyTorch attn_mask add
    row = jnp.arange(SEQ)[:, None]
    col = jnp.arange(SEQ)[None, :]
    mask = jnp.where(col > row, -1e9, 0.0).astype(jnp.float32)

    layer_keys = jax.random.split(k_layers, NUM_LAYERS)
    layer_params = [init_layer_params(k) for k in layer_keys]

    out = transformer_encoder(src, mask, layer_params)
    out = jax.block_until_ready(out)

    ref = ref_transformer_encoder(src, mask, layer_params)
    assert out.shape == (SEQ, BATCH, D_MODEL)
    assert jnp.allclose(out, ref, rtol=1e-4, atol=1e-4), "mismatch vs reference"

    print("KERNEL_OK")
</pallas_src>

<mosaic_0001>
module attributes {stable_mosaic.version = 11 : i64} {
  func.func @fused_encoder_kernel(%arg0: i32, %arg1: memref<16x32xf32, #tpu.memory_space<vmem>>, %arg2: memref<16x16xf32, #tpu.memory_space<vmem>>, %arg3: memref<2x32x128xf32, #tpu.memory_space<vmem>>, %arg4: memref<2x96x64xf32, #tpu.memory_space<vmem>>, %arg5: memref<2x8x128xf32, #tpu.memory_space<vmem>>, %arg6: memref<16x32xf32, #tpu.memory_space<vmem>>) attributes {dimension_semantics = [#tpu.dimension_semantics<arbitrary>], iteration_bounds = array<i64: 1>, scalar_prefetch = 0 : i64, scratch_operands = 0 : i64, tpu.core_type = #tpu.core_type<tc>, window_params = [{transform_indices = @transform_0, window_bounds = array<i64: 16, 32>}, {pipeline_mode = #tpu.pipeline_mode<synchronous>, transform_indices = @transform_1, window_bounds = array<i64: 16, 16>}, {pipeline_mode = #tpu.pipeline_mode<synchronous>, transform_indices = @transform_2, window_bounds = array<i64: 2, 32, 128>}, {pipeline_mode = #tpu.pipeline_mode<synchronous>, transform_indices = @transform_3, window_bounds = array<i64: 2, 96, 64>}, {pipeline_mode = #tpu.pipeline_mode<synchronous>, transform_indices = @transform_4, window_bounds = array<i64: 2, 8, 128>}, {transform_indices = @transform_5, window_bounds = array<i64: 16, 32>}]} {
    %c0 = arith.constant 0 : index
    %c0_0 = arith.constant 0 : index
    %0 = vector.load %arg1[%c0, %c0_0] : memref<16x32xf32, #tpu.memory_space<vmem>>, vector<16x32xf32>
    %c0_1 = arith.constant 0 : index
    %c0_2 = arith.constant 0 : index
    %1 = vector.load %arg2[%c0_1, %c0_2] : memref<16x16xf32, #tpu.memory_space<vmem>>, vector<16x16xf32>
    %c0_3 = arith.constant 0 : index
    %c0_4 = arith.constant 0 : index
    %c0_5 = arith.constant 0 : index
    %2 = vector.load %arg3[%c0_3, %c0_4, %c0_5] : memref<2x32x128xf32, #tpu.memory_space<vmem>>, vector<1x32x128xf32>
    %3 = vector.shape_cast %2 : vector<1x32x128xf32> to vector<32x128xf32>
    %c0_6 = arith.constant 0 : index
    %c0_7 = arith.constant 0 : index
    %c0_8 = arith.constant 0 : index
    %4 = vector.load %arg4[%c0_6, %c0_7, %c0_8] : memref<2x96x64xf32, #tpu.memory_space<vmem>>, vector<1x96x64xf32>
    %5 = vector.shape_cast %4 : vector<1x96x64xf32> to vector<96x64xf32>
    %c0_9 = arith.constant 0 : index
    %c0_10 = arith.constant 0 : index
    %c0_11 = arith.constant 0 : index
    %6 = vector.load %arg5[%c0_9, %c0_10, %c0_11] : memref<2x8x128xf32, #tpu.memory_space<vmem>>, vector<1x8x128xf32>
    %7 = vector.shape_cast %6 : vector<1x8x128xf32> to vector<8x128xf32>
    %cst = arith.constant dense<0.000000e+00> : vector<16x128xf32>
    %8 = tpu.matmul %0, %3, %cst {dimension_numbers = #tpu.dot_dimension_numbers<[1], [0], [0], [1], [0, 0, 1, 1], [], []>} : vector<16x32xf32>, vector<32x128xf32>, vector<16x128xf32> -> vector<16x128xf32>
    %9 = vector.extract_strided_slice %7 {offsets = [0, 0], sizes = [1, 128], strides = [1, 1]} : vector<8x128xf32> to vector<1x128xf32>
    %10 = vector.broadcast %9 : vector<1x128xf32> to vector<16x128xf32>
    %11 = arith.addf %8, %10 : vector<16x128xf32>
    %cst_12 = arith.constant 0.000000e+00 : f32
    %12 = vector.broadcast %cst_12 : f32 to vector<16x32xf32>
    %13 = vector.extract_strided_slice %11 {offsets = [0, 0], sizes = [16, 8], strides = [1, 1]} : vector<16x128xf32> to vector<16x8xf32>
    %14 = vector.extract_strided_slice %11 {offsets = [0, 32], sizes = [16, 8], strides = [1, 1]} : vector<16x128xf32> to vector<16x8xf32>
    %15 = vector.extract_strided_slice %11 {offsets = [0, 64], sizes = [16, 8], strides = [1, 1]} : vector<16x128xf32> to vector<16x8xf32>
    "tpu.trace_start"() <{level = 10 : i32, message = "nk,mk->nm"}> : () -> ()
    %cst_13 = arith.constant dense<0.000000e+00> : vector<16x16xf32>
    %16 = tpu.matmul %13, %14, %cst_13 {dimension_numbers = #tpu.dot_dimension_numbers<[1], [1], [0], [0], [0, 0, 1, 0], [], []>} : vector<16x8xf32>, vector<16x8xf32>, vector<16x16xf32> -> vector<16x16xf32>
    "tpu.trace_stop"() : () -> ()
    %17 = arith.addf %16, %1 : vector<16x16xf32>
    %cst_14 = arith.constant dense<0xFF800000> : vector<16xf32>
    %18 = vector.multi_reduction <maximumf>, %17, %cst_14 [1] : vector<16x16xf32> to vector<16xf32>
    %19 = vector.shape_cast %18 : vector<16xf32> to vector<16x1xf32>
    %20 = vector.broadcast %19 : vector<16x1xf32> to vector<16x16xf32>
    %21 = arith.subf %17, %20 : vector<16x16xf32>
    %22 = math.exp %21 : vector<16x16xf32>
    %cst_15 = arith.constant dense<0.000000e+00> : vector<16xf32>
    %23 = vector.multi_reduction <add>, %22, %cst_15 [1] : vector<16x16xf32> to vector<16xf32>
    %24 = vector.shape_cast %23 : vector<16xf32> to vector<16x1xf32>
    %25 = tpu.reciprocal %24 : vector<16x1xf32> -> vector<16x1xf32>
    %26 = vector.broadcast %25 : vector<16x1xf32> to vector<16x16xf32>
    %27 = arith.mulf %22, %26 : vector<16x16xf32>
    %cst_16 = arith.constant dense<0.000000e+00> : vector<16x8xf32>
    %28 = tpu.matmul %27, %15, %cst_16 {dimension_numbers = #tpu.dot_dimension_numbers<[1], [0], [0], [1], [0, 0, 1, 1], [], []>} : vector<16x16xf32>, vector<16x8xf32>, vector<16x8xf32> -> vector<16x8xf32>
    %29 = vector.extract_strided_slice %3 {offsets = [0, 96], sizes = [8, 32], strides = [1, 1]} : vector<32x128xf32> to vector<8x32xf32>
    %cst_17 = arith.constant dense<0.000000e+00> : vector<16x32xf32>
    %30 = tpu.matmul %28, %29, %cst_17 {dimension_numbers = #tpu.dot_dimension_numbers<[1], [0], [0], [1], [0, 0, 1, 1], [], []>} : vector<16x8xf32>, vector<8x32xf32>, vector<16x32xf32> -> vector<16x32xf32>
    %31 = arith.addf %12, %30 : vector<16x32xf32>
    %32 = vector.extract_strided_slice %11 {offsets = [0, 8], sizes = [16, 8], strides = [1, 1]} : vector<16x128xf32> to vector<16x8xf32>
    %33 = vector.extract_strided_slice %11 {offsets = [0, 40], sizes = [16, 8], strides = [1, 1]} : vector<16x128xf32> to vector<16x8xf32>
    %34 = vector.extract_strided_slice %11 {offsets = [0, 72], sizes = [16, 8], strides = [1, 1]} : vector<16x128xf32> to vector<16x8xf32>
    "tpu.trace_start"() <{level = 10 : i32, message = "nk,mk->nm"}> : () -> ()
    %cst_18 = arith.constant dense<0.000000e+00> : vector<16x16xf32>
    %35 = tpu.matmul %32, %33, %cst_18 {dimension_numbers = #tpu.dot_dimension_numbers<[1], [1], [0], [0], [0, 0, 1, 0], [], []>} : vector<16x8xf32>, vector<16x8xf32>, vector<16x16xf32> -> vector<16x16xf32>
    "tpu.trace_stop"() : () -> ()
    %36 = arith.addf %35, %1 : vector<16x16xf32>
    %cst_19 = arith.constant dense<0xFF800000> : vector<16xf32>
    %37 = vector.multi_reduction <maximumf>, %36, %cst_19 [1] : vector<16x16xf32> to vector<16xf32>
    %38 = vector.shape_cast %37 : vector<16xf32> to vector<16x1xf32>
    %39 = vector.broadcast %38 : vector<16x1xf32> to vector<16x16xf32>
    %40 = arith.subf %36, %39 : vector<16x16xf32>
    %41 = math.exp %40 : vector<16x16xf32>
    %cst_20 = arith.constant dense<0.000000e+00> : vector<16xf32>
    %42 = vector.multi_reduction <add>, %41, %cst_20 [1] : vector<16x16xf32> to vector<16xf32>
    %43 = vector.shape_cast %42 : vector<16xf32> to vector<16x1xf32>
    %44 = tpu.reciprocal %43 : vector<16x1xf32> -> vector<16x1xf32>
    %45 = vector.broadcast %44 : vector<16x1xf32> to vector<16x16xf32>
    %46 = arith.mulf %41, %45 : vector<16x16xf32>
    %cst_21 = arith.constant dense<0.000000e+00> : vector<16x8xf32>
    %47 = tpu.matmul %46, %34, %cst_21 {dimension_numbers = #tpu.dot_dimension_numbers<[1], [0], [0], [1], [0, 0, 1, 1], [], []>} : vector<16x16xf32>, vector<16x8xf32>, vector<16x8xf32> -> vector<16x8xf32>
    %48 = vector.extract_strided_slice %3 {offsets = [8, 96], sizes = [8, 32], strides = [1, 1]} : vector<32x128xf32> to vector<8x32xf32>
    %cst_22 = arith.constant dense<0.000000e+00> : vector<16x32xf32>
    %49 = tpu.matmul %47, %48, %cst_22 {dimension_numbers = #tpu.dot_dimension_numbers<[1], [0], [0], [1], [0, 0, 1, 1], [], []>} : vector<16x8xf32>, vector<8x32xf32>, vector<16x32xf32> -> vector<16x32xf32>
    %50 = arith.addf %31, %49 : vector<16x32xf32>
    %51 = vector.extract_strided_slice %11 {offsets = [0, 16], sizes = [16, 8], strides = [1, 1]} : vector<16x128xf32> to vector<16x8xf32>
    %52 = vector.extract_strided_slice %11 {offsets = [0, 48], sizes = [16, 8], strides = [1, 1]} : vector<16x128xf32> to vector<16x8xf32>
    %53 = vector.extract_strided_slice %11 {offsets = [0, 80], sizes = [16, 8], strides = [1, 1]} : vector<16x128xf32> to vector<16x8xf32>
    "tpu.trace_start"() <{level = 10 : i32, message = "nk,mk->nm"}> : () -> ()
    %cst_23 = arith.constant dense<0.000000e+00> : vector<16x16xf32>
    %54 = tpu.matmul %51, %52, %cst_23 {dimension_numbers = #tpu.dot_dimension_numbers<[1], [1], [0], [0], [0, 0, 1, 0], [], []>} : vector<16x8xf32>, vector<16x8xf32>, vector<16x16xf32> -> vector<16x16xf32>
    "tpu.trace_stop"() : () -> ()
    %55 = arith.addf %54, %1 : vector<16x16xf32>
    %cst_24 = arith.constant dense<0xFF800000> : vector<16xf32>
    %56 = vector.multi_reduction <maximumf>, %55, %cst_24 [1] : vector<16x16xf32> to vector<16xf32>
    %57 = vector.shape_cast %56 : vector<16xf32> to vector<16x1xf32>
    %58 = vector.broadcast %57 : vector<16x1xf32> to vector<16x16xf32>
    %59 = arith.subf %55, %58 : vector<16x16xf32>
    %60 = math.exp %59 : vector<16x16xf32>
    %cst_25 = arith.constant dense<0.000000e+00> : vector<16xf32>
    %61 = vector.multi_reduction <add>, %60, %cst_25 [1] : vector<16x16xf32> to vector<16xf32>
    %62 = vector.shape_cast %61 : vector<16xf32> to vector<16x1xf32>
    %63 = tpu.reciprocal %62 : vector<16x1xf32> -> vector<16x1xf32>
    %64 = vector.broadcast %63 : vector<16x1xf32> to vector<16x16xf32>
    %65 = arith.mulf %60, %64 : vector<16x16xf32>
    %cst_26 = arith.constant dense<0.000000e+00> : vector<16x8xf32>
    %66 = tpu.matmul %65, %53, %cst_26 {dimension_numbers = #tpu.dot_dimension_numbers<[1], [0], [0], [1], [0, 0, 1, 1], [], []>} : vector<16x16xf32>, vector<16x8xf32>, vector<16x8xf32> -> vector<16x8xf32>
    %67 = vector.extract_strided_slice %3 {offsets = [16, 96], sizes = [8, 32], strides = [1, 1]} : vector<32x128xf32> to vector<8x32xf32>
    %cst_27 = arith.constant dense<0.000000e+00> : vector<16x32xf32>
    %68 = tpu.matmul %66, %67, %cst_27 {dimension_numbers = #tpu.dot_dimension_numbers<[1], [0], [0], [1], [0, 0, 1, 1], [], []>} : vector<16x8xf32>, vector<8x32xf32>, vector<16x32xf32> -> vector<16x32xf32>
    %69 = arith.addf %50, %68 : vector<16x32xf32>
    %70 = vector.extract_strided_slice %11 {offsets = [0, 24], sizes = [16, 8], strides = [1, 1]} : vector<16x128xf32> to vector<16x8xf32>
    %71 = vector.extract_strided_slice %11 {offsets = [0, 56], sizes = [16, 8], strides = [1, 1]} : vector<16x128xf32> to vector<16x8xf32>
    %72 = vector.extract_strided_slice %11 {offsets = [0, 88], sizes = [16, 8], strides = [1, 1]} : vector<16x128xf32> to vector<16x8xf32>
    "tpu.trace_start"() <{level = 10 : i32, message = "nk,mk->nm"}> : () -> ()
    %cst_28 = arith.constant dense<0.000000e+00> : vector<16x16xf32>
    %73 = tpu.matmul %70, %71, %cst_28 {dimension_numbers = #tpu.dot_dimension_numbers<[1], [1], [0], [0], [0, 0, 1, 0], [], []>} : vector<16x8xf32>, vector<16x8xf32>, vector<16x16xf32> -> vector<16x16xf32>
    "tpu.trace_stop"() : () -> ()
    %74 = arith.addf %73, %1 : vector<16x16xf32>
    %cst_29 = arith.constant dense<0xFF800000> : vector<16xf32>
    %75 = vector.multi_reduction <maximumf>, %74, %cst_29 [1] : vector<16x16xf32> to vector<16xf32>
    %76 = vector.shape_cast %75 : vector<16xf32> to vector<16x1xf32>
    %77 = vector.broadcast %76 : vector<16x1xf32> to vector<16x16xf32>
    %78 = arith.subf %74, %77 : vector<16x16xf32>
    %79 = math.exp %78 : vector<16x16xf32>
    %cst_30 = arith.constant dense<0.000000e+00> : vector<16xf32>
    %80 = vector.multi_reduction <add>, %79, %cst_30 [1] : vector<16x16xf32> to vector<16xf32>
    %81 = vector.shape_cast %80 : vector<16xf32> to vector<16x1xf32>
    %82 = tpu.reciprocal %81 : vector<16x1xf32> -> vector<16x1xf32>
    %83 = vector.broadcast %82 : vector<16x1xf32> to vector<16x16xf32>
    %84 = arith.mulf %79, %83 : vector<16x16xf32>
    %cst_31 = arith.constant dense<0.000000e+00> : vector<16x8xf32>
    %85 = tpu.matmul %84, %72, %cst_31 {dimension_numbers = #tpu.dot_dimension_numbers<[1], [0], [0], [1], [0, 0, 1, 1], [], []>} : vector<16x16xf32>, vector<16x8xf32>, vector<16x8xf32> -> vector<16x8xf32>
    %86 = vector.extract_strided_slice %3 {offsets = [24, 96], sizes = [8, 32], strides = [1, 1]} : vector<32x128xf32> to vector<8x32xf32>
    %cst_32 = arith.constant dense<0.000000e+00> : vector<16x32xf32>
    %87 = tpu.matmul %85, %86, %cst_32 {dimension_numbers = #tpu.dot_dimension_numbers<[1], [0], [0], [1], [0, 0, 1, 1], [], []>} : vector<16x8xf32>, vector<8x32xf32>, vector<16x32xf32> -> vector<16x32xf32>
    %88 = arith.addf %69, %87 : vector<16x32xf32>
    %89 = vector.extract_strided_slice %7 {offsets = [1, 0], sizes = [1, 32], strides = [1, 1]} : vector<8x128xf32> to vector<1x32xf32>
    %90 = vector.broadcast %89 : vector<1x32xf32> to vector<16x32xf32>
    %91 = arith.addf %88, %90 : vector<16x32xf32>
    %92 = arith.addf %0, %91 : vector<16x32xf32>
    %93 = vector.extract_strided_slice %7 {offsets = [4, 0], sizes = [1, 32], strides = [1, 1]} : vector<8x128xf32> to vector<1x32xf32>
    %94 = vector.extract_strided_slice %7 {offsets = [5, 0], sizes = [1, 32], strides = [1, 1]} : vector<8x128xf32> to vector<1x32xf32>
    %cst_33 = arith.constant dense<0.000000e+00> : vector<16xf32>
    %95 = vector.multi_reduction <add>, %92, %cst_33 [1] : vector<16x32xf32> to vector<16xf32>
    %96 = vector.shape_cast %95 : vector<16xf32> to vector<16x1xf32>
    %cst_34 = arith.constant 3.200000e+01 : f32
    %97 = vector.broadcast %cst_34 : f32 to vector<16x1xf32>
    %98 = arith.divf %96, %97 : vector<16x1xf32>
    %99 = arith.mulf %92, %92 : vector<16x32xf32>
    %cst_35 = arith.constant dense<0.000000e+00> : vector<16xf32>
    %100 = vector.multi_reduction <add>, %99, %cst_35 [1] : vector<16x32xf32> to vector<16xf32>
    %101 = vector.shape_cast %100 : vector<16xf32> to vector<16x1xf32>
    %cst_36 = arith.constant 3.200000e+01 : f32
    %102 = vector.broadcast %cst_36 : f32 to vector<16x1xf32>
    %103 = arith.divf %101, %102 : vector<16x1xf32>
    %104 = arith.mulf %98, %98 : vector<16x1xf32>
    %105 = arith.subf %103, %104 : vector<16x1xf32>
    %cst_37 = arith.constant 0.000000e+00 : f32
    %106 = vector.broadcast %cst_37 : f32 to vector<16x1xf32>
    %107 = arith.maximumf %105, %106 : vector<16x1xf32>
    %108 = vector.broadcast %98 : vector<16x1xf32> to vector<16x32xf32>
    %109 = arith.subf %92, %108 : vector<16x32xf32>
    %cst_38 = arith.constant 9.99999974E-6 : f32
    %110 = vector.broadcast %cst_38 : f32 to vector<16x1xf32>
    %111 = arith.addf %107, %110 : vector<16x1xf32>
    %112 = math.rsqrt %111 : vector<16x1xf32>
    %113 = vector.broadcast %112 : vector<16x1xf32> to vector<16x32xf32>
    %114 = arith.mulf %109, %113 : vector<16x32xf32>
    %115 = vector.broadcast %93 : vector<1x32xf32> to vector<16x32xf32>
    %116 = arith.mulf %114, %115 : vector<16x32xf32>
    %117 = vector.broadcast %94 : vector<1x32xf32> to vector<16x32xf32>
    %118 = arith.addf %116, %117 : vector<16x32xf32>
    %119 = vector.extract_strided_slice %5 {offsets = [0, 0], sizes = [32, 64], strides = [1, 1]} : vector<96x64xf32> to vector<32x64xf32>
    %cst_39 = arith.constant dense<0.000000e+00> : vector<16x64xf32>
    %120 = tpu.matmul %118, %119, %cst_39 {dimension_numbers = #tpu.dot_dimension_numbers<[1], [0], [0], [1], [0, 0, 1, 1], [], []>} : vector<16x32xf32>, vector<32x64xf32>, vector<16x64xf32> -> vector<16x64xf32>
    %121 = vector.extract_strided_slice %7 {offsets = [2, 0], sizes = [1, 64], strides = [1, 1]} : vector<8x128xf32> to vector<1x64xf32>
    %122 = vector.broadcast %121 : vector<1x64xf32> to vector<16x64xf32>
    %123 = arith.addf %120, %122 : vector<16x64xf32>
    %cst_40 = arith.constant 0.000000e+00 : f32
    %124 = vector.broadcast %cst_40 : f32 to vector<16x64xf32>
    %125 = arith.maximumf %123, %124 : vector<16x64xf32>
    %126 = vector.extract_strided_slice %5 {offsets = [32, 0], sizes = [64, 64], strides = [1, 1]} : vector<96x64xf32> to vector<64x64xf32>
    %cst_41 = arith.constant dense<0.000000e+00> : vector<16x64xf32>
    %127 = tpu.matmul %125, %126, %cst_41 {dimension_numbers = #tpu.dot_dimension_numbers<[1], [0], [0], [1], [0, 0, 1, 1], [], []>} : vector<16x64xf32>, vector<64x64xf32>, vector<16x64xf32> -> vector<16x64xf32>
    %128 = vector.extract_strided_slice %127 {offsets = [0, 0], sizes = [16, 32], strides = [1, 1]} : vector<16x64xf32> to vector<16x32xf32>
    %129 = vector.extract_strided_slice %7 {offsets = [3, 0], sizes = [1, 32], strides = [1, 1]} : vector<8x128xf32> to vector<1x32xf32>
    %130 = vector.broadcast %129 : vector<1x32xf32> to vector<16x32xf32>
    %131 = arith.addf %128, %130 : vector<16x32xf32>
    %132 = arith.addf %118, %131 : vector<16x32xf32>
    %133 = vector.extract_strided_slice %7 {offsets = [6, 0], sizes = [1, 32], strides = [1, 1]} : vector<8x128xf32> to vector<1x32xf32>
    %134 = vector.extract_strided_slice %7 {offsets = [7, 0], sizes = [1, 32], strides = [1, 1]} : vector<8x128xf32> to vector<1x32xf32>
    %cst_42 = arith.constant dense<0.000000e+00> : vector<16xf32>
    %135 = vector.multi_reduction <add>, %132, %cst_42 [1] : vector<16x32xf32> to vector<16xf32>
    %136 = vector.shape_cast %135 : vector<16xf32> to vector<16x1xf32>
    %cst_43 = arith.constant 3.200000e+01 : f32
    %137 = vector.broadcast %cst_43 : f32 to vector<16x1xf32>
    %138 = arith.divf %136, %137 : vector<16x1xf32>
    %139 = arith.mulf %132, %132 : vector<16x32xf32>
    %cst_44 = arith.constant dense<0.000000e+00> : vector<16xf32>
    %140 = vector.multi_reduction <add>, %139, %cst_44 [1] : vector<16x32xf32> to vector<16xf32>
    %141 = vector.shape_cast %140 : vector<16xf32> to vector<16x1xf32>
    %cst_45 = arith.constant 3.200000e+01 : f32
    %142 = vector.broadcast %cst_45 : f32 to vector<16x1xf32>
    %143 = arith.divf %141, %142 : vector<16x1xf32>
    %144 = arith.mulf %138, %138 : vector<16x1xf32>
    %145 = arith.subf %143, %144 : vector<16x1xf32>
    %cst_46 = arith.constant 0.000000e+00 : f32
    %146 = vector.broadcast %cst_46 : f32 to vector<16x1xf32>
    %147 = arith.maximumf %145, %146 : vector<16x1xf32>
    %148 = vector.broadcast %138 : vector<16x1xf32> to vector<16x32xf32>
    %149 = arith.subf %132, %148 : vector<16x32xf32>
    %cst_47 = arith.constant 9.99999974E-6 : f32
    %150 = vector.broadcast %cst_47 : f32 to vector<16x1xf32>
    %151 = arith.addf %147, %150 : vector<16x1xf32>
    %152 = math.rsqrt %151 : vector<16x1xf32>
    %153 = vector.broadcast %152 : vector<16x1xf32> to vector<16x32xf32>
    %154 = arith.mulf %149, %153 : vector<16x32xf32>
    %155 = vector.broadcast %133 : vector<1x32xf32> to vector<16x32xf32>
    %156 = arith.mulf %154, %155 : vector<16x32xf32>
    %157 = vector.broadcast %134 : vector<1x32xf32> to vector<16x32xf32>
    %158 = arith.addf %156, %157 : vector<16x32xf32>
    %c1 = arith.constant 1 : index
    %c0_48 = arith.constant 0 : index
    %c0_49 = arith.constant 0 : index
    %159 = vector.load %arg3[%c1, %c0_48, %c0_49] : memref<2x32x128xf32, #tpu.memory_space<vmem>>, vector<1x32x128xf32>
    %160 = vector.shape_cast %159 : vector<1x32x128xf32> to vector<32x128xf32>
    %c1_50 = arith.constant 1 : index
    %c0_51 = arith.constant 0 : index
    %c0_52 = arith.constant 0 : index
    %161 = vector.load %arg4[%c1_50, %c0_51, %c0_52] : memref<2x96x64xf32, #tpu.memory_space<vmem>>, vector<1x96x64xf32>
    %162 = vector.shape_cast %161 : vector<1x96x64xf32> to vector<96x64xf32>
    %c1_53 = arith.constant 1 : index
    %c0_54 = arith.constant 0 : index
    %c0_55 = arith.constant 0 : index
    %163 = vector.load %arg5[%c1_53, %c0_54, %c0_55] : memref<2x8x128xf32, #tpu.memory_space<vmem>>, vector<1x8x128xf32>
    %164 = vector.shape_cast %163 : vector<1x8x128xf32> to vector<8x128xf32>
    %cst_56 = arith.constant dense<0.000000e+00> : vector<16x128xf32>
    %165 = tpu.matmul %158, %160, %cst_56 {dimension_numbers = #tpu.dot_dimension_numbers<[1], [0], [0], [1], [0, 0, 1, 1], [], []>} : vector<16x32xf32>, vector<32x128xf32>, vector<16x128xf32> -> vector<16x128xf32>
    %166 = vector.extract_strided_slice %164 {offsets = [0, 0], sizes = [1, 128], strides = [1, 1]} : vector<8x128xf32> to vector<1x128xf32>
    %167 = vector.broadcast %166 : vector<1x128xf32> to vector<16x128xf32>
    %168 = arith.addf %165, %167 : vector<16x128xf32>
    %cst_57 = arith.constant 0.000000e+00 : f32
    %169 = vector.broadcast %cst_57 : f32 to vector<16x32xf32>
    %170 = vector.extract_strided_slice %168 {offsets = [0, 0], sizes = [16, 8], strides = [1, 1]} : vector<16x128xf32> to vector<16x8xf32>
    %171 = vector.extract_strided_slice %168 {offsets = [0, 32], sizes = [16, 8], strides = [1, 1]} : vector<16x128xf32> to vector<16x8xf32>
    %172 = vector.extract_strided_slice %168 {offsets = [0, 64], sizes = [16, 8], strides = [1, 1]} : vector<16x128xf32> to vector<16x8xf32>
    "tpu.trace_start"() <{level = 10 : i32, message = "nk,mk->nm"}> : () -> ()
    %cst_58 = arith.constant dense<0.000000e+00> : vector<16x16xf32>
    %173 = tpu.matmul %170, %171, %cst_58 {dimension_numbers = #tpu.dot_dimension_numbers<[1], [1], [0], [0], [0, 0, 1, 0], [], []>} : vector<16x8xf32>, vector<16x8xf32>, vector<16x16xf32> -> vector<16x16xf32>
    "tpu.trace_stop"() : () -> ()
    %174 = arith.addf %173, %1 : vector<16x16xf32>
    %cst_59 = arith.constant dense<0xFF800000> : vector<16xf32>
    %175 = vector.multi_reduction <maximumf>, %174, %cst_59 [1] : vector<16x16xf32> to vector<16xf32>
    %176 = vector.shape_cast %175 : vector<16xf32> to vector<16x1xf32>
    %177 = vector.broadcast %176 : vector<16x1xf32> to vector<16x16xf32>
    %178 = arith.subf %174, %177 : vector<16x16xf32>
    %179 = math.exp %178 : vector<16x16xf32>
    %cst_60 = arith.constant dense<0.000000e+00> : vector<16xf32>
    %180 = vector.multi_reduction <add>, %179, %cst_60 [1] : vector<16x16xf32> to vector<16xf32>
    %181 = vector.shape_cast %180 : vector<16xf32> to vector<16x1xf32>
    %182 = tpu.reciprocal %181 : vector<16x1xf32> -> vector<16x1xf32>
    %183 = vector.broadcast %182 : vector<16x1xf32> to vector<16x16xf32>
    %184 = arith.mulf %179, %183 : vector<16x16xf32>
    %cst_61 = arith.constant dense<0.000000e+00> : vector<16x8xf32>
    %185 = tpu.matmul %184, %172, %cst_61 {dimension_numbers = #tpu.dot_dimension_numbers<[1], [0], [0], [1], [0, 0, 1, 1], [], []>} : vector<16x16xf32>, vector<16x8xf32>, vector<16x8xf32> -> vector<16x8xf32>
    %186 = vector.extract_strided_slice %160 {offsets = [0, 96], sizes = [8, 32], strides = [1, 1]} : vector<32x128xf32> to vector<8x32xf32>
    %cst_62 = arith.constant dense<0.000000e+00> : vector<16x32xf32>
    %187 = tpu.matmul %185, %186, %cst_62 {dimension_numbers = #tpu.dot_dimension_numbers<[1], [0], [0], [1], [0, 0, 1, 1], [], []>} : vector<16x8xf32>, vector<8x32xf32>, vector<16x32xf32> -> vector<16x32xf32>
    %188 = arith.addf %169, %187 : vector<16x32xf32>
    %189 = vector.extract_strided_slice %168 {offsets = [0, 8], sizes = [16, 8], strides = [1, 1]} : vector<16x128xf32> to vector<16x8xf32>
    %190 = vector.extract_strided_slice %168 {offsets = [0, 40], sizes = [16, 8], strides = [1, 1]} : vector<16x128xf32> to vector<16x8xf32>
    %191 = vector.extract_strided_slice %168 {offsets = [0, 72], sizes = [16, 8], strides = [1, 1]} : vector<16x128xf32> to vector<16x8xf32>
    "tpu.trace_start"() <{level = 10 : i32, message = "nk,mk->nm"}> : () -> ()
    %cst_63 = arith.constant dense<0.000000e+00> : vector<16x16xf32>
    %192 = tpu.matmul %189, %190, %cst_63 {dimension_numbers = #tpu.dot_dimension_numbers<[1], [1], [0], [0], [0, 0, 1, 0], [], []>} : vector<16x8xf32>, vector<16x8xf32>, vector<16x16xf32> -> vector<16x16xf32>
    "tpu.trace_stop"() : () -> ()
    %193 = arith.addf %192, %1 : vector<16x16xf32>
    %cst_64 = arith.constant dense<0xFF800000> : vector<16xf32>
    %194 = vector.multi_reduction <maximumf>, %193, %cst_64 [1] : vector<16x16xf32> to vector<16xf32>
    %195 = vector.shape_cast %194 : vector<16xf32> to vector<16x1xf32>
    %196 = vector.broadcast %195 : vector<16x1xf32> to vector<16x16xf32>
    %197 = arith.subf %193, %196 : vector<16x16xf32>
    %198 = math.exp %197 : vector<16x16xf32>
    %cst_65 = arith.constant dense<0.000000e+00> : vector<16xf32>
    %199 = vector.multi_reduction <add>, %198, %cst_65 [1] : vector<16x16xf32> to vector<16xf32>
    %200 = vector.shape_cast %199 : vector<16xf32> to vector<16x1xf32>
    %201 = tpu.reciprocal %200 : vector<16x1xf32> -> vector<16x1xf32>
    %202 = vector.broadcast %201 : vector<16x1xf32> to vector<16x16xf32>
    %203 = arith.mulf %198, %202 : vector<16x16xf32>
    %cst_66 = arith.constant dense<0.000000e+00> : vector<16x8xf32>
    %204 = tpu.matmul %203, %191, %cst_66 {dimension_numbers = #tpu.dot_dimension_numbers<[1], [0], [0], [1], [0, 0, 1, 1], [], []>} : vector<16x16xf32>, vector<16x8xf32>, vector<16x8xf32> -> vector<16x8xf32>
    %205 = vector.extract_strided_slice %160 {offsets = [8, 96], sizes = [8, 32], strides = [1, 1]} : vector<32x128xf32> to vector<8x32xf32>
    %cst_67 = arith.constant dense<0.000000e+00> : vector<16x32xf32>
    %206 = tpu.matmul %204, %205, %cst_67 {dimension_numbers = #tpu.dot_dimension_numbers<[1], [0], [0], [1], [0, 0, 1, 1], [], []>} : vector<16x8xf32>, vector<8x32xf32>, vector<16x32xf32> -> vector<16x32xf32>
    %207 = arith.addf %188, %206 : vector<16x32xf32>
    %208 = vector.extract_strided_slice %168 {offsets = [0, 16], sizes = [16, 8], strides = [1, 1]} : vector<16x128xf32> to vector<16x8xf32>
    %209 = vector.extract_strided_slice %168 {offsets = [0, 48], sizes = [16, 8], strides = [1, 1]} : vector<16x128xf32> to vector<16x8xf32>
    %210 = vector.extract_strided_slice %168 {offsets = [0, 80], sizes = [16, 8], strides = [1, 1]} : vector<16x128xf32> to vector<16x8xf32>
    "tpu.trace_start"() <{level = 10 : i32, message = "nk,mk->nm"}> : () -> ()
    %cst_68 = arith.constant dense<0.000000e+00> : vector<16x16xf32>
    %211 = tpu.matmul %208, %209, %cst_68 {dimension_numbers = #tpu.dot_dimension_numbers<[1], [1], [0], [0], [0, 0, 1, 0], [], []>} : vector<16x8xf32>, vector<16x8xf32>, vector<16x16xf32> -> vector<16x16xf32>
    "tpu.trace_stop"() : () -> ()
    %212 = arith.addf %211, %1 : vector<16x16xf32>
    %cst_69 = arith.constant dense<0xFF800000> : vector<16xf32>
    %213 = vector.multi_reduction <maximumf>, %212, %cst_69 [1] : vector<16x16xf32> to vector<16xf32>
    %214 = vector.shape_cast %213 : vector<16xf32> to vector<16x1xf32>
    %215 = vector.broadcast %214 : vector<16x1xf32> to vector<16x16xf32>
    %216 = arith.subf %212, %215 : vector<16x16xf32>
    %217 = math.exp %216 : vector<16x16xf32>
    %cst_70 = arith.constant dense<0.000000e+00> : vector<16xf32>
    %218 = vector.multi_reduction <add>, %217, %cst_70 [1] : vector<16x16xf32> to vector<16xf32>
    %219 = vector.shape_cast %218 : vector<16xf32> to vector<16x1xf32>
    %220 = tpu.reciprocal %219 : vector<16x1xf32> -> vector<16x1xf32>
    %221 = vector.broadcast %220 : vector<16x1xf32> to vector<16x16xf32>
    %222 = arith.mulf %217, %221 : vector<16x16xf32>
    %cst_71 = arith.constant dense<0.000000e+00> : vector<16x8xf32>
    %223 = tpu.matmul %222, %210, %cst_71 {dimension_numbers = #tpu.dot_dimension_numbers<[1], [0], [0], [1], [0, 0, 1, 1], [], []>} : vector<16x16xf32>, vector<16x8xf32>, vector<16x8xf32> -> vector<16x8xf32>
    %224 = vector.extract_strided_slice %160 {offsets = [16, 96], sizes = [8, 32], strides = [1, 1]} : vector<32x128xf32> to vector<8x32xf32>
    %cst_72 = arith.constant dense<0.000000e+00> : vector<16x32xf32>
    %225 = tpu.matmul %223, %224, %cst_72 {dimension_numbers = #tpu.dot_dimension_numbers<[1], [0], [0], [1], [0, 0, 1, 1], [], []>} : vector<16x8xf32>, vector<8x32xf32>, vector<16x32xf32> -> vector<16x32xf32>
    %226 = arith.addf %207, %225 : vector<16x32xf32>
    %227 = vector.extract_strided_slice %168 {offsets = [0, 24], sizes = [16, 8], strides = [1, 1]} : vector<16x128xf32> to vector<16x8xf32>
    %228 = vector.extract_strided_slice %168 {offsets = [0, 56], sizes = [16, 8], strides = [1, 1]} : vector<16x128xf32> to vector<16x8xf32>
    %229 = vector.extract_strided_slice %168 {offsets = [0, 88], sizes = [16, 8], strides = [1, 1]} : vector<16x128xf32> to vector<16x8xf32>
    "tpu.trace_start"() <{level = 10 : i32, message = "nk,mk->nm"}> : () -> ()
    %cst_73 = arith.constant dense<0.000000e+00> : vector<16x16xf32>
    %230 = tpu.matmul %227, %228, %cst_73 {dimension_numbers = #tpu.dot_dimension_numbers<[1], [1], [0], [0], [0, 0, 1, 0], [], []>} : vector<16x8xf32>, vector<16x8xf32>, vector<16x16xf32> -> vector<16x16xf32>
    "tpu.trace_stop"() : () -> ()
    %231 = arith.addf %230, %1 : vector<16x16xf32>
    %cst_74 = arith.constant dense<0xFF800000> : vector<16xf32>
    %232 = vector.multi_reduction <maximumf>, %231, %cst_74 [1] : vector<16x16xf32> to vector<16xf32>
    %233 = vector.shape_cast %232 : vector<16xf32> to vector<16x1xf32>
    %234 = vector.broadcast %233 : vector<16x1xf32> to vector<16x16xf32>
    %235 = arith.subf %231, %234 : vector<16x16xf32>
    %236 = math.exp %235 : vector<16x16xf32>
    %cst_75 = arith.constant dense<0.000000e+00> : vector<16xf32>
    %237 = vector.multi_reduction <add>, %236, %cst_75 [1] : vector<16x16xf32> to vector<16xf32>
    %238 = vector.shape_cast %237 : vector<16xf32> to vector<16x1xf32>
    %239 = tpu.reciprocal %238 : vector<16x1xf32> -> vector<16x1xf32>
    %240 = vector.broadcast %239 : vector<16x1xf32> to vector<16x16xf32>
    %241 = arith.mulf %236, %240 : vector<16x16xf32>
    %cst_76 = arith.constant dense<0.000000e+00> : vector<16x8xf32>
    %242 = tpu.matmul %241, %229, %cst_76 {dimension_numbers = #tpu.dot_dimension_numbers<[1], [0], [0], [1], [0, 0, 1, 1], [], []>} : vector<16x16xf32>, vector<16x8xf32>, vector<16x8xf32> -> vector<16x8xf32>
    %243 = vector.extract_strided_slice %160 {offsets = [24, 96], sizes = [8, 32], strides = [1, 1]} : vector<32x128xf32> to vector<8x32xf32>
    %cst_77 = arith.constant dense<0.000000e+00> : vector<16x32xf32>
    %244 = tpu.matmul %242, %243, %cst_77 {dimension_numbers = #tpu.dot_dimension_numbers<[1], [0], [0], [1], [0, 0, 1, 1], [], []>} : vector<16x8xf32>, vector<8x32xf32>, vector<16x32xf32> -> vector<16x32xf32>
    %245 = arith.addf %226, %244 : vector<16x32xf32>
    %246 = vector.extract_strided_slice %164 {offsets = [1, 0], sizes = [1, 32], strides = [1, 1]} : vector<8x128xf32> to vector<1x32xf32>
    %247 = vector.broadcast %246 : vector<1x32xf32> to vector<16x32xf32>
    %248 = arith.addf %245, %247 : vector<16x32xf32>
    %249 = arith.addf %158, %248 : vector<16x32xf32>
    %250 = vector.extract_strided_slice %164 {offsets = [4, 0], sizes = [1, 32], strides = [1, 1]} : vector<8x128xf32> to vector<1x32xf32>
    %251 = vector.extract_strided_slice %164 {offsets = [5, 0], sizes = [1, 32], strides = [1, 1]} : vector<8x128xf32> to vector<1x32xf32>
    %cst_78 = arith.constant dense<0.000000e+00> : vector<16xf32>
    %252 = vector.multi_reduction <add>, %249, %cst_78 [1] : vector<16x32xf32> to vector<16xf32>
    %253 = vector.shape_cast %252 : vector<16xf32> to vector<16x1xf32>
    %cst_79 = arith.constant 3.200000e+01 : f32
    %254 = vector.broadcast %cst_79 : f32 to vector<16x1xf32>
    %255 = arith.divf %253, %254 : vector<16x1xf32>
    %256 = arith.mulf %249, %249 : vector<16x32xf32>
    %cst_80 = arith.constant dense<0.000000e+00> : vector<16xf32>
    %257 = vector.multi_reduction <add>, %256, %cst_80 [1] : vector<16x32xf32> to vector<16xf32>
    %258 = vector.shape_cast %257 : vector<16xf32> to vector<16x1xf32>
    %cst_81 = arith.constant 3.200000e+01 : f32
    %259 = vector.broadcast %cst_81 : f32 to vector<16x1xf32>
    %260 = arith.divf %258, %259 : vector<16x1xf32>
    %261 = arith.mulf %255, %255 : vector<16x1xf32>
    %262 = arith.subf %260, %261 : vector<16x1xf32>
    %cst_82 = arith.constant 0.000000e+00 : f32
    %263 = vector.broadcast %cst_82 : f32 to vector<16x1xf32>
    %264 = arith.maximumf %262, %263 : vector<16x1xf32>
    %265 = vector.broadcast %255 : vector<16x1xf32> to vector<16x32xf32>
    %266 = arith.subf %249, %265 : vector<16x32xf32>
    %cst_83 = arith.constant 9.99999974E-6 : f32
    %267 = vector.broadcast %cst_83 : f32 to vector<16x1xf32>
    %268 = arith.addf %264, %267 : vector<16x1xf32>
    %269 = math.rsqrt %268 : vector<16x1xf32>
    %270 = vector.broadcast %269 : vector<16x1xf32> to vector<16x32xf32>
    %271 = arith.mulf %266, %270 : vector<16x32xf32>
    %272 = vector.broadcast %250 : vector<1x32xf32> to vector<16x32xf32>
    %273 = arith.mulf %271, %272 : vector<16x32xf32>
    %274 = vector.broadcast %251 : vector<1x32xf32> to vector<16x32xf32>
    %275 = arith.addf %273, %274 : vector<16x32xf32>
    %276 = vector.extract_strided_slice %162 {offsets = [0, 0], sizes = [32, 64], strides = [1, 1]} : vector<96x64xf32> to vector<32x64xf32>
    %cst_84 = arith.constant dense<0.000000e+00> : vector<16x64xf32>
    %277 = tpu.matmul %275, %276, %cst_84 {dimension_numbers = #tpu.dot_dimension_numbers<[1], [0], [0], [1], [0, 0, 1, 1], [], []>} : vector<16x32xf32>, vector<32x64xf32>, vector<16x64xf32> -> vector<16x64xf32>
    %278 = vector.extract_strided_slice %164 {offsets = [2, 0], sizes = [1, 64], strides = [1, 1]} : vector<8x128xf32> to vector<1x64xf32>
    %279 = vector.broadcast %278 : vector<1x64xf32> to vector<16x64xf32>
    %280 = arith.addf %277, %279 : vector<16x64xf32>
    %cst_85 = arith.constant 0.000000e+00 : f32
    %281 = vector.broadcast %cst_85 : f32 to vector<16x64xf32>
    %282 = arith.maximumf %280, %281 : vector<16x64xf32>
    %283 = vector.extract_strided_slice %162 {offsets = [32, 0], sizes = [64, 64], strides = [1, 1]} : vector<96x64xf32> to vector<64x64xf32>
    %cst_86 = arith.constant dense<0.000000e+00> : vector<16x64xf32>
    %284 = tpu.matmul %282, %283, %cst_86 {dimension_numbers = #tpu.dot_dimension_numbers<[1], [0], [0], [1], [0, 0, 1, 1], [], []>} : vector<16x64xf32>, vector<64x64xf32>, vector<16x64xf32> -> vector<16x64xf32>
    %285 = vector.extract_strided_slice %284 {offsets = [0, 0], sizes = [16, 32], strides = [1, 1]} : vector<16x64xf32> to vector<16x32xf32>
    %286 = vector.extract_strided_slice %164 {offsets = [3, 0], sizes = [1, 32], strides = [1, 1]} : vector<8x128xf32> to vector<1x32xf32>
    %287 = vector.broadcast %286 : vector<1x32xf32> to vector<16x32xf32>
    %288 = arith.addf %285, %287 : vector<16x32xf32>
    %289 = arith.addf %275, %288 : vector<16x32xf32>
    %290 = vector.extract_strided_slice %164 {offsets = [6, 0], sizes = [1, 32], strides = [1, 1]} : vector<8x128xf32> to vector<1x32xf32>
    %291 = vector.extract_strided_slice %164 {offsets = [7, 0], sizes = [1, 32], strides = [1, 1]} : vector<8x128xf32> to vector<1x32xf32>
    %cst_87 = arith.constant dense<0.000000e+00> : vector<16xf32>
    %292 = vector.multi_reduction <add>, %289, %cst_87 [1] : vector<16x32xf32> to vector<16xf32>
    %293 = vector.shape_cast %292 : vector<16xf32> to vector<16x1xf32>
    %cst_88 = arith.constant 3.200000e+01 : f32
    %294 = vector.broadcast %cst_88 : f32 to vector<16x1xf32>
    %295 = arith.divf %293, %294 : vector<16x1xf32>
    %296 = arith.mulf %289, %289 : vector<16x32xf32>
    %cst_89 = arith.constant dense<0.000000e+00> : vector<16xf32>
    %297 = vector.multi_reduction <add>, %296, %cst_89 [1] : vector<16x32xf32> to vector<16xf32>
    %298 = vector.shape_cast %297 : vector<16xf32> to vector<16x1xf32>
    %cst_90 = arith.constant 3.200000e+01 : f32
    %299 = vector.broadcast %cst_90 : f32 to vector<16x1xf32>
    %300 = arith.divf %298, %299 : vector<16x1xf32>
    %301 = arith.mulf %295, %295 : vector<16x1xf32>
    %302 = arith.subf %300, %301 : vector<16x1xf32>
    %cst_91 = arith.constant 0.000000e+00 : f32
    %303 = vector.broadcast %cst_91 : f32 to vector<16x1xf32>
    %304 = arith.maximumf %302, %303 : vector<16x1xf32>
    %305 = vector.broadcast %295 : vector<16x1xf32> to vector<16x32xf32>
    %306 = arith.subf %289, %305 : vector<16x32xf32>
    %cst_92 = arith.constant 9.99999974E-6 : f32
    %307 = vector.broadcast %cst_92 : f32 to vector<16x1xf32>
    %308 = arith.addf %304, %307 : vector<16x1xf32>
    %309 = math.rsqrt %308 : vector<16x1xf32>
    %310 = vector.broadcast %309 : vector<16x1xf32> to vector<16x32xf32>
    %311 = arith.mulf %306, %310 : vector<16x32xf32>
    %312 = vector.broadcast %290 : vector<1x32xf32> to vector<16x32xf32>
    %313 = arith.mulf %311, %312 : vector<16x32xf32>
    %314 = vector.broadcast %291 : vector<1x32xf32> to vector<16x32xf32>
    %315 = arith.addf %313, %314 : vector<16x32xf32>
    %c0_93 = arith.constant 0 : index
    %c0_94 = arith.constant 0 : index
    %316 = vector.load %arg6[%c0_93, %c0_94] : memref<16x32xf32, #tpu.memory_space<vmem>>, vector<16x32xf32>
    tpu.vector_store %arg6[%c0_93, %c0_94], %315 {strides = array<i32>} : memref<16x32xf32, #tpu.memory_space<vmem>>, vector<16x32xf32>,
    return
  }
  func.func @transform_0(%arg0: i32) -> (i32, i32) {
    %c0_i32 = arith.constant 0 : i32
    %c0_i32_0 = arith.constant 0 : i32
    return %arg0, %c0_i32 : i32, i32
  }
  func.func @transform_1(%arg0: i32) -> (i32, i32) {
    %c0_i32 = arith.constant 0 : i32
    %c0_i32_0 = arith.constant 0 : i32
    %c0_i32_1 = arith.constant 0 : i32
    return %c0_i32, %c0_i32_0 : i32, i32
  }
  func.func @transform_2(%arg0: i32) -> (i32, i32, i32) {
    %c0_i32 = arith.constant 0 : i32
    %c0_i32_0 = arith.constant 0 : i32
    %c0_i32_1 = arith.constant 0 : i32
    %c0_i32_2 = arith.constant 0 : i32
    return %c0_i32, %c0_i32_0, %c0_i32_1 : i32, i32, i32
  }
  func.func @transform_3(%arg0: i32) -> (i32, i32, i32) {
    %c0_i32 = arith.constant 0 : i32
    %c0_i32_0 = arith.constant 0 : i32
    %c0_i32_1 = arith.constant 0 : i32
    %c0_i32_2 = arith.constant 0 : i32
    return %c0_i32, %c0_i32_0, %c0_i32_1 : i32, i32, i32
  }
  func.func @transform_4(%arg0: i32) -> (i32, i32, i32) {
    %c0_i32 = arith.constant 0 : i32
    %c0_i32_0 = arith.constant 0 : i32
    %c0_i32_1 = arith.constant 0 : i32
    %c0_i32_2 = arith.constant 0 : i32
    return %c0_i32, %c0_i32_0, %c0_i32_1 : i32, i32, i32
  }
  func.func @transform_5(%arg0: i32) -> (i32, i32) {
    %c0_i32 = arith.constant 0 : i32
    %c0_i32_0 = arith.constant 0 : i32
    return %arg0, %c0_i32 : i32, i32
  }
}

</mosaic_0001>

<llo_original>
// kernel: tpu_custom_call.1
$region0: #{tpu_custom_call.1}
  #allocation0 [shape = 'u32[]', space=smem, size = 0x4, offset = 0x4, fixed_abs, tag = 'smem constant byte address 0x4 - core index']
  #allocation1 [shape = 'u32[144,128]{1,0:T(1,128)}', space=vmem, size = 0x12000, scoped, tag = 'internal scratch']
  %s0 = inlined_call_operand.vmem [shape: f32[16,32], index: 0, kind: input, shape index: {}]
  %s1 = inlined_call_operand.vmem [shape: f32[16,16], index: 1, kind: input, shape index: {}]
  %s2 = inlined_call_operand.vmem [shape: f32[2,32,128], index: 2, kind: input, shape index: {}]
  %s3 = inlined_call_operand.vmem [shape: f32[2,96,64], index: 3, kind: input, shape index: {}]
  %s4 = inlined_call_operand.vmem [shape: f32[2,8,128], index: 4, kind: input, shape index: {}]
  %s5 = inlined_call_operand.hbm [shape: f32[16,32], index: 5, kind: output, shape index: {}]
  %s6 = sld [smem:[#allocation0]]
  $region30: #{tpu_custom_call.1} parent=0
    _
  %s8 = ssub.s32 1, %s6
  %s9 = scalar_select 0, %s8, %s6
  $region1: #{tpu_custom_call.1} parent=0
    #allocation2 [shape = 'u8[8192]{0}', space=vmem, size = 0x2000, scoped, tag = 'output window, operand 0, single buffered']
    #allocation3 [shape = 's32[1]{0}', space=sflag, size = 0x4, scoped, tag = 'scoped memory for tpu_custom_call.1']
    %10 = vsyncpa [#allocation3], 0
    // Predicated region
    $region2: #{tpu_custom_call.1} parent=1 // pred_check
      _
    $region3: #{tpu_custom_call.1} parent=1 // pred_check_branch
      %12 = sbr.rel (0) target = $region5
    $region4: #{tpu_custom_call.1} parent=1 // pred_region
      _
    $region5: #{tpu_custom_call.1} parent=1 // pred_fallthru
      _
    // Predicated region
    $region6: #{tpu_custom_call.1} parent=1 // pred_check
      _
    $region7: #{tpu_custom_call.1} parent=1 // pred_check_branch
      %14 = sbr.rel (0) target = $region9
    $region8: #{tpu_custom_call.1} parent=1 // pred_region
      _
    $region9: #{tpu_custom_call.1} parent=1 // pred_fallthru
      _
    // Predicated region
    $region10: #{tpu_custom_call.1} parent=1 // pred_check
      _
    $region11: #{tpu_custom_call.1} parent=1 // pred_check_branch
      %16 = sbr.rel (0) target = $region13
    $region12: #{tpu_custom_call.1} parent=1 // pred_region
      _
    $region13: #{tpu_custom_call.1} parent=1 // pred_fallthru
      _
    // Predicated region
    $region14: #{tpu_custom_call.1} parent=1 // pred_check
      _
    $region15: #{tpu_custom_call.1} parent=1 // pred_check_branch
      %18 = sbr.rel (0) target = $region17
    $region16: #{tpu_custom_call.1} parent=1 // pred_region
      _
    $region17: #{tpu_custom_call.1} parent=1 // pred_fallthru
      _
    // Predicated region
    $region18: #{tpu_custom_call.1} parent=1 // pred_check
      _
    $region19: #{tpu_custom_call.1} parent=1 // pred_check_branch
      %20 = sbr.rel (0) target = $region21
    $region20: #{tpu_custom_call.1} parent=1 // pred_region
      _
    $region21: #{tpu_custom_call.1} parent=1 // pred_fallthru
      _
    %v21 = vld [vmem:[%s0] sm:$0xff]
    %v22 = vld [vmem:[%s0 + $0x8] sm:$0xff]
    %v23 = vld [vmem:[%s1] sm:$0xff]
    %v24 = vld [vmem:[%s1 + $0x8] sm:$0xff]
    %v25 = vld [vmem:[%s2] sm:$0xff]
    %v26 = vld [vmem:[%s2 + $0x8] sm:$0xff]
    %v27 = vld [vmem:[%s2 + $0x10] sm:$0xff]
    %v28 = vld [vmem:[%s2 + $0x18] sm:$0xff]
    %v29 = vld [vmem:[%s3] sm:$0xff]
    %v30 = vld [vmem:[%s3 + $0x8] sm:$0xff]
    %v31 = vld [vmem:[%s3 + $0x10] sm:$0xff]
    %v32 = vld [vmem:[%s3 + $0x18] sm:$0xff]
    %v33 = vld [vmem:[%s3 + $0x20] sm:$0xff]
    %v34 = vld [vmem:[%s3 + $0x28] sm:$0xff]
    %v35 = vld [vmem:[%s3 + $0x30] sm:$0xff]
    %v36 = vld [vmem:[%s3 + $0x38] sm:$0xff]
    %v37 = vld [vmem:[%s3 + $0x40] sm:$0xff]
    %v38 = vld [vmem:[%s3 + $0x48] sm:$0xff]
    %v39 = vld [vmem:[%s3 + $0x50] sm:$0xff]
    %v40 = vld [vmem:[%s3 + $0x58] sm:$0xff]
    %v41 = vld [vmem:[%s4] sm:$0xff]
    %v42 = vlaneseq
    %v43 = vshrl.u32 %v42, 7
    %v44 = vsub.s32 0, %v43
    %v45 = vrot.slane %v41, %v44
    %vm46 = vcmask 261120
    %v48 = vsel %vm46, %v21, 0
    %v51 = vsel %vm46, %v22, 0
    %53 = vmatprep.subr.mxu0 0.0
    %54 = vmatpush1.msra.mxu0 %v25
    %55 = vmatprep.subr.mxu0 0.0
    %56 = vmatpush1.msra.mxu0 %v26
    %57 = vmatprep.subr.mxu0 0.0
    %58 = vmatpush1.msra.mxu0 %v27
    %59 = vmatprep.subr.mxu0 0.0
    %60 = vmatpush1.msra.mxu0 %v28
    %61 = vmatprep.subr.mxu0 0.0
    %62 = vmatpush1.msra.mxu0 0.0
    %63 = vmatprep.subr.mxu0 0.0
    %64 = vmatpush1.msra.mxu0 0.0
    %65 = vmatprep.subr.mxu0 0.0
    %66 = vmatpush1.msra.mxu0 0.0
    %67 = vmatprep.subr.mxu0 0.0
    %68 = vmatpush1.msra.mxu0 0.0
    %69 = vmatprep.subr.mxu0 0.0
    %70 = vmatpush1.msra.mxu0 0.0
    %71 = vmatprep.subr.mxu0 0.0
    %72 = vmatpush1.msra.mxu0 0.0
    %73 = vmatprep.subr.mxu0 0.0
    %74 = vmatpush1.msra.mxu0 0.0
    %75 = vmatprep.subr.mxu0 0.0
    %76 = vmatpush1.msra.mxu0 0.0
    %77 = vmatprep.subr.mxu0 0.0
    %78 = vmatpush1.msra.mxu0 0.0
    %79 = vmatprep.subr.mxu0 0.0
    %80 = vmatpush1.msra.mxu0 0.0
    %81 = vmatprep.subr.mxu0 0.0
    %82 = vmatpush1.msra.mxu0 0.0
    %83 = vmatprep.subr.mxu0 0.0
    %84 = vmatpush1.msra.mxu0 0.0
    %85 = vmatprep.subr.mxu0 0.0
    %86 = vmatpush1.msra.mxu0 0.0
    %87 = vmatprep.subr.mxu0 0.0
    %88 = vmatpush1.msra.mxu0 0.0
    %89 = vmatprep.subr.mxu0 0.0
    %90 = vmatpush1.msra.mxu0 0.0
    %91 = vmatprep.subr.mxu0 0.0
    %92 = vmatpush1.msra.mxu0 0.0
    %93 = vmatprep.subr.mxu0 0.0
    %94 = vmatpush1.msra.mxu0 0.0
    %95 = vmatprep.subr.mxu0 0.0
    %96 = vmatpush1.msra.mxu0 0.0
    %97 = vmatprep.subr.mxu0 0.0
    %98 = vmatpush1.msra.mxu0 0.0
    %99 = vmatprep.subr.mxu0 0.0
    %100 = vmatpush1.msra.mxu0 0.0
    %101 = vmatprep.subr.mxu0 0.0
    %102 = vmatpush1.msra.mxu0 0.0
    %103 = vmatprep.subr.mxu0 0.0
    %104 = vmatpush1.msra.mxu0 0.0
    %105 = vmatprep.subr.mxu0 0.0
    %106 = vmatpush1.msra.mxu0 0.0
    %107 = vmatprep.subr.mxu0 0.0
    %108 = vmatpush1.msra.mxu0 0.0
    %109 = vmatprep.subr.mxu0 0.0
    %110 = vmatpush1.msra.mxu0 0.0
    %111 = vmatprep.subr.mxu0 0.0
    %112 = vmatpush1.msra.mxu0 0.0
    %113 = vmatprep.subr.mxu0 0.0
    %114 = vmatpush1.msra.mxu0 0.0
    %115 = vmatprep.subr.mxu0 0.0
    %116 = vmatpush1.msra.mxu0 0.0
    %117 = vmatprep.mubr.f32.mxu0 0.0
    %118 = vmatmul.mubr.f32.gmra.mrb[0].mxu0 %v48
    %v119 = vpop.f32.mrb[0].mxu0
    %v120 = vadd.f32 %v45, %v119
    %v121 = vpop.f32.mrb[0].mxu0
    %122 = vmatprep.mubr.f32.mxu0 0.0
    %123 = vmatmul.mubr.f32.gmra.mrb[0].mxu0 %v51
    %v124 = vpop.f32.mrb[0].mxu0
    %v125 = vadd.f32 %v45, %v124
    %v126 = vpop.f32.mrb[0].mxu0
    %127 = vdwg.mxu0
    %130 = vrot.lane.b32.xlu0 %v120, 96
    %v131 = vpop.permute.xlu0 %130
    %132 = vrot.lane.b32.xlu0 %v125, 96
    %v133 = vpop.permute.xlu0 %132
    %vm134 = vcmask 64512
    %v135 = vsel %vm134, %v120, 0
    %v137 = vsel %vm134, %v125, 0
    %v139 = vsel %vm134, %v131, 0
    %v141 = vsel %vm134, %v133, 0
    %143 = vmatprep.subr.mxu0 0.0
    %144 = vmatpush1.xpose.msra.mxu0 %v139
    %145 = vmatprep.subr.mxu0 0.0
    %146 = vmatpush1.xpose.msra.mxu0 %v141
    %147 = vmatprep.subr.mxu0 0.0
    %148 = vmatpush1.xpose.msra.mxu0 0.0
    %149 = vmatprep.subr.mxu0 0.0
    %150 = vmatpush1.xpose.msra.mxu0 0.0
    %151 = vmatprep.subr.mxu0 0.0
    %152 = vmatpush1.xpose.msra.mxu0 0.0
    %153 = vmatprep.subr.mxu0 0.0
    %154 = vmatpush1.xpose.msra.mxu0 0.0
    %155 = vmatprep.subr.mxu0 0.0
    %156 = vmatpush1.xpose.msra.mxu0 0.0
    %157 = vmatprep.subr.mxu0 0.0
    %158 = vmatpush1.xpose.msra.mxu0 0.0
    %159 = vmatprep.subr.mxu0 0.0
    %160 = vmatpush1.xpose.msra.mxu0 0.0
    %161 = vmatprep.subr.mxu0 0.0
    %162 = vmatpush1.xpose.msra.mxu0 0.0
    %163 = vmatprep.subr.mxu0 0.0
    %164 = vmatpush1.xpose.msra.mxu0 0.0
    %165 = vmatprep.subr.mxu0 0.0
    %166 = vmatpush1.xpose.msra.mxu0 0.0
    %167 = vmatprep.subr.mxu0 0.0
    %168 = vmatpush1.xpose.msra.mxu0 0.0
    %169 = vmatprep.subr.mxu0 0.0
    %170 = vmatpush1.xpose.msra.mxu0 0.0
    %171 = vmatprep.subr.mxu0 0.0
    %172 = vmatpush1.xpose.msra.mxu0 0.0
    %173 = vmatprep.subr.mxu0 0.0
    %174 = vmatpush1.xpose.msra.mxu0 0.0
    %175 = vmatprep.subr.mxu0 0.0
    %176 = vmatpush1.xpose.msra.mxu0 0.0
    %177 = vmatprep.subr.mxu0 0.0
    %178 = vmatpush1.xpose.msra.mxu0 0.0
    %179 = vmatprep.subr.mxu0 0.0
    %180 = vmatpush1.xpose.msra.mxu0 0.0
    %181 = vmatprep.subr.mxu0 0.0
    %182 = vmatpush1.xpose.msra.mxu0 0.0
    %183 = vmatprep.subr.mxu0 0.0
    %184 = vmatpush1.xpose.msra.mxu0 0.0
    %185 = vmatprep.subr.mxu0 0.0
    %186 = vmatpush1.xpose.msra.mxu0 0.0
    %187 = vmatprep.subr.mxu0 0.0
    %188 = vmatpush1.xpose.msra.mxu0 0.0
    %189 = vmatprep.subr.mxu0 0.0
    %190 = vmatpush1.xpose.msra.mxu0 0.0
    %191 = vmatprep.subr.mxu0 0.0
    %192 = vmatpush1.xpose.msra.mxu0 0.0
    %193 = vmatprep.subr.mxu0 0.0
    %194 = vmatpush1.xpose.msra.mxu0 0.0
    %195 = vmatprep.subr.mxu0 0.0
    %196 = vmatpush1.xpose.msra.mxu0 0.0
    %197 = vmatprep.subr.mxu0 0.0
    %198 = vmatpush1.xpose.msra.mxu0 0.0
    %199 = vmatprep.subr.mxu0 0.0
    %200 = vmatpush1.xpose.msra.mxu0 0.0
    %201 = vmatprep.subr.mxu0 0.0
    %202 = vmatpush1.xpose.msra.mxu0 0.0
    %203 = vmatprep.subr.mxu0 0.0
    %204 = vmatpush1.xpose.msra.mxu0 0.0
    %205 = vmatprep.subr.mxu0 0.0
    %206 = vmatpush1.xpose.msra.mxu0 0.0
    %207 = vmatprep.mubr.f32.mxu0 0.0
    %208 = vmatmul.mubr.f32.gmra.mrb[0].mxu0 %v135
    %v209 = vpop.f32.mrb[0].mxu0
    %v210 = vadd.f32 %v23, %v209
    %v211 = vpop.f32.mrb[0].mxu0
    %212 = vmatprep.mubr.f32.mxu0 0.0
    %213 = vmatmul.mubr.f32.gmra.mrb[0].mxu0 %v137
    %v214 = vpop.f32.mrb[0].mxu0
    %v215 = vadd.f32 %v24, %v214
    %v216 = vpop.f32.mrb[0].mxu0
    %217 = vdwg.mxu0
    %vm218 = vcmask 130048
    %v219 = vsel %vm218, %v210, -inf
    %220 = vmax.xlane.f32.xlu0 %v219
    %v221 = vpop.xlane.xlu0 %220
    %v222 = vsel %vm218, %v215, -inf
    %223 = vmax.xlane.f32.xlu0 %v222
    %v224 = vpop.xlane.xlu0 %223
    %v225 = vsub.f32 %v210, %v221
    %v226 = vsub.f32 %v215, %v224
    %v227 = vmul.f32 %v225, 1.442695
    %v228 = vpow.pop %v227
    %v229 = vmul.f32 %v226, 1.442695
    %v230 = vpow.pop %v229
    %v231 = vsel %vm218, %v228, 0.0
    %232 = vadd.xlane.f32.xlu0 %v231
    %v233 = vpop.xlane.xlu0 %232
    %v234 = vsel %vm218, %v230, 0.0
    %235 = vadd.xlane.f32.xlu0 %v234
    %v236 = vpop.xlane.xlu0 %235
    %v237 = vrcp.pop %v233
    %v238 = vrcp.pop %v236
    %v239 = vmul.f32 %v228, %v237
    %v240 = vmul.f32 %v230, %v238
    %241 = vrot.lane.b32.xlu0 %v120, 64
    %v242 = vpop.permute.xlu0 %241
    %243 = vrot.lane.b32.xlu0 %v125, 64
    %v244 = vpop.permute.xlu0 %243
    %v248 = vsel %vm218, %v239, 0
    %v251 = vsel %vm218, %v240, 0
    %253 = vmatprep.subr.mxu0 0.0
    %254 = vmatpush1.msra.mxu0 %v242
    %255 = vmatprep.subr.mxu0 0.0
    %256 = vmatpush1.msra.mxu0 %v244
    %257 = vmatprep.subr.mxu0 0.0
    %258 = vmatpush1.msra.mxu0 0.0
    %259 = vmatprep.subr.mxu0 0.0
    %260 = vmatpush1.msra.mxu0 0.0
    %261 = vmatprep.subr.mxu0 0.0
    %262 = vmatpush1.msra.mxu0 0.0
    %263 = vmatprep.subr.mxu0 0.0
    %264 = vmatpush1.msra.mxu0 0.0
    %265 = vmatprep.subr.mxu0 0.0
    %266 = vmatpush1.msra.mxu0 0.0
    %267 = vmatprep.subr.mxu0 0.0
    %268 = vmatpush1.msra.mxu0 0.0
    %269 = vmatprep.subr.mxu0 0.0
    %270 = vmatpush1.msra.mxu0 0.0
    %271 = vmatprep.subr.mxu0 0.0
    %272 = vmatpush1.msra.mxu0 0.0
    %273 = vmatprep.subr.mxu0 0.0
    %274 = vmatpush1.msra.mxu0 0.0
    %275 = vmatprep.subr.mxu0 0.0
    %276 = vmatpush1.msra.mxu0 0.0
    %277 = vmatprep.subr.mxu0 0.0
    %278 = vmatpush1.msra.mxu0 0.0
    %279 = vmatprep.subr.mxu0 0.0
    %280 = vmatpush1.msra.mxu0 0.0
    %281 = vmatprep.subr.mxu0 0.0
    %282 = vmatpush1.msra.mxu0 0.0
    %283 = vmatprep.subr.mxu0 0.0
    %284 = vmatpush1.msra.mxu0 0.0
    %285 = vmatprep.subr.mxu0 0.0
    %286 = vmatpush1.msra.mxu0 0.0
    %287 = vmatprep.subr.mxu0 0.0
    %288 = vmatpush1.msra.mxu0 0.0
    %289 = vmatprep.subr.mxu0 0.0
    %290 = vmatpush1.msra.mxu0 0.0
    %291 = vmatprep.subr.mxu0 0.0
    %292 = vmatpush1.msra.mxu0 0.0
    %293 = vmatprep.subr.mxu0 0.0
    %294 = vmatpush1.msra.mxu0 0.0
    %295 = vmatprep.subr.mxu0 0.0
    %296 = vmatpush1.msra.mxu0 0.0
    %297 = vmatprep.subr.mxu0 0.0
    %298 = vmatpush1.msra.mxu0 0.0
    %299 = vmatprep.subr.mxu0 0.0
    %300 = vmatpush1.msra.mxu0 0.0
    %301 = vmatprep.subr.mxu0 0.0
    %302 = vmatpush1.msra.mxu0 0.0
    %303 = vmatprep.subr.mxu0 0.0
    %304 = vmatpush1.msra.mxu0 0.0
    %305 = vmatprep.subr.mxu0 0.0
    %306 = vmatpush1.msra.mxu0 0.0
    %307 = vmatprep.subr.mxu0 0.0
    %308 = vmatpush1.msra.mxu0 0.0
    %309 = vmatprep.subr.mxu0 0.0
    %310 = vmatpush1.msra.mxu0 0.0
    %311 = vmatprep.subr.mxu0 0.0
    %312 = vmatpush1.msra.mxu0 0.0
    %313 = vmatprep.subr.mxu0 0.0
    %314 = vmatpush1.msra.mxu0 0.0
    %315 = vmatprep.subr.mxu0 0.0
    %316 = vmatpush1.msra.mxu0 0.0
    %317 = vmatprep.mubr.f32.mxu0 0.0
    %318 = vmatmul.mubr.f32.gmra.mrb[0].mxu0 %v248
    %v319 = vpop.f32.mrb[0].mxu0
    %v320 = vadd.f32 0.0, %v319
    %v321 = vpop.f32.mrb[0].mxu0
    %322 = vmatprep.mubr.f32.mxu0 0.0
    %323 = vmatmul.mubr.f32.gmra.mrb[0].mxu0 %v251
    %v324 = vpop.f32.mrb[0].mxu0
    %v325 = vadd.f32 0.0, %v324
    %v326 = vpop.f32.mrb[0].mxu0
    %327 = vdwg.mxu0
    %328 = vrot.lane.b32.xlu0 %v120, 120
    %v329 = vpop.permute.xlu0 %328
    %330 = vrot.lane.b32.xlu0 %v125, 120
    %v331 = vpop.permute.xlu0 %330
    %332 = vrot.lane.b32.xlu0 %v120, 88
    %v333 = vpop.permute.xlu0 %332
    %334 = vrot.lane.b32.xlu0 %v125, 88
    %v335 = vpop.permute.xlu0 %334
    %v336 = vsel %vm134, %v329, 0
    %v338 = vsel %vm134, %v331, 0
    %v340 = vsel %vm134, %v333, 0
    %v342 = vsel %vm134, %v335, 0
    %344 = vmatprep.subr.mxu0 0.0
    %345 = vmatpush1.xpose.msra.mxu0 %v340
    %346 = vmatprep.subr.mxu0 0.0
    %347 = vmatpush1.xpose.msra.mxu0 %v342
    %348 = vmatprep.subr.mxu0 0.0
    %349 = vmatpush1.xpose.msra.mxu0 0.0
    %350 = vmatprep.subr.mxu0 0.0
    %351 = vmatpush1.xpose.msra.mxu0 0.0
    %352 = vmatprep.subr.mxu0 0.0
    %353 = vmatpush1.xpose.msra.mxu0 0.0
    %354 = vmatprep.subr.mxu0 0.0
    %355 = vmatpush1.xpose.msra.mxu0 0.0
    %356 = vmatprep.subr.mxu0 0.0
    %357 = vmatpush1.xpose.msra.mxu0 0.0
    %358 = vmatprep.subr.mxu0 0.0
    %359 = vmatpush1.xpose.msra.mxu0 0.0
    %360 = vmatprep.subr.mxu0 0.0
    %361 = vmatpush1.xpose.msra.mxu0 0.0
    %362 = vmatprep.subr.mxu0 0.0
    %363 = vmatpush1.xpose.msra.mxu0 0.0
    %364 = vmatprep.subr.mxu0 0.0
    %365 = vmatpush1.xpose.msra.mxu0 0.0
    %366 = vmatprep.subr.mxu0 0.0
    %367 = vmatpush1.xpose.msra.mxu0 0.0
    %368 = vmatprep.subr.mxu0 0.0
    %369 = vmatpush1.xpose.msra.mxu0 0.0
    %370 = vmatprep.subr.mxu0 0.0
    %371 = vmatpush1.xpose.msra.mxu0 0.0
    %372 = vmatprep.subr.mxu0 0.0
    %373 = vmatpush1.xpose.msra.mxu0 0.0
    %374 = vmatprep.subr.mxu0 0.0
    %375 = vmatpush1.xpose.msra.mxu0 0.0
    %376 = vmatprep.subr.mxu0 0.0
    %377 = vmatpush1.xpose.msra.mxu0 0.0
    %378 = vmatprep.subr.mxu0 0.0
    %379 = vmatpush1.xpose.msra.mxu0 0.0
    %380 = vmatprep.subr.mxu0 0.0
    %381 = vmatpush1.xpose.msra.mxu0 0.0
    %382 = vmatprep.subr.mxu0 0.0
    %383 = vmatpush1.xpose.msra.mxu0 0.0
    %384 = vmatprep.subr.mxu0 0.0
    %385 = vmatpush1.xpose.msra.mxu0 0.0
    %386 = vmatprep.subr.mxu0 0.0
    %387 = vmatpush1.xpose.msra.mxu0 0.0
    %388 = vmatprep.subr.mxu0 0.0
    %389 = vmatpush1.xpose.msra.mxu0 0.0
    %390 = vmatprep.subr.mxu0 0.0
    %391 = vmatpush1.xpose.msra.mxu0 0.0
    %392 = vmatprep.subr.mxu0 0.0
    %393 = vmatpush1.xpose.msra.mxu0 0.0
    %394 = vmatprep.subr.mxu0 0.0
    %395 = vmatpush1.xpose.msra.mxu0 0.0
    %396 = vmatprep.subr.mxu0 0.0
    %397 = vmatpush1.xpose.msra.mxu0 0.0
    %398 = vmatprep.subr.mxu0 0.0
    %399 = vmatpush1.xpose.msra.mxu0 0.0
    %400 = vmatprep.subr.mxu0 0.0
    %401 = vmatpush1.xpose.msra.mxu0 0.0
    %402 = vmatprep.subr.mxu0 0.0
    %403 = vmatpush1.xpose.msra.mxu0 0.0
    %404 = vmatprep.subr.mxu0 0.0
    %405 = vmatpush1.xpose.msra.mxu0 0.0
    %406 = vmatprep.subr.mxu0 0.0
    %407 = vmatpush1.xpose.msra.mxu0 0.0
    %408 = vmatprep.mubr.f32.mxu0 0.0
    %409 = vmatmul.mubr.f32.gmra.mrb[0].mxu0 %v336
    %v410 = vpop.f32.mrb[0].mxu0
    %v411 = vadd.f32 %v23, %v410
    %v412 = vpop.f32.mrb[0].mxu0
    %413 = vmatprep.mubr.f32.mxu0 0.0
    %414 = vmatmul.mubr.f32.gmra.mrb[0].mxu0 %v338
    %v415 = vpop.f32.mrb[0].mxu0
    %v416 = vadd.f32 %v24, %v415
    %v417 = vpop.f32.mrb[0].mxu0
    %418 = vdwg.mxu0
    %v419 = vsel %vm218, %v411, -inf
    %420 = vmax.xlane.f32.xlu0 %v419
    %v421 = vpop.xlane.xlu0 %420
    %v422 = vsel %vm218, %v416, -inf
    %423 = vmax.xlane.f32.xlu0 %v422
    %v424 = vpop.xlane.xlu0 %423
    %v425 = vsub.f32 %v411, %v421
    %v426 = vsub.f32 %v416, %v424
    %v427 = vmul.f32 %v425, 1.442695
    %v428 = vpow.pop %v427
    %v429 = vmul.f32 %v426, 1.442695
    %v430 = vpow.pop %v429
    %v431 = vsel %vm218, %v428, 0.0
    %432 = vadd.xlane.f32.xlu0 %v431
    %v433 = vpop.xlane.xlu0 %432
    %v434 = vsel %vm218, %v430, 0.0
    %435 = vadd.xlane.f32.xlu0 %v434
    %v436 = vpop.xlane.xlu0 %435
    %v437 = vrcp.pop %v433
    %v438 = vrcp.pop %v436
    %v439 = vmul.f32 %v428, %v437
    %v440 = vmul.f32 %v430, %v438
    %441 = vrot.lane.b32.xlu0 %v120, 56
    %v442 = vpop.permute.xlu0 %441
    %443 = vrot.lane.b32.xlu0 %v125, 56
    %v444 = vpop.permute.xlu0 %443
    %v448 = vsel %vm218, %v439, 0
    %v451 = vsel %vm218, %v440, 0
    %453 = vmatprep.subr.mxu0 0.0
    %454 = vmatpush1.msra.mxu0 %v442
    %455 = vmatprep.subr.mxu0 0.0
    %456 = vmatpush1.msra.mxu0 %v444
    %457 = vmatprep.subr.mxu0 0.0
    %458 = vmatpush1.msra.mxu0 0.0
    %459 = vmatprep.subr.mxu0 0.0
    %460 = vmatpush1.msra.mxu0 0.0
    %461 = vmatprep.subr.mxu0 0.0
    %462 = vmatpush1.msra.mxu0 0.0
    %463 = vmatprep.subr.mxu0 0.0
    %464 = vmatpush1.msra.mxu0 0.0
    %465 = vmatprep.subr.mxu0 0.0
    %466 = vmatpush1.msra.mxu0 0.0
    %467 = vmatprep.subr.mxu0 0.0
    %468 = vmatpush1.msra.mxu0 0.0
    %469 = vmatprep.subr.mxu0 0.0
    %470 = vmatpush1.msra.mxu0 0.0
    %471 = vmatprep.subr.mxu0 0.0
    %472 = vmatpush1.msra.mxu0 0.0
    %473 = vmatprep.subr.mxu0 0.0
    %474 = vmatpush1.msra.mxu0 0.0
    %475 = vmatprep.subr.mxu0 0.0
    %476 = vmatpush1.msra.mxu0 0.0
    %477 = vmatprep.subr.mxu0 0.0
    %478 = vmatpush1.msra.mxu0 0.0
    %479 = vmatprep.subr.mxu0 0.0
    %480 = vmatpush1.msra.mxu0 0.0
    %481 = vmatprep.subr.mxu0 0.0
    %482 = vmatpush1.msra.mxu0 0.0
    %483 = vmatprep.subr.mxu0 0.0
    %484 = vmatpush1.msra.mxu0 0.0
    %485 = vmatprep.subr.mxu0 0.0
    %486 = vmatpush1.msra.mxu0 0.0
    %487 = vmatprep.subr.mxu0 0.0
    %488 = vmatpush1.msra.mxu0 0.0
    %489 = vmatprep.subr.mxu0 0.0
    %490 = vmatpush1.msra.mxu0 0.0
    %491 = vmatprep.subr.mxu0 0.0
    %492 = vmatpush1.msra.mxu0 0.0
    %493 = vmatprep.subr.mxu0 0.0
    %494 = vmatpush1.msra.mxu0 0.0
    %495 = vmatprep.subr.mxu0 0.0
    %496 = vmatpush1.msra.mxu0 0.0
    %497 = vmatprep.subr.mxu0 0.0
    %498 = vmatpush1.msra.mxu0 0.0
    %499 = vmatprep.subr.mxu0 0.0
    %500 = vmatpush1.msra.mxu0 0.0
    %501 = vmatprep.subr.mxu0 0.0
    %502 = vmatpush1.msra.mxu0 0.0
    %503 = vmatprep.subr.mxu0 0.0
    %504 = vmatpush1.msra.mxu0 0.0
    %505 = vmatprep.subr.mxu0 0.0
    %506 = vmatpush1.msra.mxu0 0.0
    %507 = vmatprep.subr.mxu0 0.0
    %508 = vmatpush1.msra.mxu0 0.0
    %509 = vmatprep.subr.mxu0 0.0
    %510 = vmatpush1.msra.mxu0 0.0
    %511 = vmatprep.subr.mxu0 0.0
    %512 = vmatpush1.msra.mxu0 0.0
    %513 = vmatprep.subr.mxu0 0.0
    %514 = vmatpush1.msra.mxu0 0.0
    %515 = vmatprep.subr.mxu0 0.0
    %516 = vmatpush1.msra.mxu0 0.0
    %517 = vmatprep.mubr.f32.mxu0 0.0
    %518 = vmatmul.mubr.f32.gmra.mrb[0].mxu0 %v448
    %v519 = vpop.f32.mrb[0].mxu0
    %v520 = vadd.f32 0.0, %v519
    %v521 = vpop.f32.mrb[0].mxu0
    %522 = vmatprep.mubr.f32.mxu0 0.0
    %523 = vmatmul.mubr.f32.gmra.mrb[0].mxu0 %v451
    %v524 = vpop.f32.mrb[0].mxu0
    %v525 = vadd.f32 0.0, %v524
    %v526 = vpop.f32.mrb[0].mxu0
    %527 = vdwg.mxu0
    %529 = vrot.lane.b32.xlu0 %v26, 32
    %v530 = vpop.permute.xlu0 %529
    %v533 = vsel %vm134, %v520, 0
    %v536 = vsel %vm134, %v525, 0
    %538 = vmatprep.subr.mxu0 0.0
    %539 = vmatpush1.msra.mxu0 %v530
    %540 = vmatprep.subr.mxu0 0.0
    %541 = vmatpush1.msra.mxu0 0.0
    %542 = vmatprep.subr.mxu0 0.0
    %543 = vmatpush1.msra.mxu0 0.0
    %544 = vmatprep.subr.mxu0 0.0
    %545 = vmatpush1.msra.mxu0 0.0
    %546 = vmatprep.subr.mxu0 0.0
    %547 = vmatpush1.msra.mxu0 0.0
    %548 = vmatprep.subr.mxu0 0.0
    %549 = vmatpush1.msra.mxu0 0.0
    %550 = vmatprep.subr.mxu0 0.0
    %551 = vmatpush1.msra.mxu0 0.0
    %552 = vmatprep.subr.mxu0 0.0
    %553 = vmatpush1.msra.mxu0 0.0
    %554 = vmatprep.subr.mxu0 0.0
    %555 = vmatpush1.msra.mxu0 0.0
    %556 = vmatprep.subr.mxu0 0.0
    %557 = vmatpush1.msra.mxu0 0.0
    %558 = vmatprep.subr.mxu0 0.0
    %559 = vmatpush1.msra.mxu0 0.0
    %560 = vmatprep.subr.mxu0 0.0
    %561 = vmatpush1.msra.mxu0 0.0
    %562 = vmatprep.subr.mxu0 0.0
    %563 = vmatpush1.msra.mxu0 0.0
    %564 = vmatprep.subr.mxu0 0.0
    %565 = vmatpush1.msra.mxu0 0.0
    %566 = vmatprep.subr.mxu0 0.0
    %567 = vmatpush1.msra.mxu0 0.0
    %568 = vmatprep.subr.mxu0 0.0
    %569 = vmatpush1.msra.mxu0 0.0
    %570 = vmatprep.subr.mxu0 0.0
    %571 = vmatpush1.msra.mxu0 0.0
    %572 = vmatprep.subr.mxu0 0.0
    %573 = vmatpush1.msra.mxu0 0.0
    %574 = vmatprep.subr.mxu0 0.0
    %575 = vmatpush1.msra.mxu0 0.0
    %576 = vmatprep.subr.mxu0 0.0
    %577 = vmatpush1.msra.mxu0 0.0
    %578 = vmatprep.subr.mxu0 0.0
    %579 = vmatpush1.msra.mxu0 0.0
    %580 = vmatprep.subr.mxu0 0.0
    %581 = vmatpush1.msra.mxu0 0.0
    %582 = vmatprep.subr.mxu0 0.0
    %583 = vmatpush1.msra.mxu0 0.0
    %584 = vmatprep.subr.mxu0 0.0
    %585 = vmatpush1.msra.mxu0 0.0
    %586 = vmatprep.subr.mxu0 0.0
    %587 = vmatpush1.msra.mxu0 0.0
    %588 = vmatprep.subr.mxu0 0.0
    %589 = vmatpush1.msra.mxu0 0.0
    %590 = vmatprep.subr.mxu0 0.0
    %591 = vmatpush1.msra.mxu0 0.0
    %592 = vmatprep.subr.mxu0 0.0
    %593 = vmatpush1.msra.mxu0 0.0
    %594 = vmatprep.subr.mxu0 0.0
    %595 = vmatpush1.msra.mxu0 0.0
    %596 = vmatprep.subr.mxu0 0.0
    %597 = vmatpush1.msra.mxu0 0.0
    %598 = vmatprep.subr.mxu0 0.0
    %599 = vmatpush1.msra.mxu0 0.0
    %600 = vmatprep.subr.mxu0 0.0
    %601 = vmatpush1.msra.mxu0 0.0
    %602 = vmatprep.mubr.f32.mxu0 0.0
    %603 = vmatmul.mubr.f32.gmra.mrb[0].mxu0 %v533
    %v604 = vpop.f32.mrb[0].mxu0
    %v605 = vadd.f32 0.0, %v604
    %v606 = vpop.f32.mrb[0].mxu0
    %607 = vmatprep.mubr.f32.mxu0 0.0
    %608 = vmatmul.mubr.f32.gmra.mrb[0].mxu0 %v536
    %v609 = vpop.f32.mrb[0].mxu0
    %v610 = vadd.f32 0.0, %v609
    %v611 = vpop.f32.mrb[0].mxu0
    %612 = vdwg.mxu0
    %614 = vrot.lane.b32.xlu0 %v25, 32
    %v615 = vpop.permute.xlu0 %614
    %v618 = vsel %vm134, %v320, 0
    %v621 = vsel %vm134, %v325, 0
    %623 = vmatprep.subr.mxu0 0.0
    %624 = vmatpush1.msra.mxu0 %v615
    %625 = vmatprep.subr.mxu0 0.0
    %626 = vmatpush1.msra.mxu0 0.0
    %627 = vmatprep.subr.mxu0 0.0
    %628 = vmatpush1.msra.mxu0 0.0
    %629 = vmatprep.subr.mxu0 0.0
    %630 = vmatpush1.msra.mxu0 0.0
    %631 = vmatprep.subr.mxu0 0.0
    %632 = vmatpush1.msra.mxu0 0.0
    %633 = vmatprep.subr.mxu0 0.0
    %634 = vmatpush1.msra.mxu0 0.0
    %635 = vmatprep.subr.mxu0 0.0
    %636 = vmatpush1.msra.mxu0 0.0
    %637 = vmatprep.subr.mxu0 0.0
    %638 = vmatpush1.msra.mxu0 0.0
    %639 = vmatprep.subr.mxu0 0.0
    %640 = vmatpush1.msra.mxu0 0.0
    %641 = vmatprep.subr.mxu0 0.0
    %642 = vmatpush1.msra.mxu0 0.0
    %643 = vmatprep.subr.mxu0 0.0
    %644 = vmatpush1.msra.mxu0 0.0
    %645 = vmatprep.subr.mxu0 0.0
    %646 = vmatpush1.msra.mxu0 0.0
    %647 = vmatprep.subr.mxu0 0.0
    %648 = vmatpush1.msra.mxu0 0.0
    %649 = vmatprep.subr.mxu0 0.0
    %650 = vmatpush1.msra.mxu0 0.0
    %651 = vmatprep.subr.mxu0 0.0
    %652 = vmatpush1.msra.mxu0 0.0
    %653 = vmatprep.subr.mxu0 0.0
    %654 = vmatpush1.msra.mxu0 0.0
    %655 = vmatprep.subr.mxu0 0.0
    %656 = vmatpush1.msra.mxu0 0.0
    %657 = vmatprep.subr.mxu0 0.0
    %658 = vmatpush1.msra.mxu0 0.0
    %659 = vmatprep.subr.mxu0 0.0
    %660 = vmatpush1.msra.mxu0 0.0
    %661 = vmatprep.subr.mxu0 0.0
    %662 = vmatpush1.msra.mxu0 0.0
    %663 = vmatprep.subr.mxu0 0.0
    %664 = vmatpush1.msra.mxu0 0.0
    %665 = vmatprep.subr.mxu0 0.0
    %666 = vmatpush1.msra.mxu0 0.0
    %667 = vmatprep.subr.mxu0 0.0
    %668 = vmatpush1.msra.mxu0 0.0
    %669 = vmatprep.subr.mxu0 0.0
    %670 = vmatpush1.msra.mxu0 0.0
    %671 = vmatprep.subr.mxu0 0.0
    %672 = vmatpush1.msra.mxu0 0.0
    %673 = vmatprep.subr.mxu0 0.0
    %674 = vmatpush1.msra.mxu0 0.0
    %675 = vmatprep.subr.mxu0 0.0
    %676 = vmatpush1.msra.mxu0 0.0
    %677 = vmatprep.subr.mxu0 0.0
    %678 = vmatpush1.msra.mxu0 0.0
    %679 = vmatprep.subr.mxu0 0.0
    %680 = vmatpush1.msra.mxu0 0.0
    %681 = vmatprep.subr.mxu0 0.0
    %682 = vmatpush1.msra.mxu0 0.0
    %683 = vmatprep.subr.mxu0 0.0
    %684 = vmatpush1.msra.mxu0 0.0
    %685 = vmatprep.subr.mxu0 0.0
    %686 = vmatpush1.msra.mxu0 0.0
    %687 = vmatprep.mubr.f32.mxu0 0.0
    %688 = vmatmul.mubr.f32.gmra.mrb[0].mxu0 %v618
    %v689 = vpop.f32.mrb[0].mxu0
    %v690 = vadd.f32 %v605, %v689
    %v691 = vpop.f32.mrb[0].mxu0
    %692 = vmatprep.mubr.f32.mxu0 0.0
    %693 = vmatmul.mubr.f32.gmra.mrb[0].mxu0 %v621
    %v694 = vpop.f32.mrb[0].mxu0
    %v695 = vadd.f32 %v610, %v694
    %v696 = vpop.f32.mrb[0].mxu0
    %697 = vdwg.mxu0
    %698 = vrot.lane.b32.xlu0 %v120, 112
    %v699 = vpop.permute.xlu0 %698
    %700 = vrot.lane.b32.xlu0 %v125, 112
    %v701 = vpop.permute.xlu0 %700
    %702 = vrot.lane.b32.xlu0 %v120, 80
    %v703 = vpop.permute.xlu0 %702
    %704 = vrot.lane.b32.xlu0 %v125, 80
    %v705 = vpop.permute.xlu0 %704
    %v706 = vsel %vm134, %v699, 0
    %v708 = vsel %vm134, %v701, 0
    %v710 = vsel %vm134, %v703, 0
    %v712 = vsel %vm134, %v705, 0
    %714 = vmatprep.subr.mxu0 0.0
    %715 = vmatpush1.xpose.msra.mxu0 %v710
    %716 = vmatprep.subr.mxu0 0.0
    %717 = vmatpush1.xpose.msra.mxu0 %v712
    %718 = vmatprep.subr.mxu0 0.0
    %719 = vmatpush1.xpose.msra.mxu0 0.0
    %720 = vmatprep.subr.mxu0 0.0
    %721 = vmatpush1.xpose.msra.mxu0 0.0
    %722 = vmatprep.subr.mxu0 0.0
    %723 = vmatpush1.xpose.msra.mxu0 0.0
    %724 = vmatprep.subr.mxu0 0.0
    %725 = vmatpush1.xpose.msra.mxu0 0.0
    %726 = vmatprep.subr.mxu0 0.0
    %727 = vmatpush1.xpose.msra.mxu0 0.0
    %728 = vmatprep.subr.mxu0 0.0
    %729 = vmatpush1.xpose.msra.mxu0 0.0
    %730 = vmatprep.subr.mxu0 0.0
    %731 = vmatpush1.xpose.msra.mxu0 0.0
    %732 = vmatprep.subr.mxu0 0.0
    %733 = vmatpush1.xpose.msra.mxu0 0.0
    %734 = vmatprep.subr.mxu0 0.0
    %735 = vmatpush1.xpose.msra.mxu0 0.0
    %736 = vmatprep.subr.mxu0 0.0
    %737 = vmatpush1.xpose.msra.mxu0 0.0
    %738 = vmatprep.subr.mxu0 0.0
    %739 = vmatpush1.xpose.msra.mxu0 0.0
    %740 = vmatprep.subr.mxu0 0.0
    %741 = vmatpush1.xpose.msra.mxu0 0.0
    %742 = vmatprep.subr.mxu0 0.0
    %743 = vmatpush1.xpose.msra.mxu0 0.0
    %744 = vmatprep.subr.mxu0 0.0
    %745 = vmatpush1.xpose.msra.mxu0 0.0
    %746 = vmatprep.subr.mxu0 0.0
    %747 = vmatpush1.xpose.msra.mxu0 0.0
    %748 = vmatprep.subr.mxu0 0.0
    %749 = vmatpush1.xpose.msra.mxu0 0.0
    %750 = vmatprep.subr.mxu0 0.0
    %751 = vmatpush1.xpose.msra.mxu0 0.0
    %752 = vmatprep.subr.mxu0 0.0
    %753 = vmatpush1.xpose.msra.mxu0 0.0
    %754 = vmatprep.subr.mxu0 0.0
    %755 = vmatpush1.xpose.msra.mxu0 0.0
    %756 = vmatprep.subr.mxu0 0.0
    %757 = vmatpush1.xpose.msra.mxu0 0.0
    %758 = vmatprep.subr.mxu0 0.0
    %759 = vmatpush1.xpose.msra.mxu0 0.0
    %760 = vmatprep.subr.mxu0 0.0
    %761 = vmatpush1.xpose.msra.mxu0 0.0
    %762 = vmatprep.subr.mxu0 0.0
    %763 = vmatpush1.xpose.msra.mxu0 0.0
    %764 = vmatprep.subr.mxu0 0.0
    %765 = vmatpush1.xpose.msra.mxu0 0.0
    %766 = vmatprep.subr.mxu0 0.0
    %767 = vmatpush1.xpose.msra.mxu0 0.0
    %768 = vmatprep.subr.mxu0 0.0
    %769 = vmatpush1.xpose.msra.mxu0 0.0
    %770 = vmatprep.subr.mxu0 0.0
    %771 = vmatpush1.xpose.msra.mxu0 0.0
    %772 = vmatprep.subr.mxu0 0.0
    %773 = vmatpush1.xpose.msra.mxu0 0.0
    %774 = vmatprep.subr.mxu0 0.0
    %775 = vmatpush1.xpose.msra.mxu0 0.0
    %776 = vmatprep.subr.mxu0 0.0
    %777 = vmatpush1.xpose.msra.mxu0 0.0
    %778 = vmatprep.mubr.f32.mxu0 0.0
    %779 = vmatmul.mubr.f32.gmra.mrb[0].mxu0 %v706
    %v780 = vpop.f32.mrb[0].mxu0
    %v781 = vadd.f32 %v23, %v780
    %v782 = vpop.f32.mrb[0].mxu0
    %783 = vmatprep.mubr.f32.mxu0 0.0
    %784 = vmatmul.mubr.f32.gmra.mrb[0].mxu0 %v708
    %v785 = vpop.f32.mrb[0].mxu0
    %v786 = vadd.f32 %v24, %v785
    %v787 = vpop.f32.mrb[0].mxu0
    %788 = vdwg.mxu0
    %v789 = vsel %vm218, %v781, -inf
    %790 = vmax.xlane.f32.xlu0 %v789
    %v791 = vpop.xlane.xlu0 %790
    %v792 = vsel %vm218, %v786, -inf
    %793 = vmax.xlane.f32.xlu0 %v792
    %v794 = vpop.xlane.xlu0 %793
    %v795 = vsub.f32 %v781, %v791
    %v796 = vsub.f32 %v786, %v794
    %v797 = vmul.f32 %v795, 1.442695
    %v798 = vpow.pop %v797
    %v799 = vmul.f32 %v796, 1.442695
    %v800 = vpow.pop %v799
    %v801 = vsel %vm218, %v798, 0.0
    %802 = vadd.xlane.f32.xlu0 %v801
    %v803 = vpop.xlane.xlu0 %802
    %v804 = vsel %vm218, %v800, 0.0
    %805 = vadd.xlane.f32.xlu0 %v804
    %v806 = vpop.xlane.xlu0 %805
    %v807 = vrcp.pop %v803
    %v808 = vrcp.pop %v806
    %v809 = vmul.f32 %v798, %v807
    %v810 = vmul.f32 %v800, %v808
    %811 = vrot.lane.b32.xlu0 %v120, 48
    %v812 = vpop.permute.xlu0 %811
    %813 = vrot.lane.b32.xlu0 %v125, 48
    %v814 = vpop.permute.xlu0 %813
    %v818 = vsel %vm218, %v809, 0
    %v821 = vsel %vm218, %v810, 0
    %823 = vmatprep.subr.mxu0 0.0
    %824 = vmatpush1.msra.mxu0 %v812
    %825 = vmatprep.subr.mxu0 0.0
    %826 = vmatpush1.msra.mxu0 %v814
    %827 = vmatprep.subr.mxu0 0.0
    %828 = vmatpush1.msra.mxu0 0.0
    %829 = vmatprep.subr.mxu0 0.0
    %830 = vmatpush1.msra.mxu0 0.0
    %831 = vmatprep.subr.mxu0 0.0
    %832 = vmatpush1.msra.mxu0 0.0
    %833 = vmatprep.subr.mxu0 0.0
    %834 = vmatpush1.msra.mxu0 0.0
    %835 = vmatprep.subr.mxu0 0.0
    %836 = vmatpush1.msra.mxu0 0.0
    %837 = vmatprep.subr.mxu0 0.0
    %838 = vmatpush1.msra.mxu0 0.0
    %839 = vmatprep.subr.mxu0 0.0
    %840 = vmatpush1.msra.mxu0 0.0
    %841 = vmatprep.subr.mxu0 0.0
    %842 = vmatpush1.msra.mxu0 0.0
    %843 = vmatprep.subr.mxu0 0.0
    %844 = vmatpush1.msra.mxu0 0.0
    %845 = vmatprep.subr.mxu0 0.0
    %846 = vmatpush1.msra.mxu0 0.0
    %847 = vmatprep.subr.mxu0 0.0
    %848 = vmatpush1.msra.mxu0 0.0
    %849 = vmatprep.subr.mxu0 0.0
    %850 = vmatpush1.msra.mxu0 0.0
    %851 = vmatprep.subr.mxu0 0.0
    %852 = vmatpush1.msra.mxu0 0.0
    %853 = vmatprep.subr.mxu0 0.0
    %854 = vmatpush1.msra.mxu0 0.0
    %855 = vmatprep.subr.mxu0 0.0
    %856 = vmatpush1.msra.mxu0 0.0
    %857 = vmatprep.subr.mxu0 0.0
    %858 = vmatpush1.msra.mxu0 0.0
    %859 = vmatprep.subr.mxu0 0.0
    %860 = vmatpush1.msra.mxu0 0.0
    %861 = vmatprep.subr.mxu0 0.0
    %862 = vmatpush1.msra.mxu0 0.0
    %863 = vmatprep.subr.mxu0 0.0
    %864 = vmatpush1.msra.mxu0 0.0
    %865 = vmatprep.subr.mxu0 0.0
    %866 = vmatpush1.msra.mxu0 0.0
    %867 = vmatprep.subr.mxu0 0.0
    %868 = vmatpush1.msra.mxu0 0.0
    %869 = vmatprep.subr.mxu0 0.0
    %870 = vmatpush1.msra.mxu0 0.0
    %871 = vmatprep.subr.mxu0 0.0
    %872 = vmatpush1.msra.mxu0 0.0
    %873 = vmatprep.subr.mxu0 0.0
    %874 = vmatpush1.msra.mxu0 0.0
    %875 = vmatprep.subr.mxu0 0.0
    %876 = vmatpush1.msra.mxu0 0.0
    %877 = vmatprep.subr.mxu0 0.0
    %878 = vmatpush1.msra.mxu0 0.0
    %879 = vmatprep.subr.mxu0 0.0
    %880 = vmatpush1.msra.mxu0 0.0
    %881 = vmatprep.subr.mxu0 0.0
    %882 = vmatpush1.msra.mxu0 0.0
    %883 = vmatprep.subr.mxu0 0.0
    %884 = vmatpush1.msra.mxu0 0.0
    %885 = vmatprep.subr.mxu0 0.0
    %886 = vmatpush1.msra.mxu0 0.0
    %887 = vmatprep.mubr.f32.mxu0 0.0
    %888 = vmatmul.mubr.f32.gmra.mrb[0].mxu0 %v818
    %v889 = vpop.f32.mrb[0].mxu0
    %v890 = vadd.f32 0.0, %v889
    %v891 = vpop.f32.mrb[0].mxu0
    %892 = vmatprep.mubr.f32.mxu0 0.0
    %893 = vmatmul.mubr.f32.gmra.mrb[0].mxu0 %v821
    %v894 = vpop.f32.mrb[0].mxu0
    %v895 = vadd.f32 0.0, %v894
    %v896 = vpop.f32.mrb[0].mxu0
    %897 = vdwg.mxu0
    %899 = vrot.lane.b32.xlu0 %v27, 32
    %v900 = vpop.permute.xlu0 %899
    %v903 = vsel %vm134, %v890, 0
    %v906 = vsel %vm134, %v895, 0
    %908 = vmatprep.subr.mxu0 0.0
    %909 = vmatpush1.msra.mxu0 %v900
    %910 = vmatprep.subr.mxu0 0.0
    %911 = vmatpush1.msra.mxu0 0.0
    %912 = vmatprep.subr.mxu0 0.0
    %913 = vmatpush1.msra.mxu0 0.0
    %914 = vmatprep.subr.mxu0 0.0
    %915 = vmatpush1.msra.mxu0 0.0
    %916 = vmatprep.subr.mxu0 0.0
    %917 = vmatpush1.msra.mxu0 0.0
    %918 = vmatprep.subr.mxu0 0.0
    %919 = vmatpush1.msra.mxu0 0.0
    %920 = vmatprep.subr.mxu0 0.0
    %921 = vmatpush1.msra.mxu0 0.0
    %922 = vmatprep.subr.mxu0 0.0
    %923 = vmatpush1.msra.mxu0 0.0
    %924 = vmatprep.subr.mxu0 0.0
    %925 = vmatpush1.msra.mxu0 0.0
    %926 = vmatprep.subr.mxu0 0.0
    %927 = vmatpush1.msra.mxu0 0.0
    %928 = vmatprep.subr.mxu0 0.0
    %929 = vmatpush1.msra.mxu0 0.0
    %930 = vmatprep.subr.mxu0 0.0
    %931 = vmatpush1.msra.mxu0 0.0
    %932 = vmatprep.subr.mxu0 0.0
    %933 = vmatpush1.msra.mxu0 0.0
    %934 = vmatprep.subr.mxu0 0.0
    %935 = vmatpush1.msra.mxu0 0.0
    %936 = vmatprep.subr.mxu0 0.0
    %937 = vmatpush1.msra.mxu0 0.0
    %938 = vmatprep.subr.mxu0 0.0
    %939 = vmatpush1.msra.mxu0 0.0
    %940 = vmatprep.subr.mxu0 0.0
    %941 = vmatpush1.msra.mxu0 0.0
    %942 = vmatprep.subr.mxu0 0.0
    %943 = vmatpush1.msra.mxu0 0.0
    %944 = vmatprep.subr.mxu0 0.0
    %945 = vmatpush1.msra.mxu0 0.0
    %946 = vmatprep.subr.mxu0 0.0
    %947 = vmatpush1.msra.mxu0 0.0
    %948 = vmatprep.subr.mxu0 0.0
    %949 = vmatpush1.msra.mxu0 0.0
    %950 = vmatprep.subr.mxu0 0.0
    %951 = vmatpush1.msra.mxu0 0.0
    %952 = vmatprep.subr.mxu0 0.0
    %953 = vmatpush1.msra.mxu0 0.0
    %954 = vmatprep.subr.mxu0 0.0
    %955 = vmatpush1.msra.mxu0 0.0
    %956 = vmatprep.subr.mxu0 0.0
    %957 = vmatpush1.msra.mxu0 0.0
    %958 = vmatprep.subr.mxu0 0.0
    %959 = vmatpush1.msra.mxu0 0.0
    %960 = vmatprep.subr.mxu0 0.0
    %961 = vmatpush1.msra.mxu0 0.0
    %962 = vmatprep.subr.mxu0 0.0
    %963 = vmatpush1.msra.mxu0 0.0
    %964 = vmatprep.subr.mxu0 0.0
    %965 = vmatpush1.msra.mxu0 0.0
    %966 = vmatprep.subr.mxu0 0.0
    %967 = vmatpush1.msra.mxu0 0.0
    %968 = vmatprep.subr.mxu0 0.0
    %969 = vmatpush1.msra.mxu0 0.0
    %970 = vmatprep.subr.mxu0 0.0
    %971 = vmatpush1.msra.mxu0 0.0
    %972 = vmatprep.mubr.f32.mxu0 0.0
    %973 = vmatmul.mubr.f32.gmra.mrb[0].mxu0 %v903
    %v974 = vpop.f32.mrb[0].mxu0
    %v975 = vadd.f32 0.0, %v974
    %v976 = vpop.f32.mrb[0].mxu0
    %977 = vmatprep.mubr.f32.mxu0 0.0
    %978 = vmatmul.mubr.f32.gmra.mrb[0].mxu0 %v906
    %v979 = vpop.f32.mrb[0].mxu0
    %v980 = vadd.f32 0.0, %v979
    %v981 = vpop.f32.mrb[0].mxu0
    %982 = vdwg.mxu0
    %v983 = vadd.f32 %v690, %v975
    %v984 = vadd.f32 %v695, %v980
    %985 = vrot.lane.b32.xlu0 %v120, 104
    %v986 = vpop.permute.xlu0 %985
    %987 = vrot.lane.b32.xlu0 %v125, 104
    %v988 = vpop.permute.xlu0 %987
    %989 = vrot.lane.b32.xlu0 %v120, 72
    %v990 = vpop.permute.xlu0 %989
    %991 = vrot.lane.b32.xlu0 %v125, 72
    %v992 = vpop.permute.xlu0 %991
    %v993 = vsel %vm134, %v986, 0
    %v995 = vsel %vm134, %v988, 0
    %v997 = vsel %vm134, %v990, 0
    %v999 = vsel %vm134, %v992, 0
    %1001 = vmatprep.subr.mxu0 0.0
    %1002 = vmatpush1.xpose.msra.mxu0 %v997
    %1003 = vmatprep.subr.mxu0 0.0
    %1004 = vmatpush1.xpose.msra.mxu0 %v999
    %1005 = vmatprep.subr.mxu0 0.0
    %1006 = vmatpush1.xpose.msra.mxu0 0.0
    %1007 = vmatprep.subr.mxu0 0.0
    %1008 = vmatpush1.xpose.msra.mxu0 0.0
    %1009 = vmatprep.subr.mxu0 0.0
    %1010 = vmatpush1.xpose.msra.mxu0 0.0
    %1011 = vmatprep.subr.mxu0 0.0
    %1012 = vmatpush1.xpose.msra.mxu0 0.0
    %1013 = vmatprep.subr.mxu0 0.0
    %1014 = vmatpush1.xpose.msra.mxu0 0.0
    %1015 = vmatprep.subr.mxu0 0.0
    %1016 = vmatpush1.xpose.msra.mxu0 0.0
    %1017 = vmatprep.subr.mxu0 0.0
    %1018 = vmatpush1.xpose.msra.mxu0 0.0
    %1019 = vmatprep.subr.mxu0 0.0
    %1020 = vmatpush1.xpose.msra.mxu0 0.0
    %1021 = vmatprep.subr.mxu0 0.0
    %1022 = vmatpush1.xpose.msra.mxu0 0.0
    %1023 = vmatprep.subr.mxu0 0.0
    %1024 = vmatpush1.xpose.msra.mxu0 0.0
    %1025 = vmatprep.subr.mxu0 0.0
    %1026 = vmatpush1.xpose.msra.mxu0 0.0
    %1027 = vmatprep.subr.mxu0 0.0
    %1028 = vmatpush1.xpose.msra.mxu0 0.0
    %1029 = vmatprep.subr.mxu0 0.0
    %1030 = vmatpush1.xpose.msra.mxu0 0.0
    %1031 = vmatprep.subr.mxu0 0.0
    %1032 = vmatpush1.xpose.msra.mxu0 0.0
    %1033 = vmatprep.subr.mxu0 0.0
    %1034 = vmatpush1.xpose.msra.mxu0 0.0
    %1035 = vmatprep.subr.mxu0 0.0
    %1036 = vmatpush1.xpose.msra.mxu0 0.0
    %1037 = vmatprep.subr.mxu0 0.0
    %1038 = vmatpush1.xpose.msra.mxu0 0.0
    %1039 = vmatprep.subr.mxu0 0.0
    %1040 = vmatpush1.xpose.msra.mxu0 0.0
    %1041 = vmatprep.subr.mxu0 0.0
    %1042 = vmatpush1.xpose.msra.mxu0 0.0
    %1043 = vmatprep.subr.mxu0 0.0
    %1044 = vmatpush1.xpose.msra.mxu0 0.0
    %1045 = vmatprep.subr.mxu0 0.0
    %1046 = vmatpush1.xpose.msra.mxu0 0.0
    %1047 = vmatprep.subr.mxu0 0.0
    %1048 = vmatpush1.xpose.msra.mxu0 0.0
    %1049 = vmatprep.subr.mxu0 0.0
    %1050 = vmatpush1.xpose.msra.mxu0 0.0
    %1051 = vmatprep.subr.mxu0 0.0
    %1052 = vmatpush1.xpose.msra.mxu0 0.0
    %1053 = vmatprep.subr.mxu0 0.0
    %1054 = vmatpush1.xpose.msra.mxu0 0.0
    %1055 = vmatprep.subr.mxu0 0.0
    %1056 = vmatpush1.xpose.msra.mxu0 0.0
    %1057 = vmatprep.subr.mxu0 0.0
    %1058 = vmatpush1.xpose.msra.mxu0 0.0
    %1059 = vmatprep.subr.mxu0 0.0
    %1060 = vmatpush1.xpose.msra.mxu0 0.0
    %1061 = vmatprep.subr.mxu0 0.0
    %1062 = vmatpush1.xpose.msra.mxu0 0.0
    %1063 = vmatprep.subr.mxu0 0.0
    %1064 = vmatpush1.xpose.msra.mxu0 0.0
    %1065 = vmatprep.mubr.f32.mxu0 0.0
    %1066 = vmatmul.mubr.f32.gmra.mrb[0].mxu0 %v993
    %v1067 = vpop.f32.mrb[0].mxu0
    %v1068 = vadd.f32 %v23, %v1067
    %v1069 = vpop.f32.mrb[0].mxu0
    %1070 = vmatprep.mubr.f32.mxu0 0.0
    %1071 = vmatmul.mubr.f32.gmra.mrb[0].mxu0 %v995
    %v1072 = vpop.f32.mrb[0].mxu0
    %v1073 = vadd.f32 %v24, %v1072
    %v1074 = vpop.f32.mrb[0].mxu0
    %1075 = vdwg.mxu0
    %v1076 = vsel %vm218, %v1068, -inf
    %1077 = vmax.xlane.f32.xlu0 %v1076
    %v1078 = vpop.xlane.xlu0 %1077
    %v1079 = vsel %vm218, %v1073, -inf
    %1080 = vmax.xlane.f32.xlu0 %v1079
    %v1081 = vpop.xlane.xlu0 %1080
    %v1082 = vsub.f32 %v1068, %v1078
    %v1083 = vsub.f32 %v1073, %v1081
    %v1084 = vmul.f32 %v1082, 1.442695
    %v1085 = vpow.pop %v1084
    %v1086 = vmul.f32 %v1083, 1.442695
    %v1087 = vpow.pop %v1086
    %v1088 = vsel %vm218, %v1085, 0.0
    %1089 = vadd.xlane.f32.xlu0 %v1088
    %v1090 = vpop.xlane.xlu0 %1089
    %v1091 = vsel %vm218, %v1087, 0.0
    %1092 = vadd.xlane.f32.xlu0 %v1091
    %v1093 = vpop.xlane.xlu0 %1092
    %v1094 = vrcp.pop %v1090
    %v1095 = vrcp.pop %v1093
    %v1096 = vmul.f32 %v1085, %v1094
    %v1097 = vmul.f32 %v1087, %v1095
    %1098 = vrot.lane.b32.xlu0 %v120, 40
    %v1099 = vpop.permute.xlu0 %1098
    %1100 = vrot.lane.b32.xlu0 %v125, 40
    %v1101 = vpop.permute.xlu0 %1100
    %v1105 = vsel %vm218, %v1096, 0
    %v1108 = vsel %vm218, %v1097, 0
    %1110 = vmatprep.subr.mxu0 0.0
    %1111 = vmatpush1.msra.mxu0 %v1099
    %1112 = vmatprep.subr.mxu0 0.0
    %1113 = vmatpush1.msra.mxu0 %v1101
    %1114 = vmatprep.subr.mxu0 0.0
    %1115 = vmatpush1.msra.mxu0 0.0
    %1116 = vmatprep.subr.mxu0 0.0
    %1117 = vmatpush1.msra.mxu0 0.0
    %1118 = vmatprep.subr.mxu0 0.0
    %1119 = vmatpush1.msra.mxu0 0.0
    %1120 = vmatprep.subr.mxu0 0.0
    %1121 = vmatpush1.msra.mxu0 0.0
    %1122 = vmatprep.subr.mxu0 0.0
    %1123 = vmatpush1.msra.mxu0 0.0
    %1124 = vmatprep.subr.mxu0 0.0
    %1125 = vmatpush1.msra.mxu0 0.0
    %1126 = vmatprep.subr.mxu0 0.0
    %1127 = vmatpush1.msra.mxu0 0.0
    %1128 = vmatprep.subr.mxu0 0.0
    %1129 = vmatpush1.msra.mxu0 0.0
    %1130 = vmatprep.subr.mxu0 0.0
    %1131 = vmatpush1.msra.mxu0 0.0
    %1132 = vmatprep.subr.mxu0 0.0
    %1133 = vmatpush1.msra.mxu0 0.0
    %1134 = vmatprep.subr.mxu0 0.0
    %1135 = vmatpush1.msra.mxu0 0.0
    %1136 = vmatprep.subr.mxu0 0.0
    %1137 = vmatpush1.msra.mxu0 0.0
    %1138 = vmatprep.subr.mxu0 0.0
    %1139 = vmatpush1.msra.mxu0 0.0
    %1140 = vmatprep.subr.mxu0 0.0
    %1141 = vmatpush1.msra.mxu0 0.0
    %1142 = vmatprep.subr.mxu0 0.0
    %1143 = vmatpush1.msra.mxu0 0.0
    %1144 = vmatprep.subr.mxu0 0.0
    %1145 = vmatpush1.msra.mxu0 0.0
    %1146 = vmatprep.subr.mxu0 0.0
    %1147 = vmatpush1.msra.mxu0 0.0
    %1148 = vmatprep.subr.mxu0 0.0
    %1149 = vmatpush1.msra.mxu0 0.0
    %1150 = vmatprep.subr.mxu0 0.0
    %1151 = vmatpush1.msra.mxu0 0.0
    %1152 = vmatprep.subr.mxu0 0.0
    %1153 = vmatpush1.msra.mxu0 0.0
    %1154 = vmatprep.subr.mxu0 0.0
    %1155 = vmatpush1.msra.mxu0 0.0
    %1156 = vmatprep.subr.mxu0 0.0
    %1157 = vmatpush1.msra.mxu0 0.0
    %1158 = vmatprep.subr.mxu0 0.0
    %1159 = vmatpush1.msra.mxu0 0.0
    %1160 = vmatprep.subr.mxu0 0.0
    %1161 = vmatpush1.msra.mxu0 0.0
    %1162 = vmatprep.subr.mxu0 0.0
    %1163 = vmatpush1.msra.mxu0 0.0
    %1164 = vmatprep.subr.mxu0 0.0
    %1165 = vmatpush1.msra.mxu0 0.0
    %1166 = vmatprep.subr.mxu0 0.0
    %1167 = vmatpush1.msra.mxu0 0.0
    %1168 = vmatprep.subr.mxu0 0.0
    %1169 = vmatpush1.msra.mxu0 0.0
    %1170 = vmatprep.subr.mxu0 0.0
    %1171 = vmatpush1.msra.mxu0 0.0
    %1172 = vmatprep.subr.mxu0 0.0
    %1173 = vmatpush1.msra.mxu0 0.0
    %1174 = vmatprep.mubr.f32.mxu0 0.0
    %1175 = vmatmul.mubr.f32.gmra.mrb[0].mxu0 %v1105
    %v1176 = vpop.f32.mrb[0].mxu0
    %v1177 = vadd.f32 0.0, %v1176
    %v1178 = vpop.f32.mrb[0].mxu0
    %1179 = vmatprep.mubr.f32.mxu0 0.0
    %1180 = vmatmul.mubr.f32.gmra.mrb[0].mxu0 %v1108
    %v1181 = vpop.f32.mrb[0].mxu0
    %v1182 = vadd.f32 0.0, %v1181
    %v1183 = vpop.f32.mrb[0].mxu0
    %1184 = vdwg.mxu0
    %1186 = vrot.lane.b32.xlu0 %v28, 32
    %v1187 = vpop.permute.xlu0 %1186
    %v1190 = vsel %vm134, %v1177, 0
    %v1193 = vsel %vm134, %v1182, 0
    %1195 = vmatprep.subr.mxu0 0.0
    %1196 = vmatpush1.msra.mxu0 %v1187
    %1197 = vmatprep.subr.mxu0 0.0
    %1198 = vmatpush1.msra.mxu0 0.0
    %1199 = vmatprep.subr.mxu0 0.0
    %1200 = vmatpush1.msra.mxu0 0.0
    %1201 = vmatprep.subr.mxu0 0.0
    %1202 = vmatpush1.msra.mxu0 0.0
    %1203 = vmatprep.subr.mxu0 0.0
    %1204 = vmatpush1.msra.mxu0 0.0
    %1205 = vmatprep.subr.mxu0 0.0
    %1206 = vmatpush1.msra.mxu0 0.0
    %1207 = vmatprep.subr.mxu0 0.0
    %1208 = vmatpush1.msra.mxu0 0.0
    %1209 = vmatprep.subr.mxu0 0.0
    %1210 = vmatpush1.msra.mxu0 0.0
    %1211 = vmatprep.subr.mxu0 0.0
    %1212 = vmatpush1.msra.mxu0 0.0
    %1213 = vmatprep.subr.mxu0 0.0
    %1214 = vmatpush1.msra.mxu0 0.0
    %1215 = vmatprep.subr.mxu0 0.0
    %1216 = vmatpush1.msra.mxu0 0.0
    %1217 = vmatprep.subr.mxu0 0.0
    %1218 = vmatpush1.msra.mxu0 0.0
    %1219 = vmatprep.subr.mxu0 0.0
    %1220 = vmatpush1.msra.mxu0 0.0
    %1221 = vmatprep.subr.mxu0 0.0
    %1222 = vmatpush1.msra.mxu0 0.0
    %1223 = vmatprep.subr.mxu0 0.0
    %1224 = vmatpush1.msra.mxu0 0.0
    %1225 = vmatprep.subr.mxu0 0.0
    %1226 = vmatpush1.msra.mxu0 0.0
    %1227 = vmatprep.subr.mxu0 0.0
    %1228 = vmatpush1.msra.mxu0 0.0
    %1229 = vmatprep.subr.mxu0 0.0
    %1230 = vmatpush1.msra.mxu0 0.0
    %1231 = vmatprep.subr.mxu0 0.0
    %1232 = vmatpush1.msra.mxu0 0.0
    %1233 = vmatprep.subr.mxu0 0.0
    %1234 = vmatpush1.msra.mxu0 0.0
    %1235 = vmatprep.subr.mxu0 0.0
    %1236 = vmatpush1.msra.mxu0 0.0
    %1237 = vmatprep.subr.mxu0 0.0
    %1238 = vmatpush1.msra.mxu0 0.0
    %1239 = vmatprep.subr.mxu0 0.0
    %1240 = vmatpush1.msra.mxu0 0.0
    %1241 = vmatprep.subr.mxu0 0.0
    %1242 = vmatpush1.msra.mxu0 0.0
    %1243 = vmatprep.subr.mxu0 0.0
    %1244 = vmatpush1.msra.mxu0 0.0
    %1245 = vmatprep.subr.mxu0 0.0
    %1246 = vmatpush1.msra.mxu0 0.0
    %1247 = vmatprep.subr.mxu0 0.0
    %1248 = vmatpush1.msra.mxu0 0.0
    %1249 = vmatprep.subr.mxu0 0.0
    %1250 = vmatpush1.msra.mxu0 0.0
    %1251 = vmatprep.subr.mxu0 0.0
    %1252 = vmatpush1.msra.mxu0 0.0
    %1253 = vmatprep.subr.mxu0 0.0
    %1254 = vmatpush1.msra.mxu0 0.0
    %1255 = vmatprep.subr.mxu0 0.0
    %1256 = vmatpush1.msra.mxu0 0.0
    %1257 = vmatprep.subr.mxu0 0.0
    %1258 = vmatpush1.msra.mxu0 0.0
    %1259 = vmatprep.mubr.f32.mxu0 0.0
    %1260 = vmatmul.mubr.f32.gmra.mrb[0].mxu0 %v1190
    %v1261 = vpop.f32.mrb[0].mxu0
    %v1262 = vadd.f32 0.0, %v1261
    %v1263 = vpop.f32.mrb[0].mxu0
    %1264 = vmatprep.mubr.f32.mxu0 0.0
    %1265 = vmatmul.mubr.f32.gmra.mrb[0].mxu0 %v1193
    %v1266 = vpop.f32.mrb[0].mxu0
    %v1267 = vadd.f32 0.0, %v1266
    %v1268 = vpop.f32.mrb[0].mxu0
    %1269 = vdwg.mxu0
    %v1270 = vadd.f32 %v983, %v1262
    %v1271 = vadd.f32 %v984, %v1267
    %v1272 = vlaneseq
    %v1273 = vshrl.u32 %v1272, 7
    %v1274 = vsub.s32 1, %v1273
    %v1275 = vrot.slane %v41, %v1274
    %v1276 = vadd.f32 %v1270, %v1275
    %v1277 = vadd.f32 %v1271, %v1275
    %v1278 = vadd.f32 %v21, %v1276
    %v1279 = vadd.f32 %v22, %v1277
    %v1280 = vsel %vm46, %v1278, 0.0
    %1281 = vadd.xlane.f32.xlu0 %v1280
    %v1282 = vpop.xlane.xlu0 %1281
    %v1283 = vsel %vm46, %v1279, 0.0
    %1284 = vadd.xlane.f32.xlu0 %v1283
    %v1285 = vpop.xlane.xlu0 %1284
    %v1286 = vrcp.pop 32.0
    %v1287 = vmul.f32 %v1282, %v1286
    %v1288 = vmul.f32 %v1285, %v1286
    %v1289 = vmul.f32 %v1278, %v1278
    %v1290 = vmul.f32 %v1279, %v1279
    %v1291 = vsel %vm46, %v1289, 0.0
    %1292 = vadd.xlane.f32.xlu0 %v1291
    %v1293 = vpop.xlane.xlu0 %1292
    %v1294 = vsel %vm46, %v1290, 0.0
    %1295 = vadd.xlane.f32.xlu0 %v1294
    %v1296 = vpop.xlane.xlu0 %1295
    %v1297 = vmul.f32 %v1293, %v1286
    %v1298 = vmul.f32 %v1296, %v1286
    %v1299 = vmul.f32 %v1287, %v1287
    %v1300 = vmul.f32 %v1288, %v1288
    %v1301 = vsub.f32 %v1297, %v1299
    %v1302 = vsub.f32 %v1298, %v1300
    %v1303 = vmax.f32 %v1301, 0.0
    %v1304 = vmax.f32 %v1302, 0.0
    %v1305 = vsub.f32 %v1278, %v1287
    %v1306 = vsub.f32 %v1279, %v1288
    %v1307 = vadd.f32 %v1303, 1e-05
    %v1308 = vadd.f32 %v1304, 1e-05
    %v1309 = vrsqrt.pop %v1307
    %v1310 = vrsqrt.pop %v1308
    %v1311 = vmul.f32 %v1305, %v1309
    %v1312 = vmul.f32 %v1306, %v1310
    %v1313 = vlaneseq
    %v1314 = vshrl.u32 %v1313, 7
    %v1315 = vsub.s32 4, %v1314
    %v1316 = vrot.slane %v41, %v1315
    %v1317 = vmul.f32 %v1311, %v1316
    %v1318 = vmul.f32 %v1312, %v1316
    %v1319 = vlaneseq
    %v1320 = vshrl.u32 %v1319, 7
    %v1321 = vsub.s32 5, %v1320
    %v1322 = vrot.slane %v41, %v1321
    %v1323 = vadd.f32 %v1317, %v1322
    %v1324 = vadd.f32 %v1318, %v1322
    %v1325 = vlaneseq
    %v1326 = vshrl.u32 %v1325, 7
    %v1327 = vsub.s32 2, %v1326
    %v1328 = vrot.slane %v41, %v1327
    %v1330 = vsel %vm46, %v1323, 0
    %v1333 = vsel %vm46, %v1324, 0
    %1335 = vmatprep.subr.mxu0 0.0
    %1336 = vmatpush1.msra.mxu0 %v29
    %1337 = vmatprep.subr.mxu0 0.0
    %1338 = vmatpush1.msra.mxu0 %v30
    %1339 = vmatprep.subr.mxu0 0.0
    %1340 = vmatpush1.msra.mxu0 %v31
    %1341 = vmatprep.subr.mxu0 0.0
    %1342 = vmatpush1.msra.mxu0 %v32
    %1343 = vmatprep.subr.mxu0 0.0
    %1344 = vmatpush1.msra.mxu0 0.0
    %1345 = vmatprep.subr.mxu0 0.0
    %1346 = vmatpush1.msra.mxu0 0.0
    %1347 = vmatprep.subr.mxu0 0.0
    %1348 = vmatpush1.msra.mxu0 0.0
    %1349 = vmatprep.subr.mxu0 0.0
    %1350 = vmatpush1.msra.mxu0 0.0
    %1351 = vmatprep.subr.mxu0 0.0
    %1352 = vmatpush1.msra.mxu0 0.0
    %1353 = vmatprep.subr.mxu0 0.0
    %1354 = vmatpush1.msra.mxu0 0.0
    %1355 = vmatprep.subr.mxu0 0.0
    %1356 = vmatpush1.msra.mxu0 0.0
    %1357 = vmatprep.subr.mxu0 0.0
    %1358 = vmatpush1.msra.mxu0 0.0
    %1359 = vmatprep.subr.mxu0 0.0
    %1360 = vmatpush1.msra.mxu0 0.0
    %1361 = vmatprep.subr.mxu0 0.0
    %1362 = vmatpush1.msra.mxu0 0.0
    %1363 = vmatprep.subr.mxu0 0.0
    %1364 = vmatpush1.msra.mxu0 0.0
    %1365 = vmatprep.subr.mxu0 0.0
    %1366 = vmatpush1.msra.mxu0 0.0
    %1367 = vmatprep.subr.mxu0 0.0
    %1368 = vmatpush1.msra.mxu0 0.0
    %1369 = vmatprep.subr.mxu0 0.0
    %1370 = vmatpush1.msra.mxu0 0.0
    %1371 = vmatprep.subr.mxu0 0.0
    %1372 = vmatpush1.msra.mxu0 0.0
    %1373 = vmatprep.subr.mxu0 0.0
    %1374 = vmatpush1.msra.mxu0 0.0
    %1375 = vmatprep.subr.mxu0 0.0
    %1376 = vmatpush1.msra.mxu0 0.0
    %1377 = vmatprep.subr.mxu0 0.0
    %1378 = vmatpush1.msra.mxu0 0.0
    %1379 = vmatprep.subr.mxu0 0.0
    %1380 = vmatpush1.msra.mxu0 0.0
    %1381 = vmatprep.subr.mxu0 0.0
    %1382 = vmatpush1.msra.mxu0 0.0
    %1383 = vmatprep.subr.mxu0 0.0
    %1384 = vmatpush1.msra.mxu0 0.0
    %1385 = vmatprep.subr.mxu0 0.0
    %1386 = vmatpush1.msra.mxu0 0.0
    %1387 = vmatprep.subr.mxu0 0.0
    %1388 = vmatpush1.msra.mxu0 0.0
    %1389 = vmatprep.subr.mxu0 0.0
    %1390 = vmatpush1.msra.mxu0 0.0
    %1391 = vmatprep.subr.mxu0 0.0
    %1392 = vmatpush1.msra.mxu0 0.0
    %1393 = vmatprep.subr.mxu0 0.0
    %1394 = vmatpush1.msra.mxu0 0.0
    %1395 = vmatprep.subr.mxu0 0.0
    %1396 = vmatpush1.msra.mxu0 0.0
    %1397 = vmatprep.subr.mxu0 0.0
    %1398 = vmatpush1.msra.mxu0 0.0
    %1399 = vmatprep.mubr.f32.mxu0 0.0
    %1400 = vmatmul.mubr.f32.gmra.mrb[0].mxu0 %v1330
    %v1401 = vpop.f32.mrb[0].mxu0
    %v1402 = vadd.f32 %v1328, %v1401
    %v1403 = vpop.f32.mrb[0].mxu0
    %1404 = vmatprep.mubr.f32.mxu0 0.0
    %1405 = vmatmul.mubr.f32.gmra.mrb[0].mxu0 %v1333
    %v1406 = vpop.f32.mrb[0].mxu0
    %v1407 = vadd.f32 %v1328, %v1406
    %v1408 = vpop.f32.mrb[0].mxu0
    %1409 = vdwg.mxu0
    %v1410 = vmax.f32 %v1402, 0.0
    %v1411 = vmax.f32 %v1407, 0.0
    %vm1412 = vcmask 523264
    %v1414 = vsel %vm1412, %v1410, 0
    %v1417 = vsel %vm1412, %v1411, 0
    %1419 = vmatprep.subr.mxu0 0.0
    %1420 = vmatpush1.msra.mxu0 %v33
    %1421 = vmatprep.subr.mxu0 0.0
    %1422 = vmatpush1.msra.mxu0 %v34
    %1423 = vmatprep.subr.mxu0 0.0
    %1424 = vmatpush1.msra.mxu0 %v35
    %1425 = vmatprep.subr.mxu0 0.0
    %1426 = vmatpush1.msra.mxu0 %v36
    %1427 = vmatprep.subr.mxu0 0.0
    %1428 = vmatpush1.msra.mxu0 %v37
    %1429 = vmatprep.subr.mxu0 0.0
    %1430 = vmatpush1.msra.mxu0 %v38
    %1431 = vmatprep.subr.mxu0 0.0
    %1432 = vmatpush1.msra.mxu0 %v39
    %1433 = vmatprep.subr.mxu0 0.0
    %1434 = vmatpush1.msra.mxu0 %v40
    %1435 = vmatprep.subr.mxu0 0.0
    %1436 = vmatpush1.msra.mxu0 0.0
    %1437 = vmatprep.subr.mxu0 0.0
    %1438 = vmatpush1.msra.mxu0 0.0
    %1439 = vmatprep.subr.mxu0 0.0
    %1440 = vmatpush1.msra.mxu0 0.0
    %1441 = vmatprep.subr.mxu0 0.0
    %1442 = vmatpush1.msra.mxu0 0.0
    %1443 = vmatprep.subr.mxu0 0.0
    %1444 = vmatpush1.msra.mxu0 0.0
    %1445 = vmatprep.subr.mxu0 0.0
    %1446 = vmatpush1.msra.mxu0 0.0
    %1447 = vmatprep.subr.mxu0 0.0
    %1448 = vmatpush1.msra.mxu0 0.0
    %1449 = vmatprep.subr.mxu0 0.0
    %1450 = vmatpush1.msra.mxu0 0.0
    %1451 = vmatprep.subr.mxu0 0.0
    %1452 = vmatpush1.msra.mxu0 0.0
    %1453 = vmatprep.subr.mxu0 0.0
    %1454 = vmatpush1.msra.mxu0 0.0
    %1455 = vmatprep.subr.mxu0 0.0
    %1456 = vmatpush1.msra.mxu0 0.0
    %1457 = vmatprep.subr.mxu0 0.0
    %1458 = vmatpush1.msra.mxu0 0.0
    %1459 = vmatprep.subr.mxu0 0.0
    %1460 = vmatpush1.msra.mxu0 0.0
    %1461 = vmatprep.subr.mxu0 0.0
    %1462 = vmatpush1.msra.mxu0 0.0
    %1463 = vmatprep.subr.mxu0 0.0
    %1464 = vmatpush1.msra.mxu0 0.0
    %1465 = vmatprep.subr.mxu0 0.0
    %1466 = vmatpush1.msra.mxu0 0.0
    %1467 = vmatprep.subr.mxu0 0.0
    %1468 = vmatpush1.msra.mxu0 0.0
    %1469 = vmatprep.subr.mxu0 0.0
    %1470 = vmatpush1.msra.mxu0 0.0
    %1471 = vmatprep.subr.mxu0 0.0
    %1472 = vmatpush1.msra.mxu0 0.0
    %1473 = vmatprep.subr.mxu0 0.0
    %1474 = vmatpush1.msra.mxu0 0.0
    %1475 = vmatprep.subr.mxu0 0.0
    %1476 = vmatpush1.msra.mxu0 0.0
    %1477 = vmatprep.subr.mxu0 0.0
    %1478 = vmatpush1.msra.mxu0 0.0
    %1479 = vmatprep.subr.mxu0 0.0
    %1480 = vmatpush1.msra.mxu0 0.0
    %1481 = vmatprep.subr.mxu0 0.0
    %1482 = vmatpush1.msra.mxu0 0.0
    %1483 = vmatprep.mubr.f32.mxu0 0.0
    %1484 = vmatmul.mubr.f32.gmra.mrb[0].mxu0 %v1414
    %v1485 = vpop.f32.mrb[0].mxu0
    %v1486 = vadd.f32 0.0, %v1485
    %v1487 = vpop.f32.mrb[0].mxu0
    %1488 = vmatprep.mubr.f32.mxu0 0.0
    %1489 = vmatmul.mubr.f32.gmra.mrb[0].mxu0 %v1417
    %v1490 = vpop.f32.mrb[0].mxu0
    %v1491 = vadd.f32 0.0, %v1490
    %v1492 = vpop.f32.mrb[0].mxu0
    %1493 = vdwg.mxu0
    %v1494 = vlaneseq
    %v1495 = vshrl.u32 %v1494, 7
    %v1496 = vsub.s32 3, %v1495
    %v1497 = vrot.slane %v41, %v1496
    %v1498 = vadd.f32 %v1486, %v1497
    %v1499 = vadd.f32 %v1491, %v1497
    %v1500 = vadd.f32 %v1323, %v1498
    %v1501 = vadd.f32 %v1324, %v1499
    %v1502 = vsel %vm46, %v1500, 0.0
    %1503 = vadd.xlane.f32.xlu0 %v1502
    %v1504 = vpop.xlane.xlu0 %1503
    %v1505 = vsel %vm46, %v1501, 0.0
    %1506 = vadd.xlane.f32.xlu0 %v1505
    %v1507 = vpop.xlane.xlu0 %1506
    %v1508 = vmul.f32 %v1504, %v1286
    %v1509 = vmul.f32 %v1507, %v1286
    %v1510 = vmul.f32 %v1500, %v1500
    %v1511 = vmul.f32 %v1501, %v1501
    %v1512 = vsel %vm46, %v1510, 0.0
    %1513 = vadd.xlane.f32.xlu0 %v1512
    %v1514 = vpop.xlane.xlu0 %1513
    %v1515 = vsel %vm46, %v1511, 0.0
    %1516 = vadd.xlane.f32.xlu0 %v1515
    %v1517 = vpop.xlane.xlu0 %1516
    %v1518 = vmul.f32 %v1514, %v1286
    %v1519 = vmul.f32 %v1517, %v1286
    %v1520 = vmul.f32 %v1508, %v1508
    %v1521 = vmul.f32 %v1509, %v1509
    %v1522 = vsub.f32 %v1518, %v1520
    %v1523 = vsub.f32 %v1519, %v1521
    %v1524 = vmax.f32 %v1522, 0.0
    %v1525 = vmax.f32 %v1523, 0.0
    %v1526 = vsub.f32 %v1500, %v1508
    %v1527 = vsub.f32 %v1501, %v1509
    %v1528 = vadd.f32 %v1524, 1e-05
    %v1529 = vadd.f32 %v1525, 1e-05
    %v1530 = vrsqrt.pop %v1528
    %v1531 = vrsqrt.pop %v1529
    %v1532 = vmul.f32 %v1526, %v1530
    %v1533 = vmul.f32 %v1527, %v1531
    %v1534 = vlaneseq
    %v1535 = vshrl.u32 %v1534, 7
    %v1536 = vsub.s32 6, %v1535
    %v1537 = vrot.slane %v41, %v1536
    %v1538 = vmul.f32 %v1532, %v1537
    %v1539 = vmul.f32 %v1533, %v1537
    %v1540 = vlaneseq
    %v1541 = vshrl.u32 %v1540, 7
    %v1542 = vsub.s32 7, %v1541
    %v1543 = vrot.slane %v41, %v1542
    %v1544 = vadd.f32 %v1538, %v1543
    %v1545 = vadd.f32 %v1539, %v1543
    %s1546 = scalar_lea.vmem %s2, 32
    %v1547 = vld [vmem:[%s1546] sm:$0xff]
    %v1548 = vld [vmem:[%s1546 + $0x8] sm:$0xff]
    %v1549 = vld [vmem:[%s1546 + $0x10] sm:$0xff]
    %v1550 = vld [vmem:[%s1546 + $0x18] sm:$0xff]
    %s1551 = scalar_lea.vmem %s3, 96
    %v1552 = vld [vmem:[%s1551] sm:$0xff]
    %v1553 = vld [vmem:[%s1551 + $0x8] sm:$0xff]
    %v1554 = vld [vmem:[%s1551 + $0x10] sm:$0xff]
    %v1555 = vld [vmem:[%s1551 + $0x18] sm:$0xff]
    %v1556 = vld [vmem:[%s1551 + $0x20] sm:$0xff]
    %v1557 = vld [vmem:[%s1551 + $0x28] sm:$0xff]
    %v1558 = vld [vmem:[%s1551 + $0x30] sm:$0xff]
    %v1559 = vld [vmem:[%s1551 + $0x38] sm:$0xff]
    %v1560 = vld [vmem:[%s1551 + $0x40] sm:$0xff]
    %v1561 = vld [vmem:[%s1551 + $0x48] sm:$0xff]
    %v1562 = vld [vmem:[%s1551 + $0x50] sm:$0xff]
    %v1563 = vld [vmem:[%s1551 + $0x58] sm:$0xff]
    %s1564 = scalar_lea.vmem %s4, 8
    %v1565 = vld [vmem:[%s1564] sm:$0xff]
    %v1566 = vlaneseq
    %v1567 = vshrl.u32 %v1566, 7
    %v1568 = vsub.s32 0, %v1567
    %v1569 = vrot.slane %v1565, %v1568
    %v1571 = vsel %vm46, %v1544, 0
    %v1574 = vsel %vm46, %v1545, 0
    %1576 = vmatprep.subr.mxu0 0.0
    %1577 = vmatpush1.msra.mxu0 %v1547
    %1578 = vmatprep.subr.mxu0 0.0
    %1579 = vmatpush1.msra.mxu0 %v1548
    %1580 = vmatprep.subr.mxu0 0.0
    %1581 = vmatpush1.msra.mxu0 %v1549
    %1582 = vmatprep.subr.mxu0 0.0
    %1583 = vmatpush1.msra.mxu0 %v1550
    %1584 = vmatprep.subr.mxu0 0.0
    %1585 = vmatpush1.msra.mxu0 0.0
    %1586 = vmatprep.subr.mxu0 0.0
    %1587 = vmatpush1.msra.mxu0 0.0
    %1588 = vmatprep.subr.mxu0 0.0
    %1589 = vmatpush1.msra.mxu0 0.0
    %1590 = vmatprep.subr.mxu0 0.0
    %1591 = vmatpush1.msra.mxu0 0.0
    %1592 = vmatprep.subr.mxu0 0.0
    %1593 = vmatpush1.msra.mxu0 0.0
    %1594 = vmatprep.subr.mxu0 0.0
    %1595 = vmatpush1.msra.mxu0 0.0
    %1596 = vmatprep.subr.mxu0 0.0
    %1597 = vmatpush1.msra.mxu0 0.0
    %1598 = vmatprep.subr.mxu0 0.0
    %1599 = vmatpush1.msra.mxu0 0.0
    %1600 = vmatprep.subr.mxu0 0.0
    %1601 = vmatpush1.msra.mxu0 0.0
    %1602 = vmatprep.subr.mxu0 0.0
    %1603 = vmatpush1.msra.mxu0 0.0
    %1604 = vmatprep.subr.mxu0 0.0
    %1605 = vmatpush1.msra.mxu0 0.0
    %1606 = vmatprep.subr.mxu0 0.0
    %1607 = vmatpush1.msra.mxu0 0.0
    %1608 = vmatprep.subr.mxu0 0.0
    %1609 = vmatpush1.msra.mxu0 0.0
    %1610 = vmatprep.subr.mxu0 0.0
    %1611 = vmatpush1.msra.mxu0 0.0
    %1612 = vmatprep.subr.mxu0 0.0
    %1613 = vmatpush1.msra.mxu0 0.0
    %1614 = vmatprep.subr.mxu0 0.0
    %1615 = vmatpush1.msra.mxu0 0.0
    %1616 = vmatprep.subr.mxu0 0.0
    %1617 = vmatpush1.msra.mxu0 0.0
    %1618 = vmatprep.subr.mxu0 0.0
    %1619 = vmatpush1.msra.mxu0 0.0
    %1620 = vmatprep.subr.mxu0 0.0
    %1621 = vmatpush1.msra.mxu0 0.0
    %1622 = vmatprep.subr.mxu0 0.0
    %1623 = vmatpush1.msra.mxu0 0.0
    %1624 = vmatprep.subr.mxu0 0.0
    %1625 = vmatpush1.msra.mxu0 0.0
    %1626 = vmatprep.subr.mxu0 0.0
    %1627 = vmatpush1.msra.mxu0 0.0
    %1628 = vmatprep.subr.mxu0 0.0
    %1629 = vmatpush1.msra.mxu0 0.0
    %1630 = vmatprep.subr.mxu0 0.0
    %1631 = vmatpush1.msra.mxu0 0.0
    %1632 = vmatprep.subr.mxu0 0.0
    %1633 = vmatpush1.msra.mxu0 0.0
    %1634 = vmatprep.subr.mxu0 0.0
    %1635 = vmatpush1.msra.mxu0 0.0
    %1636 = vmatprep.subr.mxu0 0.0
    %1637 = vmatpush1.msra.mxu0 0.0
    %1638 = vmatprep.subr.mxu0 0.0
    %1639 = vmatpush1.msra.mxu0 0.0
    %1640 = vmatprep.mubr.f32.mxu0 0.0
    %1641 = vmatmul.mubr.f32.gmra.mrb[0].mxu0 %v1571
    %v1642 = vpop.f32.mrb[0].mxu0
    %v1643 = vadd.f32 %v1569, %v1642
    %v1644 = vpop.f32.mrb[0].mxu0
    %1645 = vmatprep.mubr.f32.mxu0 0.0
    %1646 = vmatmul.mubr.f32.gmra.mrb[0].mxu0 %v1574
    %v1647 = vpop.f32.mrb[0].mxu0
    %v1648 = vadd.f32 %v1569, %v1647
    %v1649 = vpop.f32.mrb[0].mxu0
    %1650 = vdwg.mxu0
    %1653 = vrot.lane.b32.xlu0 %v1643, 96
    %v1654 = vpop.permute.xlu0 %1653
    %1655 = vrot.lane.b32.xlu0 %v1648, 96
    %v1656 = vpop.permute.xlu0 %1655
    %v1657 = vsel %vm134, %v1643, 0
    %v1659 = vsel %vm134, %v1648, 0
    %v1661 = vsel %vm134, %v1654, 0
    %v1663 = vsel %vm134, %v1656, 0
    %1665 = vmatprep.subr.mxu0 0.0
    %1666 = vmatpush1.xpose.msra.mxu0 %v1661
    %1667 = vmatprep.subr.mxu0 0.0
    %1668 = vmatpush1.xpose.msra.mxu0 %v1663
    %1669 = vmatprep.subr.mxu0 0.0
    %1670 = vmatpush1.xpose.msra.mxu0 0.0
    %1671 = vmatprep.subr.mxu0 0.0
    %1672 = vmatpush1.xpose.msra.mxu0 0.0
    %1673 = vmatprep.subr.mxu0 0.0
    %1674 = vmatpush1.xpose.msra.mxu0 0.0
    %1675 = vmatprep.subr.mxu0 0.0
    %1676 = vmatpush1.xpose.msra.mxu0 0.0
    %1677 = vmatprep.subr.mxu0 0.0
    %1678 = vmatpush1.xpose.msra.mxu0 0.0
    %1679 = vmatprep.subr.mxu0 0.0
    %1680 = vmatpush1.xpose.msra.mxu0 0.0
    %1681 = vmatprep.subr.mxu0 0.0
    %1682 = vmatpush1.xpose.msra.mxu0 0.0
    %1683 = vmatprep.subr.mxu0 0.0
    %1684 = vmatpush1.xpose.msra.mxu0 0.0
    %1685 = vmatprep.subr.mxu0 0.0
    %1686 = vmatpush1.xpose.msra.mxu0 0.0
    %1687 = vmatprep.subr.mxu0 0.0
    %1688 = vmatpush1.xpose.msra.mxu0 0.0
    %1689 = vmatprep.subr.mxu0 0.0
    %1690 = vmatpush1.xpose.msra.mxu0 0.0
    %1691 = vmatprep.subr.mxu0 0.0
    %1692 = vmatpush1.xpose.msra.mxu0 0.0
    %1693 = vmatprep.subr.mxu0 0.0
    %1694 = vmatpush1.xpose.msra.mxu0 0.0
    %1695 = vmatprep.subr.mxu0 0.0
    %1696 = vmatpush1.xpose.msra.mxu0 0.0
    %1697 = vmatprep.subr.mxu0 0.0
    %1698 = vmatpush1.xpose.msra.mxu0 0.0
    %1699 = vmatprep.subr.mxu0 0.0
    %1700 = vmatpush1.xpose.msra.mxu0 0.0
    %1701 = vmatprep.subr.mxu0 0.0
    %1702 = vmatpush1.xpose.msra.mxu0 0.0
    %1703 = vmatprep.subr.mxu0 0.0
    %1704 = vmatpush1.xpose.msra.mxu0 0.0
    %1705 = vmatprep.subr.mxu0 0.0
    %1706 = vmatpush1.xpose.msra.mxu0 0.0
    %1707 = vmatprep.subr.mxu0 0.0
    %1708 = vmatpush1.xpose.msra.mxu0 0.0
    %1709 = vmatprep.subr.mxu0 0.0
    %1710 = vmatpush1.xpose.msra.mxu0 0.0
    %1711 = vmatprep.subr.mxu0 0.0
    %1712 = vmatpush1.xpose.msra.mxu0 0.0
    %1713 = vmatprep.subr.mxu0 0.0
    %1714 = vmatpush1.xpose.msra.mxu0 0.0
    %1715 = vmatprep.subr.mxu0 0.0
    %1716 = vmatpush1.xpose.msra.mxu0 0.0
    %1717 = vmatprep.subr.mxu0 0.0
    %1718 = vmatpush1.xpose.msra.mxu0 0.0
    %1719 = vmatprep.subr.mxu0 0.0
    %1720 = vmatpush1.xpose.msra.mxu0 0.0
    %1721 = vmatprep.subr.mxu0 0.0
    %1722 = vmatpush1.xpose.msra.mxu0 0.0
    %1723 = vmatprep.subr.mxu0 0.0
    %1724 = vmatpush1.xpose.msra.mxu0 0.0
    %1725 = vmatprep.subr.mxu0 0.0
    %1726 = vmatpush1.xpose.msra.mxu0 0.0
    %1727 = vmatprep.subr.mxu0 0.0
    %1728 = vmatpush1.xpose.msra.mxu0 0.0
    %1729 = vmatprep.mubr.f32.mxu0 0.0
    %1730 = vmatmul.mubr.f32.gmra.mrb[0].mxu0 %v1657
    %v1731 = vpop.f32.mrb[0].mxu0
    %v1732 = vadd.f32 %v23, %v1731
    %v1733 = vpop.f32.mrb[0].mxu0
    %1734 = vmatprep.mubr.f32.mxu0 0.0
    %1735 = vmatmul.mubr.f32.gmra.mrb[0].mxu0 %v1659
    %v1736 = vpop.f32.mrb[0].mxu0
    %v1737 = vadd.f32 %v24, %v1736
    %v1738 = vpop.f32.mrb[0].mxu0
    %1739 = vdwg.mxu0
    %v1740 = vsel %vm218, %v1732, -inf
    %1741 = vmax.xlane.f32.xlu0 %v1740
    %v1742 = vpop.xlane.xlu0 %1741
    %v1743 = vsel %vm218, %v1737, -inf
    %1744 = vmax.xlane.f32.xlu0 %v1743
    %v1745 = vpop.xlane.xlu0 %1744
    %v1746 = vsub.f32 %v1732, %v1742
    %v1747 = vsub.f32 %v1737, %v1745
    %v1748 = vmul.f32 %v1746, 1.442695
    %v1749 = vpow.pop %v1748
    %v1750 = vmul.f32 %v1747, 1.442695
    %v1751 = vpow.pop %v1750
    %v1752 = vsel %vm218, %v1749, 0.0
    %1753 = vadd.xlane.f32.xlu0 %v1752
    %v1754 = vpop.xlane.xlu0 %1753
    %v1755 = vsel %vm218, %v1751, 0.0
    %1756 = vadd.xlane.f32.xlu0 %v1755
    %v1757 = vpop.xlane.xlu0 %1756
    %v1758 = vrcp.pop %v1754
    %v1759 = vrcp.pop %v1757
    %v1760 = vmul.f32 %v1749, %v1758
    %v1761 = vmul.f32 %v1751, %v1759
    %1762 = vrot.lane.b32.xlu0 %v1643, 64
    %v1763 = vpop.permute.xlu0 %1762
    %1764 = vrot.lane.b32.xlu0 %v1648, 64
    %v1765 = vpop.permute.xlu0 %1764
    %v1769 = vsel %vm218, %v1760, 0
    %v1772 = vsel %vm218, %v1761, 0
    %1774 = vmatprep.subr.mxu0 0.0
    %1775 = vmatpush1.msra.mxu0 %v1763
    %1776 = vmatprep.subr.mxu0 0.0
    %1777 = vmatpush1.msra.mxu0 %v1765
    %1778 = vmatprep.subr.mxu0 0.0
    %1779 = vmatpush1.msra.mxu0 0.0
    %1780 = vmatprep.subr.mxu0 0.0
    %1781 = vmatpush1.msra.mxu0 0.0
    %1782 = vmatprep.subr.mxu0 0.0
    %1783 = vmatpush1.msra.mxu0 0.0
    %1784 = vmatprep.subr.mxu0 0.0
    %1785 = vmatpush1.msra.mxu0 0.0
    %1786 = vmatprep.subr.mxu0 0.0
    %1787 = vmatpush1.msra.mxu0 0.0
    %1788 = vmatprep.subr.mxu0 0.0
    %1789 = vmatpush1.msra.mxu0 0.0
    %1790 = vmatprep.subr.mxu0 0.0
    %1791 = vmatpush1.msra.mxu0 0.0
    %1792 = vmatprep.subr.mxu0 0.0
    %1793 = vmatpush1.msra.mxu0 0.0
    %1794 = vmatprep.subr.mxu0 0.0
    %1795 = vmatpush1.msra.mxu0 0.0
    %1796 = vmatprep.subr.mxu0 0.0
    %1797 = vmatpush1.msra.mxu0 0.0
    %1798 = vmatprep.subr.mxu0 0.0
    %1799 = vmatpush1.msra.mxu0 0.0
    %1800 = vmatprep.subr.mxu0 0.0
    %1801 = vmatpush1.msra.mxu0 0.0
    %1802 = vmatprep.subr.mxu0 0.0
    %1803 = vmatpush1.msra.mxu0 0.0
    %1804 = vmatprep.subr.mxu0 0.0
    %1805 = vmatpush1.msra.mxu0 0.0
    %1806 = vmatprep.subr.mxu0 0.0
    %1807 = vmatpush1.msra.mxu0 0.0
    %1808 = vmatprep.subr.mxu0 0.0
    %1809 = vmatpush1.msra.mxu0 0.0
    %1810 = vmatprep.subr.mxu0 0.0
    %1811 = vmatpush1.msra.mxu0 0.0
    %1812 = vmatprep.subr.mxu0 0.0
    %1813 = vmatpush1.msra.mxu0 0.0
    %1814 = vmatprep.subr.mxu0 0.0
    %1815 = vmatpush1.msra.mxu0 0.0
    %1816 = vmatprep.subr.mxu0 0.0
    %1817 = vmatpush1.msra.mxu0 0.0
    %1818 = vmatprep.subr.mxu0 0.0
    %1819 = vmatpush1.msra.mxu0 0.0
    %1820 = vmatprep.subr.mxu0 0.0
    %1821 = vmatpush1.msra.mxu0 0.0
    %1822 = vmatprep.subr.mxu0 0.0
    %1823 = vmatpush1.msra.mxu0 0.0
    %1824 = vmatprep.subr.mxu0 0.0
    %1825 = vmatpush1.msra.mxu0 0.0
    %1826 = vmatprep.subr.mxu0 0.0
    %1827 = vmatpush1.msra.mxu0 0.0
    %1828 = vmatprep.subr.mxu0 0.0
    %1829 = vmatpush1.msra.mxu0 0.0
    %1830 = vmatprep.subr.mxu0 0.0
    %1831 = vmatpush1.msra.mxu0 0.0
    %1832 = vmatprep.subr.mxu0 0.0
    %1833 = vmatpush1.msra.mxu0 0.0
    %1834 = vmatprep.subr.mxu0 0.0
    %1835 = vmatpush1.msra.mxu0 0.0
    %1836 = vmatprep.subr.mxu0 0.0
    %1837 = vmatpush1.msra.mxu0 0.0
    %1838 = vmatprep.mubr.f32.mxu0 0.0
    %1839 = vmatmul.mubr.f32.gmra.mrb[0].mxu0 %v1769
    %v1840 = vpop.f32.mrb[0].mxu0
    %v1841 = vadd.f32 0.0, %v1840
    %v1842 = vpop.f32.mrb[0].mxu0
    %1843 = vmatprep.mubr.f32.mxu0 0.0
    %1844 = vmatmul.mubr.f32.gmra.mrb[0].mxu0 %v1772
    %v1845 = vpop.f32.mrb[0].mxu0
    %v1846 = vadd.f32 0.0, %v1845
    %v1847 = vpop.f32.mrb[0].mxu0
    %1848 = vdwg.mxu0
    %1849 = vrot.lane.b32.xlu0 %v1643, 120
    %v1850 = vpop.permute.xlu0 %1849
    %1851 = vrot.lane.b32.xlu0 %v1648, 120
    %v1852 = vpop.permute.xlu0 %1851
    %1853 = vrot.lane.b32.xlu0 %v1643, 88
    %v1854 = vpop.permute.xlu0 %1853
    %1855 = vrot.lane.b32.xlu0 %v1648, 88
    %v1856 = vpop.permute.xlu0 %1855
    %v1857 = vsel %vm134, %v1850, 0
    %v1859 = vsel %vm134, %v1852, 0
    %v1861 = vsel %vm134, %v1854, 0
    %v1863 = vsel %vm134, %v1856, 0
    %1865 = vmatprep.subr.mxu0 0.0
    %1866 = vmatpush1.xpose.msra.mxu0 %v1861
    %1867 = vmatprep.subr.mxu0 0.0
    %1868 = vmatpush1.xpose.msra.mxu0 %v1863
    %1869 = vmatprep.subr.mxu0 0.0
    %1870 = vmatpush1.xpose.msra.mxu0 0.0
    %1871 = vmatprep.subr.mxu0 0.0
    %1872 = vmatpush1.xpose.msra.mxu0 0.0
    %1873 = vmatprep.subr.mxu0 0.0
    %1874 = vmatpush1.xpose.msra.mxu0 0.0
    %1875 = vmatprep.subr.mxu0 0.0
    %1876 = vmatpush1.xpose.msra.mxu0 0.0
    %1877 = vmatprep.subr.mxu0 0.0
    %1878 = vmatpush1.xpose.msra.mxu0 0.0
    %1879 = vmatprep.subr.mxu0 0.0
    %1880 = vmatpush1.xpose.msra.mxu0 0.0
    %1881 = vmatprep.subr.mxu0 0.0
    %1882 = vmatpush1.xpose.msra.mxu0 0.0
    %1883 = vmatprep.subr.mxu0 0.0
    %1884 = vmatpush1.xpose.msra.mxu0 0.0
    %1885 = vmatprep.subr.mxu0 0.0
    %1886 = vmatpush1.xpose.msra.mxu0 0.0
    %1887 = vmatprep.subr.mxu0 0.0
    %1888 = vmatpush1.xpose.msra.mxu0 0.0
    %1889 = vmatprep.subr.mxu0 0.0
    %1890 = vmatpush1.xpose.msra.mxu0 0.0
    %1891 = vmatprep.subr.mxu0 0.0
    %1892 = vmatpush1.xpose.msra.mxu0 0.0
    %1893 = vmatprep.subr.mxu0 0.0
    %1894 = vmatpush1.xpose.msra.mxu0 0.0
    %1895 = vmatprep.subr.mxu0 0.0
    %1896 = vmatpush1.xpose.msra.mxu0 0.0
    %1897 = vmatprep.subr.mxu0 0.0
    %1898 = vmatpush1.xpose.msra.mxu0 0.0
    %1899 = vmatprep.subr.mxu0 0.0
    %1900 = vmatpush1.xpose.msra.mxu0 0.0
    %1901 = vmatprep.subr.mxu0 0.0
    %1902 = vmatpush1.xpose.msra.mxu0 0.0
    %1903 = vmatprep.subr.mxu0 0.0
    %1904 = vmatpush1.xpose.msra.mxu0 0.0
    %1905 = vmatprep.subr.mxu0 0.0
    %1906 = vmatpush1.xpose.msra.mxu0 0.0
    %1907 = vmatprep.subr.mxu0 0.0
    %1908 = vmatpush1.xpose.msra.mxu0 0.0
    %1909 = vmatprep.subr.mxu0 0.0
    %1910 = vmatpush1.xpose.msra.mxu0 0.0
    %1911 = vmatprep.subr.mxu0 0.0
    %1912 = vmatpush1.xpose.msra.mxu0 0.0
    %1913 = vmatprep.subr.mxu0 0.0
    %1914 = vmatpush1.xpose.msra.mxu0 0.0
    %1915 = vmatprep.subr.mxu0 0.0
    %1916 = vmatpush1.xpose.msra.mxu0 0.0
    %1917 = vmatprep.subr.mxu0 0.0
    %1918 = vmatpush1.xpose.msra.mxu0 0.0
    %1919 = vmatprep.subr.mxu0 0.0
    %1920 = vmatpush1.xpose.msra.mxu0 0.0
    %1921 = vmatprep.subr.mxu0 0.0
    %1922 = vmatpush1.xpose.msra.mxu0 0.0
    %1923 = vmatprep.subr.mxu0 0.0
    %1924 = vmatpush1.xpose.msra.mxu0 0.0
    %1925 = vmatprep.subr.mxu0 0.0
    %1926 = vmatpush1.xpose.msra.mxu0 0.0
    %1927 = vmatprep.subr.mxu0 0.0
    %1928 = vmatpush1.xpose.msra.mxu0 0.0
    %1929 = vmatprep.mubr.f32.mxu0 0.0
    %1930 = vmatmul.mubr.f32.gmra.mrb[0].mxu0 %v1857
    %v1931 = vpop.f32.mrb[0].mxu0
    %v1932 = vadd.f32 %v23, %v1931
    %v1933 = vpop.f32.mrb[0].mxu0
    %1934 = vmatprep.mubr.f32.mxu0 0.0
    %1935 = vmatmul.mubr.f32.gmra.mrb[0].mxu0 %v1859
    %v1936 = vpop.f32.mrb[0].mxu0
    %v1937 = vadd.f32 %v24, %v1936
    %v1938 = vpop.f32.mrb[0].mxu0
    %1939 = vdwg.mxu0
    %v1940 = vsel %vm218, %v1932, -inf
    %1941 = vmax.xlane.f32.xlu0 %v1940
    %v1942 = vpop.xlane.xlu0 %1941
    %v1943 = vsel %vm218, %v1937, -inf
    %1944 = vmax.xlane.f32.xlu0 %v1943
    %v1945 = vpop.xlane.xlu0 %1944
    %v1946 = vsub.f32 %v1932, %v1942
    %v1947 = vsub.f32 %v1937, %v1945
    %v1948 = vmul.f32 %v1946, 1.442695
    %v1949 = vpow.pop %v1948
    %v1950 = vmul.f32 %v1947, 1.442695
    %v1951 = vpow.pop %v1950
    %v1952 = vsel %vm218, %v1949, 0.0
    %1953 = vadd.xlane.f32.xlu0 %v1952
    %v1954 = vpop.xlane.xlu0 %1953
    %v1955 = vsel %vm218, %v1951, 0.0
    %1956 = vadd.xlane.f32.xlu0 %v1955
    %v1957 = vpop.xlane.xlu0 %1956
    %v1958 = vrcp.pop %v1954
    %v1959 = vrcp.pop %v1957
    %v1960 = vmul.f32 %v1949, %v1958
    %v1961 = vmul.f32 %v1951, %v1959
    %1962 = vrot.lane.b32.xlu0 %v1643, 56
    %v1963 = vpop.permute.xlu0 %1962
    %1964 = vrot.lane.b32.xlu0 %v1648, 56
    %v1965 = vpop.permute.xlu0 %1964
    %v1969 = vsel %vm218, %v1960, 0
    %v1972 = vsel %vm218, %v1961, 0
    %1974 = vmatprep.subr.mxu0 0.0
    %1975 = vmatpush1.msra.mxu0 %v1963
    %1976 = vmatprep.subr.mxu0 0.0
    %1977 = vmatpush1.msra.mxu0 %v1965
    %1978 = vmatprep.subr.mxu0 0.0
    %1979 = vmatpush1.msra.mxu0 0.0
    %1980 = vmatprep.subr.mxu0 0.0
    %1981 = vmatpush1.msra.mxu0 0.0
    %1982 = vmatprep.subr.mxu0 0.0
    %1983 = vmatpush1.msra.mxu0 0.0
    %1984 = vmatprep.subr.mxu0 0.0
    %1985 = vmatpush1.msra.mxu0 0.0
    %1986 = vmatprep.subr.mxu0 0.0
    %1987 = vmatpush1.msra.mxu0 0.0
    %1988 = vmatprep.subr.mxu0 0.0
    %1989 = vmatpush1.msra.mxu0 0.0
    %1990 = vmatprep.subr.mxu0 0.0
    %1991 = vmatpush1.msra.mxu0 0.0
    %1992 = vmatprep.subr.mxu0 0.0
    %1993 = vmatpush1.msra.mxu0 0.0
    %1994 = vmatprep.subr.mxu0 0.0
    %1995 = vmatpush1.msra.mxu0 0.0
    %1996 = vmatprep.subr.mxu0 0.0
    %1997 = vmatpush1.msra.mxu0 0.0
    %1998 = vmatprep.subr.mxu0 0.0
    %1999 = vmatpush1.msra.mxu0 0.0
    %2000 = vmatprep.subr.mxu0 0.0
    %2001 = vmatpush1.msra.mxu0 0.0
    %2002 = vmatprep.subr.mxu0 0.0
    %2003 = vmatpush1.msra.mxu0 0.0
    %2004 = vmatprep.subr.mxu0 0.0
    %2005 = vmatpush1.msra.mxu0 0.0
    %2006 = vmatprep.subr.mxu0 0.0
    %2007 = vmatpush1.msra.mxu0 0.0
    %2008 = vmatprep.subr.mxu0 0.0
    %2009 = vmatpush1.msra.mxu0 0.0
    %2010 = vmatprep.subr.mxu0 0.0
    %2011 = vmatpush1.msra.mxu0 0.0
    %2012 = vmatprep.subr.mxu0 0.0
    %2013 = vmatpush1.msra.mxu0 0.0
    %2014 = vmatprep.subr.mxu0 0.0
    %2015 = vmatpush1.msra.mxu0 0.0
    %2016 = vmatprep.subr.mxu0 0.0
    %2017 = vmatpush1.msra.mxu0 0.0
    %2018 = vmatprep.subr.mxu0 0.0
    %2019 = vmatpush1.msra.mxu0 0.0
    %2020 = vmatprep.subr.mxu0 0.0
    %2021 = vmatpush1.msra.mxu0 0.0
    %2022 = vmatprep.subr.mxu0 0.0
    %2023 = vmatpush1.msra.mxu0 0.0
    %2024 = vmatprep.subr.mxu0 0.0
    %2025 = vmatpush1.msra.mxu0 0.0
    %2026 = vmatprep.subr.mxu0 0.0
    %2027 = vmatpush1.msra.mxu0 0.0
    %2028 = vmatprep.subr.mxu0 0.0
    %2029 = vmatpush1.msra.mxu0 0.0
    %2030 = vmatprep.subr.mxu0 0.0
    %2031 = vmatpush1.msra.mxu0 0.0
    %2032 = vmatprep.subr.mxu0 0.0
    %2033 = vmatpush1.msra.mxu0 0.0
    %2034 = vmatprep.subr.mxu0 0.0
    %2035 = vmatpush1.msra.mxu0 0.0
    %2036 = vmatprep.subr.mxu0 0.0
    %2037 = vmatpush1.msra.mxu0 0.0
    %2038 = vmatprep.mubr.f32.mxu0 0.0
    %2039 = vmatmul.mubr.f32.gmra.mrb[0].mxu0 %v1969
    %v2040 = vpop.f32.mrb[0].mxu0
    %v2041 = vadd.f32 0.0, %v2040
    %v2042 = vpop.f32.mrb[0].mxu0
    %2043 = vmatprep.mubr.f32.mxu0 0.0
    %2044 = vmatmul.mubr.f32.gmra.mrb[0].mxu0 %v1972
    %v2045 = vpop.f32.mrb[0].mxu0
    %v2046 = vadd.f32 0.0, %v2045
    %v2047 = vpop.f32.mrb[0].mxu0
    %2048 = vdwg.mxu0
    %2050 = vrot.lane.b32.xlu0 %v1548, 32
    %v2051 = vpop.permute.xlu0 %2050
    %v2054 = vsel %vm134, %v2041, 0
    %v2057 = vsel %vm134, %v2046, 0
    %2059 = vmatprep.subr.mxu0 0.0
    %2060 = vmatpush1.msra.mxu0 %v2051
    %2061 = vmatprep.subr.mxu0 0.0
    %2062 = vmatpush1.msra.mxu0 0.0
    %2063 = vmatprep.subr.mxu0 0.0
    %2064 = vmatpush1.msra.mxu0 0.0
    %2065 = vmatprep.subr.mxu0 0.0
    %2066 = vmatpush1.msra.mxu0 0.0
    %2067 = vmatprep.subr.mxu0 0.0
    %2068 = vmatpush1.msra.mxu0 0.0
    %2069 = vmatprep.subr.mxu0 0.0
    %2070 = vmatpush1.msra.mxu0 0.0
    %2071 = vmatprep.subr.mxu0 0.0
    %2072 = vmatpush1.msra.mxu0 0.0
    %2073 = vmatprep.subr.mxu0 0.0
    %2074 = vmatpush1.msra.mxu0 0.0
    %2075 = vmatprep.subr.mxu0 0.0
    %2076 = vmatpush1.msra.mxu0 0.0
    %2077 = vmatprep.subr.mxu0 0.0
    %2078 = vmatpush1.msra.mxu0 0.0
    %2079 = vmatprep.subr.mxu0 0.0
    %2080 = vmatpush1.msra.mxu0 0.0
    %2081 = vmatprep.subr.mxu0 0.0
    %2082 = vmatpush1.msra.mxu0 0.0
    %2083 = vmatprep.subr.mxu0 0.0
    %2084 = vmatpush1.msra.mxu0 0.0
    %2085 = vmatprep.subr.mxu0 0.0
    %2086 = vmatpush1.msra.mxu0 0.0
    %2087 = vmatprep.subr.mxu0 0.0
    %2088 = vmatpush1.msra.mxu0 0.0
    %2089 = vmatprep.subr.mxu0 0.0
    %2090 = vmatpush1.msra.mxu0 0.0
    %2091 = vmatprep.subr.mxu0 0.0
    %2092 = vmatpush1.msra.mxu0 0.0
    %2093 = vmatprep.subr.mxu0 0.0
    %2094 = vmatpush1.msra.mxu0 0.0
    %2095 = vmatprep.subr.mxu0 0.0
    %2096 = vmatpush1.msra.mxu0 0.0
    %2097 = vmatprep.subr.mxu0 0.0
    %2098 = vmatpush1.msra.mxu0 0.0
    %2099 = vmatprep.subr.mxu0 0.0
    %2100 = vmatpush1.msra.mxu0 0.0
    %2101 = vmatprep.subr.mxu0 0.0
    %2102 = vmatpush1.msra.mxu0 0.0
    %2103 = vmatprep.subr.mxu0 0.0
    %2104 = vmatpush1.msra.mxu0 0.0
    %2105 = vmatprep.subr.mxu0 0.0
    %2106 = vmatpush1.msra.mxu0 0.0
    %2107 = vmatprep.subr.mxu0 0.0
    %2108 = vmatpush1.msra.mxu0 0.0
    %2109 = vmatprep.subr.mxu0 0.0
    %2110 = vmatpush1.msra.mxu0 0.0
    %2111 = vmatprep.subr.mxu0 0.0
    %2112 = vmatpush1.msra.mxu0 0.0
    %2113 = vmatprep.subr.mxu0 0.0
    %2114 = vmatpush1.msra.mxu0 0.0
    %2115 = vmatprep.subr.mxu0 0.0
    %2116 = vmatpush1.msra.mxu0 0.0
    %2117 = vmatprep.subr.mxu0 0.0
    %2118 = vmatpush1.msra.mxu0 0.0
    %2119 = vmatprep.subr.mxu0 0.0
    %2120 = vmatpush1.msra.mxu0 0.0
    %2121 = vmatprep.subr.mxu0 0.0
    %2122 = vmatpush1.msra.mxu0 0.0
    %2123 = vmatprep.mubr.f32.mxu0 0.0
    %2124 = vmatmul.mubr.f32.gmra.mrb[0].mxu0 %v2054
    %v2125 = vpop.f32.mrb[0].mxu0
    %v2126 = vadd.f32 0.0, %v2125
    %v2127 = vpop.f32.mrb[0].mxu0
    %2128 = vmatprep.mubr.f32.mxu0 0.0
    %2129 = vmatmul.mubr.f32.gmra.mrb[0].mxu0 %v2057
    %v2130 = vpop.f32.mrb[0].mxu0
    %v2131 = vadd.f32 0.0, %v2130
    %v2132 = vpop.f32.mrb[0].mxu0
    %2133 = vdwg.mxu0
    %2135 = vrot.lane.b32.xlu0 %v1547, 32
    %v2136 = vpop.permute.xlu0 %2135
    %v2139 = vsel %vm134, %v1841, 0
    %v2142 = vsel %vm134, %v1846, 0
    %2144 = vmatprep.subr.mxu0 0.0
    %2145 = vmatpush1.msra.mxu0 %v2136
    %2146 = vmatprep.subr.mxu0 0.0
    %2147 = vmatpush1.msra.mxu0 0.0
    %2148 = vmatprep.subr.mxu0 0.0
    %2149 = vmatpush1.msra.mxu0 0.0
    %2150 = vmatprep.subr.mxu0 0.0
    %2151 = vmatpush1.msra.mxu0 0.0
    %2152 = vmatprep.subr.mxu0 0.0
    %2153 = vmatpush1.msra.mxu0 0.0
    %2154 = vmatprep.subr.mxu0 0.0
    %2155 = vmatpush1.msra.mxu0 0.0
    %2156 = vmatprep.subr.mxu0 0.0
    %2157 = vmatpush1.msra.mxu0 0.0
    %2158 = vmatprep.subr.mxu0 0.0
    %2159 = vmatpush1.msra.mxu0 0.0
    %2160 = vmatprep.subr.mxu0 0.0
    %2161 = vmatpush1.msra.mxu0 0.0
    %2162 = vmatprep.subr.mxu0 0.0
    %2163 = vmatpush1.msra.mxu0 0.0
    %2164 = vmatprep.subr.mxu0 0.0
    %2165 = vmatpush1.msra.mxu0 0.0
    %2166 = vmatprep.subr.mxu0 0.0
    %2167 = vmatpush1.msra.mxu0 0.0
    %2168 = vmatprep.subr.mxu0 0.0
    %2169 = vmatpush1.msra.mxu0 0.0
    %2170 = vmatprep.subr.mxu0 0.0
    %2171 = vmatpush1.msra.mxu0 0.0
    %2172 = vmatprep.subr.mxu0 0.0
    %2173 = vmatpush1.msra.mxu0 0.0
    %2174 = vmatprep.subr.mxu0 0.0
    %2175 = vmatpush1.msra.mxu0 0.0
    %2176 = vmatprep.subr.mxu0 0.0
    %2177 = vmatpush1.msra.mxu0 0.0
    %2178 = vmatprep.subr.mxu0 0.0
    %2179 = vmatpush1.msra.mxu0 0.0
    %2180 = vmatprep.subr.mxu0 0.0
    %2181 = vmatpush1.msra.mxu0 0.0
    %2182 = vmatprep.subr.mxu0 0.0
    %2183 = vmatpush1.msra.mxu0 0.0
    %2184 = vmatprep.subr.mxu0 0.0
    %2185 = vmatpush1.msra.mxu0 0.0
    %2186 = vmatprep.subr.mxu0 0.0
    %2187 = vmatpush1.msra.mxu0 0.0
    %2188 = vmatprep.subr.mxu0 0.0
    %2189 = vmatpush1.msra.mxu0 0.0
    %2190 = vmatprep.subr.mxu0 0.0
    %2191 = vmatpush1.msra.mxu0 0.0
    %2192 = vmatprep.subr.mxu0 0.0
    %2193 = vmatpush1.msra.mxu0 0.0
    %2194 = vmatprep.subr.mxu0 0.0
    %2195 = vmatpush1.msra.mxu0 0.0
    %2196 = vmatprep.subr.mxu0 0.0
    %2197 = vmatpush1.msra.mxu0 0.0
    %2198 = vmatprep.subr.mxu0 0.0
    %2199 = vmatpush1.msra.mxu0 0.0
    %2200 = vmatprep.subr.mxu0 0.0
    %2201 = vmatpush1.msra.mxu0 0.0
    %2202 = vmatprep.subr.mxu0 0.0
    %2203 = vmatpush1.msra.mxu0 0.0
    %2204 = vmatprep.subr.mxu0 0.0
    %2205 = vmatpush1.msra.mxu0 0.0
    %2206 = vmatprep.subr.mxu0 0.0
    %2207 = vmatpush1.msra.mxu0 0.0
    %2208 = vmatprep.mubr.f32.mxu0 0.0
    %2209 = vmatmul.mubr.f32.gmra.mrb[0].mxu0 %v2139
    %v2210 = vpop.f32.mrb[0].mxu0
    %v2211 = vadd.f32 %v2126, %v2210
    %v2212 = vpop.f32.mrb[0].mxu0
    %2213 = vmatprep.mubr.f32.mxu0 0.0
    %2214 = vmatmul.mubr.f32.gmra.mrb[0].mxu0 %v2142
    %v2215 = vpop.f32.mrb[0].mxu0
    %v2216 = vadd.f32 %v2131, %v2215
    %v2217 = vpop.f32.mrb[0].mxu0
    %2218 = vdwg.mxu0
    %2219 = vrot.lane.b32.xlu0 %v1643, 112
    %v2220 = vpop.permute.xlu0 %2219
    %2221 = vrot.lane.b32.xlu0 %v1648, 112
    %v2222 = vpop.permute.xlu0 %2221
    %2223 = vrot.lane.b32.xlu0 %v1643, 80
    %v2224 = vpop.permute.xlu0 %2223
    %2225 = vrot.lane.b32.xlu0 %v1648, 80
    %v2226 = vpop.permute.xlu0 %2225
    %v2227 = vsel %vm134, %v2220, 0
    %v2229 = vsel %vm134, %v2222, 0
    %v2231 = vsel %vm134, %v2224, 0
    %v2233 = vsel %vm134, %v2226, 0
    %2235 = vmatprep.subr.mxu0 0.0
    %2236 = vmatpush1.xpose.msra.mxu0 %v2231
    %2237 = vmatprep.subr.mxu0 0.0
    %2238 = vmatpush1.xpose.msra.mxu0 %v2233
    %2239 = vmatprep.subr.mxu0 0.0
    %2240 = vmatpush1.xpose.msra.mxu0 0.0
    %2241 = vmatprep.subr.mxu0 0.0
    %2242 = vmatpush1.xpose.msra.mxu0 0.0
    %2243 = vmatprep.subr.mxu0 0.0
    %2244 = vmatpush1.xpose.msra.mxu0 0.0
    %2245 = vmatprep.subr.mxu0 0.0
    %2246 = vmatpush1.xpose.msra.mxu0 0.0
    %2247 = vmatprep.subr.mxu0 0.0
    %2248 = vmatpush1.xpose.msra.mxu0 0.0
    %2249 = vmatprep.subr.mxu0 0.0
    %2250 = vmatpush1.xpose.msra.mxu0 0.0
    %2251 = vmatprep.subr.mxu0 0.0
    %2252 = vmatpush1.xpose.msra.mxu0 0.0
    %2253 = vmatprep.subr.mxu0 0.0
    %2254 = vmatpush1.xpose.msra.mxu0 0.0
    %2255 = vmatprep.subr.mxu0 0.0
    %2256 = vmatpush1.xpose.msra.mxu0 0.0
    %2257 = vmatprep.subr.mxu0 0.0
    %2258 = vmatpush1.xpose.msra.mxu0 0.0
    %2259 = vmatprep.subr.mxu0 0.0
    %2260 = vmatpush1.xpose.msra.mxu0 0.0
    %2261 = vmatprep.subr.mxu0 0.0
    %2262 = vmatpush1.xpose.msra.mxu0 0.0
    %2263 = vmatprep.subr.mxu0 0.0
    %2264 = vmatpush1.xpose.msra.mxu0 0.0
    %2265 = vmatprep.subr.mxu0 0.0
    %2266 = vmatpush1.xpose.msra.mxu0 0.0
    %2267 = vmatprep.subr.mxu0 0.0
    %2268 = vmatpush1.xpose.msra.mxu0 0.0
    %2269 = vmatprep.subr.mxu0 0.0
    %2270 = vmatpush1.xpose.msra.mxu0 0.0
    %2271 = vmatprep.subr.mxu0 0.0
    %2272 = vmatpush1.xpose.msra.mxu0 0.0
    %2273 = vmatprep.subr.mxu0 0.0
    %2274 = vmatpush1.xpose.msra.mxu0 0.0
    %2275 = vmatprep.subr.mxu0 0.0
    %2276 = vmatpush1.xpose.msra.mxu0 0.0
    %2277 = vmatprep.subr.mxu0 0.0
    %2278 = vmatpush1.xpose.msra.mxu0 0.0
    %2279 = vmatprep.subr.mxu0 0.0
    %2280 = vmatpush1.xpose.msra.mxu0 0.0
    %2281 = vmatprep.subr.mxu0 0.0
    %2282 = vmatpush1.xpose.msra.mxu0 0.0
    %2283 = vmatprep.subr.mxu0 0.0
    %2284 = vmatpush1.xpose.msra.mxu0 0.0
    %2285 = vmatprep.subr.mxu0 0.0
    %2286 = vmatpush1.xpose.msra.mxu0 0.0
    %2287 = vmatprep.subr.mxu0 0.0
    %2288 = vmatpush1.xpose.msra.mxu0 0.0
    %2289 = vmatprep.subr.mxu0 0.0
    %2290 = vmatpush1.xpose.msra.mxu0 0.0
    %2291 = vmatprep.subr.mxu0 0.0
    %2292 = vmatpush1.xpose.msra.mxu0 0.0
    %2293 = vmatprep.subr.mxu0 0.0
    %2294 = vmatpush1.xpose.msra.mxu0 0.0
    %2295 = vmatprep.subr.mxu0 0.0
    %2296 = vmatpush1.xpose.msra.mxu0 0.0
    %2297 = vmatprep.subr.mxu0 0.0
    %2298 = vmatpush1.xpose.msra.mxu0 0.0
    %2299 = vmatprep.mubr.f32.mxu0 0.0
    %2300 = vmatmul.mubr.f32.gmra.mrb[0].mxu0 %v2227
    %v2301 = vpop.f32.mrb[0].mxu0
    %v2302 = vadd.f32 %v23, %v2301
    %v2303 = vpop.f32.mrb[0].mxu0
    %2304 = vmatprep.mubr.f32.mxu0 0.0
    %2305 = vmatmul.mubr.f32.gmra.mrb[0].mxu0 %v2229
    %v2306 = vpop.f32.mrb[0].mxu0
    %v2307 = vadd.f32 %v24, %v2306
    %v2308 = vpop.f32.mrb[0].mxu0
    %2309 = vdwg.mxu0
    %v2310 = vsel %vm218, %v2302, -inf
    %2311 = vmax.xlane.f32.xlu0 %v2310
    %v2312 = vpop.xlane.xlu0 %2311
    %v2313 = vsel %vm218, %v2307, -inf
    %2314 = vmax.xlane.f32.xlu0 %v2313
    %v2315 = vpop.xlane.xlu0 %2314
    %v2316 = vsub.f32 %v2302, %v2312
    %v2317 = vsub.f32 %v2307, %v2315
    %v2318 = vmul.f32 %v2316, 1.442695
    %v2319 = vpow.pop %v2318
    %v2320 = vmul.f32 %v2317, 1.442695
    %v2321 = vpow.pop %v2320
    %v2322 = vsel %vm218, %v2319, 0.0
    %2323 = vadd.xlane.f32.xlu0 %v2322
    %v2324 = vpop.xlane.xlu0 %2323
    %v2325 = vsel %vm218, %v2321, 0.0
    %2326 = vadd.xlane.f32.xlu0 %v2325
    %v2327 = vpop.xlane.xlu0 %2326
    %v2328 = vrcp.pop %v2324
    %v2329 = vrcp.pop %v2327
    %v2330 = vmul.f32 %v2319, %v2328
    %v2331 = vmul.f32 %v2321, %v2329
    %2332 = vrot.lane.b32.xlu0 %v1643, 48
    %v2333 = vpop.permute.xlu0 %2332
    %2334 = vrot.lane.b32.xlu0 %v1648, 48
    %v2335 = vpop.permute.xlu0 %2334
    %v2339 = vsel %vm218, %v2330, 0
    %v2342 = vsel %vm218, %v2331, 0
    %2344 = vmatprep.subr.mxu0 0.0
    %2345 = vmatpush1.msra.mxu0 %v2333
    %2346 = vmatprep.subr.mxu0 0.0
    %2347 = vmatpush1.msra.mxu0 %v2335
    %2348 = vmatprep.subr.mxu0 0.0
    %2349 = vmatpush1.msra.mxu0 0.0
    %2350 = vmatprep.subr.mxu0 0.0
    %2351 = vmatpush1.msra.mxu0 0.0
    %2352 = vmatprep.subr.mxu0 0.0
    %2353 = vmatpush1.msra.mxu0 0.0
    %2354 = vmatprep.subr.mxu0 0.0
    %2355 = vmatpush1.msra.mxu0 0.0
    %2356 = vmatprep.subr.mxu0 0.0
    %2357 = vmatpush1.msra.mxu0 0.0
    %2358 = vmatprep.subr.mxu0 0.0
    %2359 = vmatpush1.msra.mxu0 0.0
    %2360 = vmatprep.subr.mxu0 0.0
    %2361 = vmatpush1.msra.mxu0 0.0
    %2362 = vmatprep.subr.mxu0 0.0
    %2363 = vmatpush1.msra.mxu0 0.0
    %2364 = vmatprep.subr.mxu0 0.0
    %2365 = vmatpush1.msra.mxu0 0.0
    %2366 = vmatprep.subr.mxu0 0.0
    %2367 = vmatpush1.msra.mxu0 0.0
    %2368 = vmatprep.subr.mxu0 0.0
    %2369 = vmatpush1.msra.mxu0 0.0
    %2370 = vmatprep.subr.mxu0 0.0
    %2371 = vmatpush1.msra.mxu0 0.0
    %2372 = vmatprep.subr.mxu0 0.0
    %2373 = vmatpush1.msra.mxu0 0.0
    %2374 = vmatprep.subr.mxu0 0.0
    %2375 = vmatpush1.msra.mxu0 0.0
    %2376 = vmatprep.subr.mxu0 0.0
    %2377 = vmatpush1.msra.mxu0 0.0
    %2378 = vmatprep.subr.mxu0 0.0
    %2379 = vmatpush1.msra.mxu0 0.0
    %2380 = vmatprep.subr.mxu0 0.0
    %2381 = vmatpush1.msra.mxu0 0.0
    %2382 = vmatprep.subr.mxu0 0.0
    %2383 = vmatpush1.msra.mxu0 0.0
    %2384 = vmatprep.subr.mxu0 0.0
    %2385 = vmatpush1.msra.mxu0 0.0
    %2386 = vmatprep.subr.mxu0 0.0
    %2387 = vmatpush1.msra.mxu0 0.0
    %2388 = vmatprep.subr.mxu0 0.0
    %2389 = vmatpush1.msra.mxu0 0.0
    %2390 = vmatprep.subr.mxu0 0.0
    %2391 = vmatpush1.msra.mxu0 0.0
    %2392 = vmatprep.subr.mxu0 0.0
    %2393 = vmatpush1.msra.mxu0 0.0
    %2394 = vmatprep.subr.mxu0 0.0
    %2395 = vmatpush1.msra.mxu0 0.0
    %2396 = vmatprep.subr.mxu0 0.0
    %2397 = vmatpush1.msra.mxu0 0.0
    %2398 = vmatprep.subr.mxu0 0.0
    %2399 = vmatpush1.msra.mxu0 0.0
    %2400 = vmatprep.subr.mxu0 0.0
    %2401 = vmatpush1.msra.mxu0 0.0
    %2402 = vmatprep.subr.mxu0 0.0
    %2403 = vmatpush1.msra.mxu0 0.0
    %2404 = vmatprep.subr.mxu0 0.0
    %2405 = vmatpush1.msra.mxu0 0.0
    %2406 = vmatprep.subr.mxu0 0.0
    %2407 = vmatpush1.msra.mxu0 0.0
    %2408 = vmatprep.mubr.f32.mxu0 0.0
    %2409 = vmatmul.mubr.f32.gmra.mrb[0].mxu0 %v2339
    %v2410 = vpop.f32.mrb[0].mxu0
    %v2411 = vadd.f32 0.0, %v2410
    %v2412 = vpop.f32.mrb[0].mxu0
    %2413 = vmatprep.mubr.f32.mxu0 0.0
    %2414 = vmatmul.mubr.f32.gmra.mrb[0].mxu0 %v2342
    %v2415 = vpop.f32.mrb[0].mxu0
    %v2416 = vadd.f32 0.0, %v2415
    %v2417 = vpop.f32.mrb[0].mxu0
    %2418 = vdwg.mxu0
    %2420 = vrot.lane.b32.xlu0 %v1549, 32
    %v2421 = vpop.permute.xlu0 %2420
    %v2424 = vsel %vm134, %v2411, 0
    %v2427 = vsel %vm134, %v2416, 0
    %2429 = vmatprep.subr.mxu0 0.0
    %2430 = vmatpush1.msra.mxu0 %v2421
    %2431 = vmatprep.subr.mxu0 0.0
    %2432 = vmatpush1.msra.mxu0 0.0
    %2433 = vmatprep.subr.mxu0 0.0
    %2434 = vmatpush1.msra.mxu0 0.0
    %2435 = vmatprep.subr.mxu0 0.0
    %2436 = vmatpush1.msra.mxu0 0.0
    %2437 = vmatprep.subr.mxu0 0.0
    %2438 = vmatpush1.msra.mxu0 0.0
    %2439 = vmatprep.subr.mxu0 0.0
    %2440 = vmatpush1.msra.mxu0 0.0
    %2441 = vmatprep.subr.mxu0 0.0
    %2442 = vmatpush1.msra.mxu0 0.0
    %2443 = vmatprep.subr.mxu0 0.0
    %2444 = vmatpush1.msra.mxu0 0.0
    %2445 = vmatprep.subr.mxu0 0.0
    %2446 = vmatpush1.msra.mxu0 0.0
    %2447 = vmatprep.subr.mxu0 0.0
    %2448 = vmatpush1.msra.mxu0 0.0
    %2449 = vmatprep.subr.mxu0 0.0
    %2450 = vmatpush1.msra.mxu0 0.0
    %2451 = vmatprep.subr.mxu0 0.0
    %2452 = vmatpush1.msra.mxu0 0.0
    %2453 = vmatprep.subr.mxu0 0.0
    %2454 = vmatpush1.msra.mxu0 0.0
    %2455 = vmatprep.subr.mxu0 0.0
    %2456 = vmatpush1.msra.mxu0 0.0
    %2457 = vmatprep.subr.mxu0 0.0
    %2458 = vmatpush1.msra.mxu0 0.0
    %2459 = vmatprep.subr.mxu0 0.0
    %2460 = vmatpush1.msra.mxu0 0.0
    %2461 = vmatprep.subr.mxu0 0.0
    %2462 = vmatpush1.msra.mxu0 0.0
    %2463 = vmatprep.subr.mxu0 0.0
    %2464 = vmatpush1.msra.mxu0 0.0
    %2465 = vmatprep.subr.mxu0 0.0
    %2466 = vmatpush1.msra.mxu0 0.0
    %2467 = vmatprep.subr.mxu0 0.0
    %2468 = vmatpush1.msra.mxu0 0.0
    %2469 = vmatprep.subr.mxu0 0.0
    %2470 = vmatpush1.msra.mxu0 0.0
    %2471 = vmatprep.subr.mxu0 0.0
    %2472 = vmatpush1.msra.mxu0 0.0
    %2473 = vmatprep.subr.mxu0 0.0
    %2474 = vmatpush1.msra.mxu0 0.0
    %2475 = vmatprep.subr.mxu0 0.0
    %2476 = vmatpush1.msra.mxu0 0.0
    %2477 = vmatprep.subr.mxu0 0.0
    %2478 = vmatpush1.msra.mxu0 0.0
    %2479 = vmatprep.subr.mxu0 0.0
    %2480 = vmatpush1.msra.mxu0 0.0
    %2481 = vmatprep.subr.mxu0 0.0
    %2482 = vmatpush1.msra.mxu0 0.0
    %2483 = vmatprep.subr.mxu0 0.0
    %2484 = vmatpush1.msra.mxu0 0.0
    %2485 = vmatprep.subr.mxu0 0.0
    %2486 = vmatpush1.msra.mxu0 0.0
    %2487 = vmatprep.subr.mxu0 0.0
    %2488 = vmatpush1.msra.mxu0 0.0
    %2489 = vmatprep.subr.mxu0 0.0
    %2490 = vmatpush1.msra.mxu0 0.0
    %2491 = vmatprep.subr.mxu0 0.0
    %2492 = vmatpush1.msra.mxu0 0.0
    %2493 = vmatprep.mubr.f32.mxu0 0.0
    %2494 = vmatmul.mubr.f32.gmra.mrb[0].mxu0 %v2424
    %v2495 = vpop.f32.mrb[0].mxu0
    %v2496 = vadd.f32 0.0, %v2495
    %v2497 = vpop.f32.mrb[0].mxu0
    %2498 = vmatprep.mubr.f32.mxu0 0.0
    %2499 = vmatmul.mubr.f32.gmra.mrb[0].mxu0 %v2427
    %v2500 = vpop.f32.mrb[0].mxu0
    %v2501 = vadd.f32 0.0, %v2500
    %v2502 = vpop.f32.mrb[0].mxu0
    %2503 = vdwg.mxu0
    %v2504 = vadd.f32 %v2211, %v2496
    %v2505 = vadd.f32 %v2216, %v2501
    %2506 = vrot.lane.b32.xlu0 %v1643, 104
    %v2507 = vpop.permute.xlu0 %2506
    %2508 = vrot.lane.b32.xlu0 %v1648, 104
    %v2509 = vpop.permute.xlu0 %2508
    %2510 = vrot.lane.b32.xlu0 %v1643, 72
    %v2511 = vpop.permute.xlu0 %2510
    %2512 = vrot.lane.b32.xlu0 %v1648, 72
    %v2513 = vpop.permute.xlu0 %2512
    %v2514 = vsel %vm134, %v2507, 0
    %v2516 = vsel %vm134, %v2509, 0
    %v2518 = vsel %vm134, %v2511, 0
    %v2520 = vsel %vm134, %v2513, 0
    %2522 = vmatprep.subr.mxu0 0.0
    %2523 = vmatpush1.xpose.msra.mxu0 %v2518
    %2524 = vmatprep.subr.mxu0 0.0
    %2525 = vmatpush1.xpose.msra.mxu0 %v2520
    %2526 = vmatprep.subr.mxu0 0.0
    %2527 = vmatpush1.xpose.msra.mxu0 0.0
    %2528 = vmatprep.subr.mxu0 0.0
    %2529 = vmatpush1.xpose.msra.mxu0 0.0
    %2530 = vmatprep.subr.mxu0 0.0
    %2531 = vmatpush1.xpose.msra.mxu0 0.0
    %2532 = vmatprep.subr.mxu0 0.0
    %2533 = vmatpush1.xpose.msra.mxu0 0.0
    %2534 = vmatprep.subr.mxu0 0.0
    %2535 = vmatpush1.xpose.msra.mxu0 0.0
    %2536 = vmatprep.subr.mxu0 0.0
    %2537 = vmatpush1.xpose.msra.mxu0 0.0
    %2538 = vmatprep.subr.mxu0 0.0
    %2539 = vmatpush1.xpose.msra.mxu0 0.0
    %2540 = vmatprep.subr.mxu0 0.0
    %2541 = vmatpush1.xpose.msra.mxu0 0.0
    %2542 = vmatprep.subr.mxu0 0.0
    %2543 = vmatpush1.xpose.msra.mxu0 0.0
    %2544 = vmatprep.subr.mxu0 0.0
    %2545 = vmatpush1.xpose.msra.mxu0 0.0
    %2546 = vmatprep.subr.mxu0 0.0
    %2547 = vmatpush1.xpose.msra.mxu0 0.0
    %2548 = vmatprep.subr.mxu0 0.0
    %2549 = vmatpush1.xpose.msra.mxu0 0.0
    %2550 = vmatprep.subr.mxu0 0.0
    %2551 = vmatpush1.xpose.msra.mxu0 0.0
    %2552 = vmatprep.subr.mxu0 0.0
    %2553 = vmatpush1.xpose.msra.mxu0 0.0
    %2554 = vmatprep.subr.mxu0 0.0
    %2555 = vmatpush1.xpose.msra.mxu0 0.0
    %2556 = vmatprep.subr.mxu0 0.0
    %2557 = vmatpush1.xpose.msra.mxu0 0.0
    %2558 = vmatprep.subr.mxu0 0.0
    %2559 = vmatpush1.xpose.msra.mxu0 0.0
    %2560 = vmatprep.subr.mxu0 0.0
    %2561 = vmatpush1.xpose.msra.mxu0 0.0
    %2562 = vmatprep.subr.mxu0 0.0
    %2563 = vmatpush1.xpose.msra.mxu0 0.0
    %2564 = vmatprep.subr.mxu0 0.0
    %2565 = vmatpush1.xpose.msra.mxu0 0.0
    %2566 = vmatprep.subr.mxu0 0.0
    %2567 = vmatpush1.xpose.msra.mxu0 0.0
    %2568 = vmatprep.subr.mxu0 0.0
    %2569 = vmatpush1.xpose.msra.mxu0 0.0
    %2570 = vmatprep.subr.mxu0 0.0
    %2571 = vmatpush1.xpose.msra.mxu0 0.0
    %2572 = vmatprep.subr.mxu0 0.0
    %2573 = vmatpush1.xpose.msra.mxu0 0.0
    %2574 = vmatprep.subr.mxu0 0.0
    %2575 = vmatpush1.xpose.msra.mxu0 0.0
    %2576 = vmatprep.subr.mxu0 0.0
    %2577 = vmatpush1.xpose.msra.mxu0 0.0
    %2578 = vmatprep.subr.mxu0 0.0
    %2579 = vmatpush1.xpose.msra.mxu0 0.0
    %2580 = vmatprep.subr.mxu0 0.0
    %2581 = vmatpush1.xpose.msra.mxu0 0.0
    %2582 = vmatprep.subr.mxu0 0.0
    %2583 = vmatpush1.xpose.msra.mxu0 0.0
    %2584 = vmatprep.subr.mxu0 0.0
    %2585 = vmatpush1.xpose.msra.mxu0 0.0
    %2586 = vmatprep.mubr.f32.mxu0 0.0
    %2587 = vmatmul.mubr.f32.gmra.mrb[0].mxu0 %v2514
    %v2588 = vpop.f32.mrb[0].mxu0
    %v2589 = vadd.f32 %v23, %v2588
    %v2590 = vpop.f32.mrb[0].mxu0
    %2591 = vmatprep.mubr.f32.mxu0 0.0
    %2592 = vmatmul.mubr.f32.gmra.mrb[0].mxu0 %v2516
    %v2593 = vpop.f32.mrb[0].mxu0
    %v2594 = vadd.f32 %v24, %v2593
    %v2595 = vpop.f32.mrb[0].mxu0
    %2596 = vdwg.mxu0
    %v2597 = vsel %vm218, %v2589, -inf
    %2598 = vmax.xlane.f32.xlu0 %v2597
    %v2599 = vpop.xlane.xlu0 %2598
    %v2600 = vsel %vm218, %v2594, -inf
    %2601 = vmax.xlane.f32.xlu0 %v2600
    %v2602 = vpop.xlane.xlu0 %2601
    %v2603 = vsub.f32 %v2589, %v2599
    %v2604 = vsub.f32 %v2594, %v2602
    %v2605 = vmul.f32 %v2603, 1.442695
    %v2606 = vpow.pop %v2605
    %v2607 = vmul.f32 %v2604, 1.442695
    %v2608 = vpow.pop %v2607
    %v2609 = vsel %vm218, %v2606, 0.0
    %2610 = vadd.xlane.f32.xlu0 %v2609
    %v2611 = vpop.xlane.xlu0 %2610
    %v2612 = vsel %vm218, %v2608, 0.0
    %2613 = vadd.xlane.f32.xlu0 %v2612
    %v2614 = vpop.xlane.xlu0 %2613
    %v2615 = vrcp.pop %v2611
    %v2616 = vrcp.pop %v2614
    %v2617 = vmul.f32 %v2606, %v2615
    %v2618 = vmul.f32 %v2608, %v2616
    %2619 = vrot.lane.b32.xlu0 %v1643, 40
    %v2620 = vpop.permute.xlu0 %2619
    %2621 = vrot.lane.b32.xlu0 %v1648, 40
    %v2622 = vpop.permute.xlu0 %2621
    %v2626 = vsel %vm218, %v2617, 0
    %v2629 = vsel %vm218, %v2618, 0
    %2631 = vmatprep.subr.mxu0 0.0
    %2632 = vmatpush1.msra.mxu0 %v2620
    %2633 = vmatprep.subr.mxu0 0.0
    %2634 = vmatpush1.msra.mxu0 %v2622
    %2635 = vmatprep.subr.mxu0 0.0
    %2636 = vmatpush1.msra.mxu0 0.0
    %2637 = vmatprep.subr.mxu0 0.0
    %2638 = vmatpush1.msra.mxu0 0.0
    %2639 = vmatprep.subr.mxu0 0.0
    %2640 = vmatpush1.msra.mxu0 0.0
    %2641 = vmatprep.subr.mxu0 0.0
    %2642 = vmatpush1.msra.mxu0 0.0
    %2643 = vmatprep.subr.mxu0 0.0
    %2644 = vmatpush1.msra.mxu0 0.0
    %2645 = vmatprep.subr.mxu0 0.0
    %2646 = vmatpush1.msra.mxu0 0.0
    %2647 = vmatprep.subr.mxu0 0.0
    %2648 = vmatpush1.msra.mxu0 0.0
    %2649 = vmatprep.subr.mxu0 0.0
    %2650 = vmatpush1.msra.mxu0 0.0
    %2651 = vmatprep.subr.mxu0 0.0
    %2652 = vmatpush1.msra.mxu0 0.0
    %2653 = vmatprep.subr.mxu0 0.0
    %2654 = vmatpush1.msra.mxu0 0.0
    %2655 = vmatprep.subr.mxu0 0.0
    %2656 = vmatpush1.msra.mxu0 0.0
    %2657 = vmatprep.subr.mxu0 0.0
    %2658 = vmatpush1.msra.mxu0 0.0
    %2659 = vmatprep.subr.mxu0 0.0
    %2660 = vmatpush1.msra.mxu0 0.0
    %2661 = vmatprep.subr.mxu0 0.0
    %2662 = vmatpush1.msra.mxu0 0.0
    %2663 = vmatprep.subr.mxu0 0.0
    %2664 = vmatpush1.msra.mxu0 0.0
    %2665 = vmatprep.subr.mxu0 0.0
    %2666 = vmatpush1.msra.mxu0 0.0
    %2667 = vmatprep.subr.mxu0 0.0
    %2668 = vmatpush1.msra.mxu0 0.0
    %2669 = vmatprep.subr.mxu0 0.0
    %2670 = vmatpush1.msra.mxu0 0.0
    %2671 = vmatprep.subr.mxu0 0.0
    %2672 = vmatpush1.msra.mxu0 0.0
    %2673 = vmatprep.subr.mxu0 0.0
    %2674 = vmatpush1.msra.mxu0 0.0
    %2675 = vmatprep.subr.mxu0 0.0
    %2676 = vmatpush1.msra.mxu0 0.0
    %2677 = vmatprep.subr.mxu0 0.0
    %2678 = vmatpush1.msra.mxu0 0.0
    %2679 = vmatprep.subr.mxu0 0.0
    %2680 = vmatpush1.msra.mxu0 0.0
    %2681 = vmatprep.subr.mxu0 0.0
    %2682 = vmatpush1.msra.mxu0 0.0
    %2683 = vmatprep.subr.mxu0 0.0
    %2684 = vmatpush1.msra.mxu0 0.0
    %2685 = vmatprep.subr.mxu0 0.0
    %2686 = vmatpush1.msra.mxu0 0.0
    %2687 = vmatprep.subr.mxu0 0.0
    %2688 = vmatpush1.msra.mxu0 0.0
    %2689 = vmatprep.subr.mxu0 0.0
    %2690 = vmatpush1.msra.mxu0 0.0
    %2691 = vmatprep.subr.mxu0 0.0
    %2692 = vmatpush1.msra.mxu0 0.0
    %2693 = vmatprep.subr.mxu0 0.0
    %2694 = vmatpush1.msra.mxu0 0.0
    %2695 = vmatprep.mubr.f32.mxu0 0.0
    %2696 = vmatmul.mubr.f32.gmra.mrb[0].mxu0 %v2626
    %v2697 = vpop.f32.mrb[0].mxu0
    %v2698 = vadd.f32 0.0, %v2697
    %v2699 = vpop.f32.mrb[0].mxu0
    %2700 = vmatprep.mubr.f32.mxu0 0.0
    %2701 = vmatmul.mubr.f32.gmra.mrb[0].mxu0 %v2629
    %v2702 = vpop.f32.mrb[0].mxu0
    %v2703 = vadd.f32 0.0, %v2702
    %v2704 = vpop.f32.mrb[0].mxu0
    %2705 = vdwg.mxu0
    %2707 = vrot.lane.b32.xlu0 %v1550, 32
    %v2708 = vpop.permute.xlu0 %2707
    %v2711 = vsel %vm134, %v2698, 0
    %v2714 = vsel %vm134, %v2703, 0
    %2716 = vmatprep.subr.mxu0 0.0
    %2717 = vmatpush1.msra.mxu0 %v2708
    %2718 = vmatprep.subr.mxu0 0.0
    %2719 = vmatpush1.msra.mxu0 0.0
    %2720 = vmatprep.subr.mxu0 0.0
    %2721 = vmatpush1.msra.mxu0 0.0
    %2722 = vmatprep.subr.mxu0 0.0
    %2723 = vmatpush1.msra.mxu0 0.0
    %2724 = vmatprep.subr.mxu0 0.0
    %2725 = vmatpush1.msra.mxu0 0.0
    %2726 = vmatprep.subr.mxu0 0.0
    %2727 = vmatpush1.msra.mxu0 0.0
    %2728 = vmatprep.subr.mxu0 0.0
    %2729 = vmatpush1.msra.mxu0 0.0
    %2730 = vmatprep.subr.mxu0 0.0
    %2731 = vmatpush1.msra.mxu0 0.0
    %2732 = vmatprep.subr.mxu0 0.0
    %2733 = vmatpush1.msra.mxu0 0.0
    %2734 = vmatprep.subr.mxu0 0.0
    %2735 = vmatpush1.msra.mxu0 0.0
    %2736 = vmatprep.subr.mxu0 0.0
    %2737 = vmatpush1.msra.mxu0 0.0
    %2738 = vmatprep.subr.mxu0 0.0
    %2739 = vmatpush1.msra.mxu0 0.0
    %2740 = vmatprep.subr.mxu0 0.0
    %2741 = vmatpush1.msra.mxu0 0.0
    %2742 = vmatprep.subr.mxu0 0.0
    %2743 = vmatpush1.msra.mxu0 0.0
    %2744 = vmatprep.subr.mxu0 0.0
    %2745 = vmatpush1.msra.mxu0 0.0
    %2746 = vmatprep.subr.mxu0 0.0
    %2747 = vmatpush1.msra.mxu0 0.0
    %2748 = vmatprep.subr.mxu0 0.0
    %2749 = vmatpush1.msra.mxu0 0.0
    %2750 = vmatprep.subr.mxu0 0.0
    %2751 = vmatpush1.msra.mxu0 0.0
    %2752 = vmatprep.subr.mxu0 0.0
    %2753 = vmatpush1.msra.mxu0 0.0
    %2754 = vmatprep.subr.mxu0 0.0
    %2755 = vmatpush1.msra.mxu0 0.0
    %2756 = vmatprep.subr.mxu0 0.0
    %2757 = vmatpush1.msra.mxu0 0.0
    %2758 = vmatprep.subr.mxu0 0.0
    %2759 = vmatpush1.msra.mxu0 0.0
    %2760 = vmatprep.subr.mxu0 0.0
    %2761 = vmatpush1.msra.mxu0 0.0
    %2762 = vmatprep.subr.mxu0 0.0
    %2763 = vmatpush1.msra.mxu0 0.0
    %2764 = vmatprep.subr.mxu0 0.0
    %2765 = vmatpush1.msra.mxu0 0.0
    %2766 = vmatprep.subr.mxu0 0.0
    %2767 = vmatpush1.msra.mxu0 0.0
    %2768 = vmatprep.subr.mxu0 0.0
    %2769 = vmatpush1.msra.mxu0 0.0
    %2770 = vmatprep.subr.mxu0 0.0
    %2771 = vmatpush1.msra.mxu0 0.0
    %2772 = vmatprep.subr.mxu0 0.0
    %2773 = vmatpush1.msra.mxu0 0.0
    %2774 = vmatprep.subr.mxu0 0.0
    %2775 = vmatpush1.msra.mxu0 0.0
    %2776 = vmatprep.subr.mxu0 0.0
    %2777 = vmatpush1.msra.mxu0 0.0
    %2778 = vmatprep.subr.mxu0 0.0
    %2779 = vmatpush1.msra.mxu0 0.0
    %2780 = vmatprep.mubr.f32.mxu0 0.0
    %2781 = vmatmul.mubr.f32.gmra.mrb[0].mxu0 %v2711
    %v2782 = vpop.f32.mrb[0].mxu0
    %v2783 = vadd.f32 0.0, %v2782
    %v2784 = vpop.f32.mrb[0].mxu0
    %2785 = vmatprep.mubr.f32.mxu0 0.0
    %2786 = vmatmul.mubr.f32.gmra.mrb[0].mxu0 %v2714
    %v2787 = vpop.f32.mrb[0].mxu0
    %v2788 = vadd.f32 0.0, %v2787
    %v2789 = vpop.f32.mrb[0].mxu0
    %2790 = vdwg.mxu0
    %v2791 = vadd.f32 %v2504, %v2783
    %v2792 = vadd.f32 %v2505, %v2788
    %v2793 = vlaneseq
    %v2794 = vshrl.u32 %v2793, 7
    %v2795 = vsub.s32 1, %v2794
    %v2796 = vrot.slane %v1565, %v2795
    %v2797 = vadd.f32 %v2791, %v2796
    %v2798 = vadd.f32 %v2792, %v2796
    %v2799 = vadd.f32 %v1544, %v2797
    %v2800 = vadd.f32 %v1545, %v2798
    %v2801 = vsel %vm46, %v2799, 0.0
    %2802 = vadd.xlane.f32.xlu0 %v2801
    %v2803 = vpop.xlane.xlu0 %2802
    %v2804 = vsel %vm46, %v2800, 0.0
    %2805 = vadd.xlane.f32.xlu0 %v2804
    %v2806 = vpop.xlane.xlu0 %2805
    %v2807 = vmul.f32 %v2803, %v1286
    %v2808 = vmul.f32 %v2806, %v1286
    %v2809 = vmul.f32 %v2799, %v2799
    %v2810 = vmul.f32 %v2800, %v2800
    %v2811 = vsel %vm46, %v2809, 0.0
    %2812 = vadd.xlane.f32.xlu0 %v2811
    %v2813 = vpop.xlane.xlu0 %2812
    %v2814 = vsel %vm46, %v2810, 0.0
    %2815 = vadd.xlane.f32.xlu0 %v2814
    %v2816 = vpop.xlane.xlu0 %2815
    %v2817 = vmul.f32 %v2813, %v1286
    %v2818 = vmul.f32 %v2816, %v1286
    %v2819 = vmul.f32 %v2807, %v2807
    %v2820 = vmul.f32 %v2808, %v2808
    %v2821 = vsub.f32 %v2817, %v2819
    %v2822 = vsub.f32 %v2818, %v2820
    %v2823 = vmax.f32 %v2821, 0.0
    %v2824 = vmax.f32 %v2822, 0.0
    %v2825 = vsub.f32 %v2799, %v2807
    %v2826 = vsub.f32 %v2800, %v2808
    %v2827 = vadd.f32 %v2823, 1e-05
    %v2828 = vadd.f32 %v2824, 1e-05
    %v2829 = vrsqrt.pop %v2827
    %v2830 = vrsqrt.pop %v2828
    %v2831 = vmul.f32 %v2825, %v2829
    %v2832 = vmul.f32 %v2826, %v2830
    %v2833 = vlaneseq
    %v2834 = vshrl.u32 %v2833, 7
    %v2835 = vsub.s32 4, %v2834
    %v2836 = vrot.slane %v1565, %v2835
    %v2837 = vmul.f32 %v2831, %v2836
    %v2838 = vmul.f32 %v2832, %v2836
    %v2839 = vlaneseq
    %v2840 = vshrl.u32 %v2839, 7
    %v2841 = vsub.s32 5, %v2840
    %v2842 = vrot.slane %v1565, %v2841
    %v2843 = vadd.f32 %v2837, %v2842
    %v2844 = vadd.f32 %v2838, %v2842
    %v2845 = vlaneseq
    %v2846 = vshrl.u32 %v2845, 7
    %v2847 = vsub.s32 2, %v2846
    %v2848 = vrot.slane %v1565, %v2847
    %v2850 = vsel %vm46, %v2843, 0
    %v2853 = vsel %vm46, %v2844, 0
    %2855 = vmatprep.subr.mxu0 0.0
    %2856 = vmatpush1.msra.mxu0 %v1552
    %2857 = vmatprep.subr.mxu0 0.0
    %2858 = vmatpush1.msra.mxu0 %v1553
    %2859 = vmatprep.subr.mxu0 0.0
    %2860 = vmatpush1.msra.mxu0 %v1554
    %2861 = vmatprep.subr.mxu0 0.0
    %2862 = vmatpush1.msra.mxu0 %v1555
    %2863 = vmatprep.subr.mxu0 0.0
    %2864 = vmatpush1.msra.mxu0 0.0
    %2865 = vmatprep.subr.mxu0 0.0
    %2866 = vmatpush1.msra.mxu0 0.0
    %2867 = vmatprep.subr.mxu0 0.0
    %2868 = vmatpush1.msra.mxu0 0.0
    %2869 = vmatprep.subr.mxu0 0.0
    %2870 = vmatpush1.msra.mxu0 0.0
    %2871 = vmatprep.subr.mxu0 0.0
    %2872 = vmatpush1.msra.mxu0 0.0
    %2873 = vmatprep.subr.mxu0 0.0
    %2874 = vmatpush1.msra.mxu0 0.0
    %2875 = vmatprep.subr.mxu0 0.0
    %2876 = vmatpush1.msra.mxu0 0.0
    %2877 = vmatprep.subr.mxu0 0.0
    %2878 = vmatpush1.msra.mxu0 0.0
    %2879 = vmatprep.subr.mxu0 0.0
    %2880 = vmatpush1.msra.mxu0 0.0
    %2881 = vmatprep.subr.mxu0 0.0
    %2882 = vmatpush1.msra.mxu0 0.0
    %2883 = vmatprep.subr.mxu0 0.0
    %2884 = vmatpush1.msra.mxu0 0.0
    %2885 = vmatprep.subr.mxu0 0.0
    %2886 = vmatpush1.msra.mxu0 0.0
    %2887 = vmatprep.subr.mxu0 0.0
    %2888 = vmatpush1.msra.mxu0 0.0
    %2889 = vmatprep.subr.mxu0 0.0
    %2890 = vmatpush1.msra.mxu0 0.0
    %2891 = vmatprep.subr.mxu0 0.0
    %2892 = vmatpush1.msra.mxu0 0.0
    %2893 = vmatprep.subr.mxu0 0.0
    %2894 = vmatpush1.msra.mxu0 0.0
    %2895 = vmatprep.subr.mxu0 0.0
    %2896 = vmatpush1.msra.mxu0 0.0
    %2897 = vmatprep.subr.mxu0 0.0
    %2898 = vmatpush1.msra.mxu0 0.0
    %2899 = vmatprep.subr.mxu0 0.0
    %2900 = vmatpush1.msra.mxu0 0.0
    %2901 = vmatprep.subr.mxu0 0.0
    %2902 = vmatpush1.msra.mxu0 0.0
    %2903 = vmatprep.subr.mxu0 0.0
    %2904 = vmatpush1.msra.mxu0 0.0
    %2905 = vmatprep.subr.mxu0 0.0
    %2906 = vmatpush1.msra.mxu0 0.0
    %2907 = vmatprep.subr.mxu0 0.0
    %2908 = vmatpush1.msra.mxu0 0.0
    %2909 = vmatprep.subr.mxu0 0.0
    %2910 = vmatpush1.msra.mxu0 0.0
    %2911 = vmatprep.subr.mxu0 0.0
    %2912 = vmatpush1.msra.mxu0 0.0
    %2913 = vmatprep.subr.mxu0 0.0
    %2914 = vmatpush1.msra.mxu0 0.0
    %2915 = vmatprep.subr.mxu0 0.0
    %2916 = vmatpush1.msra.mxu0 0.0
    %2917 = vmatprep.subr.mxu0 0.0
    %2918 = vmatpush1.msra.mxu0 0.0
    %2919 = vmatprep.mubr.f32.mxu0 0.0
    %2920 = vmatmul.mubr.f32.gmra.mrb[0].mxu0 %v2850
    %v2921 = vpop.f32.mrb[0].mxu0
    %v2922 = vadd.f32 %v2848, %v2921
    %v2923 = vpop.f32.mrb[0].mxu0
    %2924 = vmatprep.mubr.f32.mxu0 0.0
    %2925 = vmatmul.mubr.f32.gmra.mrb[0].mxu0 %v2853
    %v2926 = vpop.f32.mrb[0].mxu0
    %v2927 = vadd.f32 %v2848, %v2926
    %v2928 = vpop.f32.mrb[0].mxu0
    %2929 = vdwg.mxu0
    %v2930 = vmax.f32 %v2922, 0.0
    %v2931 = vmax.f32 %v2927, 0.0
    %v2933 = vsel %vm1412, %v2930, 0
    %v2936 = vsel %vm1412, %v2931, 0
    %2938 = vmatprep.subr.mxu0 0.0
    %2939 = vmatpush1.msra.mxu0 %v1556
    %2940 = vmatprep.subr.mxu0 0.0
    %2941 = vmatpush1.msra.mxu0 %v1557
    %2942 = vmatprep.subr.mxu0 0.0
    %2943 = vmatpush1.msra.mxu0 %v1558
    %2944 = vmatprep.subr.mxu0 0.0
    %2945 = vmatpush1.msra.mxu0 %v1559
    %2946 = vmatprep.subr.mxu0 0.0
    %2947 = vmatpush1.msra.mxu0 %v1560
    %2948 = vmatprep.subr.mxu0 0.0
    %2949 = vmatpush1.msra.mxu0 %v1561
    %2950 = vmatprep.subr.mxu0 0.0
    %2951 = vmatpush1.msra.mxu0 %v1562
    %2952 = vmatprep.subr.mxu0 0.0
    %2953 = vmatpush1.msra.mxu0 %v1563
    %2954 = vmatprep.subr.mxu0 0.0
    %2955 = vmatpush1.msra.mxu0 0.0
    %2956 = vmatprep.subr.mxu0 0.0
    %2957 = vmatpush1.msra.mxu0 0.0
    %2958 = vmatprep.subr.mxu0 0.0
    %2959 = vmatpush1.msra.mxu0 0.0
    %2960 = vmatprep.subr.mxu0 0.0
    %2961 = vmatpush1.msra.mxu0 0.0
    %2962 = vmatprep.subr.mxu0 0.0
    %2963 = vmatpush1.msra.mxu0 0.0
    %2964 = vmatprep.subr.mxu0 0.0
    %2965 = vmatpush1.msra.mxu0 0.0
    %2966 = vmatprep.subr.mxu0 0.0
    %2967 = vmatpush1.msra.mxu0 0.0
    %2968 = vmatprep.subr.mxu0 0.0
    %2969 = vmatpush1.msra.mxu0 0.0
    %2970 = vmatprep.subr.mxu0 0.0
    %2971 = vmatpush1.msra.mxu0 0.0
    %2972 = vmatprep.subr.mxu0 0.0
    %2973 = vmatpush1.msra.mxu0 0.0
    %2974 = vmatprep.subr.mxu0 0.0
    %2975 = vmatpush1.msra.mxu0 0.0
    %2976 = vmatprep.subr.mxu0 0.0
    %2977 = vmatpush1.msra.mxu0 0.0
    %2978 = vmatprep.subr.mxu0 0.0
    %2979 = vmatpush1.msra.mxu0 0.0
    %2980 = vmatprep.subr.mxu0 0.0
    %2981 = vmatpush1.msra.mxu0 0.0
    %2982 = vmatprep.subr.mxu0 0.0
    %2983 = vmatpush1.msra.mxu0 0.0
    %2984 = vmatprep.subr.mxu0 0.0
    %2985 = vmatpush1.msra.mxu0 0.0
    %2986 = vmatprep.subr.mxu0 0.0
    %2987 = vmatpush1.msra.mxu0 0.0
    %2988 = vmatprep.subr.mxu0 0.0
    %2989 = vmatpush1.msra.mxu0 0.0
    %2990 = vmatprep.subr.mxu0 0.0
    %2991 = vmatpush1.msra.mxu0 0.0
    %2992 = vmatprep.subr.mxu0 0.0
    %2993 = vmatpush1.msra.mxu0 0.0
    %2994 = vmatprep.subr.mxu0 0.0
    %2995 = vmatpush1.msra.mxu0 0.0
    %2996 = vmatprep.subr.mxu0 0.0
    %2997 = vmatpush1.msra.mxu0 0.0
    %2998 = vmatprep.subr.mxu0 0.0
    %2999 = vmatpush1.msra.mxu0 0.0
    %3000 = vmatprep.subr.mxu0 0.0
    %3001 = vmatpush1.msra.mxu0 0.0
    %3002 = vmatprep.mubr.f32.mxu0 0.0
    %3003 = vmatmul.mubr.f32.gmra.mrb[0].mxu0 %v2933
    %v3004 = vpop.f32.mrb[0].mxu0
    %v3005 = vadd.f32 0.0, %v3004
    %v3006 = vpop.f32.mrb[0].mxu0
    %3007 = vmatprep.mubr.f32.mxu0 0.0
    %3008 = vmatmul.mubr.f32.gmra.mrb[0].mxu0 %v2936
    %v3009 = vpop.f32.mrb[0].mxu0
    %v3010 = vadd.f32 0.0, %v3009
    %v3011 = vpop.f32.mrb[0].mxu0
    %3012 = vdwg.mxu0
    %v3013 = vlaneseq
    %v3014 = vshrl.u32 %v3013, 7
    %v3015 = vsub.s32 3, %v3014
    %v3016 = vrot.slane %v1565, %v3015
    %v3017 = vadd.f32 %v3005, %v3016
    %v3018 = vadd.f32 %v3010, %v3016
    %v3019 = vadd.f32 %v2843, %v3017
    %v3020 = vadd.f32 %v2844, %v3018
    %v3021 = vsel %vm46, %v3019, 0.0
    %3022 = vadd.xlane.f32.xlu0 %v3021
    %v3023 = vpop.xlane.xlu0 %3022
    %v3024 = vsel %vm46, %v3020, 0.0
    %3025 = vadd.xlane.f32.xlu0 %v3024
    %v3026 = vpop.xlane.xlu0 %3025
    %v3027 = vmul.f32 %v3023, %v1286
    %v3028 = vmul.f32 %v3026, %v1286
    %v3029 = vmul.f32 %v3019, %v3019
    %v3030 = vmul.f32 %v3020, %v3020
    %v3031 = vsel %vm46, %v3029, 0.0
    %3032 = vadd.xlane.f32.xlu0 %v3031
    %v3033 = vpop.xlane.xlu0 %3032
    %v3034 = vsel %vm46, %v3030, 0.0
    %3035 = vadd.xlane.f32.xlu0 %v3034
    %v3036 = vpop.xlane.xlu0 %3035
    %v3037 = vmul.f32 %v3033, %v1286
    %v3038 = vmul.f32 %v3036, %v1286
    %v3039 = vmul.f32 %v3027, %v3027
    %v3040 = vmul.f32 %v3028, %v3028
    %v3041 = vsub.f32 %v3037, %v3039
    %v3042 = vsub.f32 %v3038, %v3040
    %v3043 = vmax.f32 %v3041, 0.0
    %v3044 = vmax.f32 %v3042, 0.0
    %v3045 = vsub.f32 %v3019, %v3027
    %v3046 = vsub.f32 %v3020, %v3028
    %v3047 = vadd.f32 %v3043, 1e-05
    %v3048 = vadd.f32 %v3044, 1e-05
    %v3049 = vrsqrt.pop %v3047
    %v3050 = vrsqrt.pop %v3048
    %v3051 = vmul.f32 %v3045, %v3049
    %v3052 = vmul.f32 %v3046, %v3050
    %v3053 = vlaneseq
    %v3054 = vshrl.u32 %v3053, 7
    %v3055 = vsub.s32 6, %v3054
    %v3056 = vrot.slane %v1565, %v3055
    %v3057 = vmul.f32 %v3051, %v3056
    %v3058 = vmul.f32 %v3052, %v3056
    %v3059 = vlaneseq
    %v3060 = vshrl.u32 %v3059, 7
    %v3061 = vsub.s32 7, %v3060
    %v3062 = vrot.slane %v1565, %v3061
    %v3063 = vadd.f32 %v3057, %v3062
    %v3064 = vadd.f32 %v3058, %v3062
    %3065 = vst.msk [vmem:[#allocation2] sm:$0xff] %vm46, %v3063
    %3066 = vst.msk [vmem:[#allocation2 + $0x8] sm:$0xff] %vm46, %v3064
    // Predicated region
    $region22: #{tpu_custom_call.1} parent=1 // pred_check
      _
    $region23: #{tpu_custom_call.1} parent=1 // pred_check_branch
      %3068 = sbr.rel (0) target = $region25
    $region24: #{tpu_custom_call.1} parent=1 // pred_region
      %s3070 = ssub.s32 256, 256
      %3071 = vsyncadd [#allocation3], %s3070
      %s3072 = sshll.u32 [#allocation2], 4
      %s3073 = int_to_ptr.vmem [resolvable:$true] %s3072
      %3078 = dma.vmem_to_hbm [thread:$0]  %s3073, 256, %s5, [#allocation3], 128, 128, 8
    $region25: #{tpu_custom_call.1} parent=1 // pred_fallthru
      _
    // Predicated region
    $region26: #{tpu_custom_call.1} parent=1 // pred_check
      _
    $region27: #{tpu_custom_call.1} parent=1 // pred_check_branch
      %3080 = sbr.rel (0) target = $region29
    $region28: #{tpu_custom_call.1} parent=1 // pred_region
      %3081 = dma.done [#allocation3], 256
    $region29: #{tpu_custom_call.1} parent=1 // pred_fallthru
      _
    %3082 = vsyncpa [#allocation3], 1

</llo_original>
